<compile_context>
chip_gen: v5e
topology: v5e:2x2
jax: 0.10.0
libtpu: 0.0.40
codegen_flags: <defaults>
</compile_context>

<pallas_src>
import functools

import jax
import jax.numpy as jnp
import numpy as np
from jax.experimental import pallas as pl
from jax.experimental.pallas import tpu as pltpu


# ----------------------------------------------------------------------------
# Fused ResBlock kernel (one grid step == NB batch samples)
# ----------------------------------------------------------------------------
def _resblock_kernel(*refs, lsc, downsamp, first):
    # Unpack:  inputs..., output, scratches...
    x_ref, w1_ref, w2_ref = refs[0], refs[1], refs[2]
    i = 3
    ws_ref = None
    if lsc:
        ws_ref = refs[i]
        i += 1
    o_ref = refs[i]
    pad1 = refs[i + 1]
    pad2 = refs[i + 2]
    pool_scr = refs[i + 3] if downsamp else None

    NB, H, W, Cin = x_ref.shape
    Cout = w1_ref.shape[1]
    R = NB * H * W
    taps = [(kh, kw) for kh in range(3) for kw in range(3)]

    def fill_halo(pad, interior, c):
        """Zero only the 1-px border strips; store the interior once."""
        zrow = jnp.zeros((NB, 1, W + 2, c), jnp.float32)
        zcol = jnp.zeros((NB, H, 1, c), jnp.float32)
        pad[:, 0:1, :, :] = zrow
        pad[:, H + 1:H + 2, :, :] = zrow
        pad[:, 1:H + 1, 0:1, :] = zcol
        pad[:, 1:H + 1, W + 1:W + 2, :] = zcol
        pad[:, 1:H + 1, 1:W + 1, :] = interior

    def im2col_matmul(pad, c, w_ref):
        """9 shifted tap windows -> lane-concat in registers -> one MXU dot."""
        col = jnp.concatenate(
            [pad[:, kh:kh + H, kw:kw + W, :] for kh, kw in taps], axis=-1)
        return jnp.dot(col.reshape(R, 9 * c), w_ref[...],
                       preferred_element_type=jnp.float32)

    x = x_ref[...].astype(jnp.float32)

    # Pre-activation (hoisted: applied once, not once per tap).  MyAct ~ ReLU.
    xa = x if first else jnp.maximum(x, 0.0)

    # ---- conv1 -------------------------------------------------------------
    fill_halo(pad1, xa, Cin)
    h1 = jnp.maximum(im2col_matmul(pad1, Cin, w1_ref), 0.0)   # act after conv1

    # ---- conv2 -------------------------------------------------------------
    fill_halo(pad2, h1.reshape(NB, H, W, Cout), Cout)
    h2 = im2col_matmul(pad2, Cout, w2_ref)

    # ---- shortcut (uses the *raw* inputs, per the PyTorch module) ----------
    if lsc:
        s = jnp.dot(x.reshape(R, Cin), ws_ref[...],
                    preferred_element_type=jnp.float32)
    else:
        s = x.reshape(R, Cin)                                  # Cin == Cout

    total = h2 + s                                             # (R, Cout) f32
    # Note: pool(h)+pool(s) == pool(h+s) by linearity, so one fused pool below.

    # ---- epilogue: optional fused 2x2 average pool + store -----------------
    if not downsamp:
        o_ref[...] = total.reshape(NB, H, W, Cout).astype(o_ref.dtype)
    else:
        Hp, Wp = H // 2, W // 2
        # H-direction pool in registers: split a leading dim and add.
        t5 = total.reshape(NB, Hp, 2, W, Cout)
        hpool = t5[:, :, 0] + t5[:, :, 1]                      # (NB,Hp,W,Cout)
        # W-direction pool: adjacent rows of the flat slab are adjacent w;
        # combine via sublane-strided loads from a small VMEM scratch.
        pool_scr[...] = hpool.reshape(NB * Hp * W, Cout)
        Rp = NB * Hp * Wp
        even = pool_scr[pl.ds(0, Rp, stride=2), :]
        odd = pool_scr[pl.ds(1, Rp, stride=2), :]
        pooled = 0.25 * (even + odd)
        o_ref[...] = pooled.reshape(NB, Hp, Wp, Cout).astype(o_ref.dtype)


# ----------------------------------------------------------------------------
# Wrapper: NCHW boundary, batched grid over N, weights resident
# ----------------------------------------------------------------------------
def _pick_block_batch(n, max_nb=8):
    """Largest divisor of n (<= max_nb) that keeps >= 2 grid steps if possible."""
    divisors = [d for d in range(1, min(n, max_nb) + 1) if n % d == 0]
    preferred = [d for d in divisors if n // d >= 2]
    return max(preferred) if preferred else max(divisors)


def resblock_imp_forward(x_nchw, params, *, downsamp, first, max_block_batch=8):
    """Matches ResBlock_imp.forward; input/output are NCHW like PyTorch."""
    x = jnp.transpose(x_nchw, (0, 2, 3, 1))            # NCHW -> NHWC (glue)
    N, H, W, Cin = x.shape
    Cout = params["w1"].shape[-1]
    lsc = "ws" in params

    if downsamp:
        assert lsc, "downsamp without the 1x1 shortcut is unreachable in ResBlock_imp"
        assert H % 2 == 0 and W % 2 == 0, "2x2 avg-pool needs even H, W"
    if not lsc:
        assert Cin == Cout, "identity shortcut requires inc == outc"

    # Flatten conv weights so each conv is a single (9*Cin, Cout) matmul.
    w1f = params["w1"].reshape(9 * Cin, Cout)
    w2f = params["w2"].reshape(9 * Cout, Cout)

    Ho, Wo = (H // 2, W // 2) if downsamp else (H, W)
    NB = _pick_block_batch(N, max_block_batch)
    grid = (N // NB,)

    kern = functools.partial(_resblock_kernel, lsc=lsc, downsamp=downsamp,
                             first=first)

    in_specs = [
        pl.BlockSpec((NB, H, W, Cin), lambda n: (n, 0, 0, 0)),  # x (NB samples)
        pl.BlockSpec((9 * Cin, Cout), lambda n: (0, 0)),        # w1 (resident)
        pl.BlockSpec((9 * Cout, Cout), lambda n: (0, 0)),       # w2 (resident)
    ]
    args = [x, w1f, w2f]
    if lsc:
        in_specs.append(pl.BlockSpec((Cin, Cout), lambda n: (0, 0)))  # ws
        args.append(params["ws"])

    scratch = [
        pltpu.VMEM((NB, H + 2, W + 2, Cin), jnp.float32),    # halo-padded input
        pltpu.VMEM((NB, H + 2, W + 2, Cout), jnp.float32),   # halo-padded h1
    ]
    if downsamp:
        scratch.append(pltpu.VMEM((NB * (H // 2) * W, Cout), jnp.float32))

    out = pl.pallas_call(
        kern,
        out_shape=jax.ShapeDtypeStruct((N, Ho, Wo, Cout), x.dtype),
        grid=grid,
        in_specs=in_specs,
        out_specs=pl.BlockSpec((NB, Ho, Wo, Cout), lambda n: (n, 0, 0, 0)),
        scratch_shapes=scratch,
        compiler_params=pltpu.CompilerParams(
            dimension_semantics=("parallel",),       # megacore-friendly batch
            vmem_limit_bytes=32 * 1024 * 1024,       # above v5e's 16 MiB default
        ),
    )(*args)
    return jnp.transpose(out, (0, 3, 1, 2))           # NHWC -> NCHW


# ----------------------------------------------------------------------------
# Params + pure-JAX reference (for correctness check)
# ----------------------------------------------------------------------------
def init_params(key, inc, outc, downsamp):
    k1, k2, k3 = jax.random.split(key, 3)
    params = {
        "w1": 0.1 * jax.random.normal(k1, (3, 3, inc, outc), jnp.float32),
        "w2": 0.1 * jax.random.normal(k2, (3, 3, outc, outc), jnp.float32),
    }
    if inc != outc or downsamp:                       # self.lsc
        params["ws"] = 0.1 * jax.random.normal(k3, (inc, outc), jnp.float32)
    return params


def _ref_forward(x_nchw, params, *, downsamp, first):
    x = jnp.transpose(x_nchw, (0, 2, 3, 1))
    inputs = x
    act = lambda t: jnp.maximum(t, 0.0)
    conv = lambda t, w, pad: jax.lax.conv_general_dilated(
        t, w, (1, 1), pad, dimension_numbers=("NHWC", "HWIO", "NHWC"))
    pool = lambda t: jax.lax.reduce_window(
        t, 0.0, jax.lax.add, (1, 2, 2, 1), (1, 2, 2, 1), "VALID") / 4.0

    h = x if first else act(x)
    h = conv(h, params["w1"], ((1, 1), (1, 1)))
    h = act(h)
    h = conv(h, params["w2"], ((1, 1), (1, 1)))
    if downsamp:
        h = pool(h)
    if "ws" in params:
        s = conv(inputs, params["ws"][None, None], ((0, 0), (0, 0)))
        if downsamp:
            s = pool(s)
    else:
        s = inputs
    return jnp.transpose(h + s, (0, 3, 1, 2))


# ----------------------------------------------------------------------------
if __name__ == "__main__":
    key = jax.random.PRNGKey(0)
    kx, kp1, kp2, kx8 = jax.random.split(key, 4)

    # Config 1: channel expansion + downsample (+ 1x1 shortcut), N=2 -> NB=1.
    N, INC, OUTC, HW = 2, 4, 8, 16
    x = jax.random.normal(kx, (N, INC, HW, HW), jnp.float32)
    params1 = init_params(kp1, INC, OUTC, downsamp=True)
    out1 = jax.block_until_ready(
        resblock_imp_forward(x, params1, downsamp=True, first=False))
    ref1 = _ref_forward(x, params1, downsamp=True, first=False)
    np.testing.assert_allclose(np.asarray(out1), np.asarray(ref1),
                               rtol=1e-4, atol=1e-4)
    assert out1.shape == (N, OUTC, HW // 2, HW // 2)

    # Config 2: identity shortcut, first block (no pre-activation), no pool.
    params2 = init_params(kp2, INC, INC, downsamp=False)
    out2 = jax.block_until_ready(
        resblock_imp_forward(x, params2, downsamp=False, first=True))
    ref2 = _ref_forward(x, params2, downsamp=False, first=True)
    np.testing.assert_allclose(np.asarray(out2), np.asarray(ref2),
                               rtol=1e-4, atol=1e-4)
    assert out2.shape == (N, INC, HW, HW)

    # Config 3: larger batch to exercise batch blocking (N=8 -> NB=4, grid=2).
    x8 = jax.random.normal(kx8, (8, INC, HW, HW), jnp.float32)
    out3 = jax.block_until_ready(
        resblock_imp_forward(x8, params1, downsamp=True, first=False))
    ref3 = _ref_forward(x8, params1, downsamp=True, first=False)
    np.testing.assert_allclose(np.asarray(out3), np.asarray(ref3),
                               rtol=1e-4, atol=1e-4)
    assert out3.shape == (8, OUTC, HW // 2, HW // 2)

    print("KERNEL_OK")
</pallas_src>

<mosaic_0001>
module attributes {stable_mosaic.version = 11 : i64} {
  func.func @_resblock_kernel(%arg0: i32, %arg1: memref<1x16x16x4xf32, #tpu.memory_space<vmem>>, %arg2: memref<36x8xf32, #tpu.memory_space<vmem>>, %arg3: memref<72x8xf32, #tpu.memory_space<vmem>>, %arg4: memref<4x8xf32, #tpu.memory_space<vmem>>, %arg5: memref<1x8x8x8xf32, #tpu.memory_space<vmem>>, %arg6: memref<1x18x18x4xf32, #tpu.memory_space<vmem>>, %arg7: memref<1x18x18x8xf32, #tpu.memory_space<vmem>>, %arg8: memref<128x8xf32, #tpu.memory_space<vmem>>) attributes {dimension_semantics = [#tpu.dimension_semantics<parallel>], iteration_bounds = array<i64: 2>, scalar_prefetch = 0 : i64, scratch_operands = 3 : i64, tpu.core_type = #tpu.core_type<tc>, window_params = [{transform_indices = @transform_0, window_bounds = array<i64: 1, 16, 16, 4>}, {pipeline_mode = #tpu.pipeline_mode<synchronous>, transform_indices = @transform_1, window_bounds = array<i64: 36, 8>}, {pipeline_mode = #tpu.pipeline_mode<synchronous>, transform_indices = @transform_2, window_bounds = array<i64: 72, 8>}, {pipeline_mode = #tpu.pipeline_mode<synchronous>, transform_indices = @transform_3, window_bounds = array<i64: 4, 8>}, {transform_indices = @transform_4, window_bounds = array<i64: 1, 8, 8, 8>}]} {
    %c0 = arith.constant 0 : index
    %c0_0 = arith.constant 0 : index
    %c0_1 = arith.constant 0 : index
    %c0_2 = arith.constant 0 : index
    %0 = vector.load %arg1[%c0, %c0_0, %c0_1, %c0_2] : memref<1x16x16x4xf32, #tpu.memory_space<vmem>>, vector<1x16x16x4xf32>
    %cst = arith.constant 0.000000e+00 : f32
    %1 = vector.broadcast %cst : f32 to vector<1x16x16x4xf32>
    %2 = arith.maximumf %0, %1 : vector<1x16x16x4xf32>
    %cst_3 = arith.constant 0.000000e+00 : f32
    %3 = vector.broadcast %cst_3 : f32 to vector<1x1x18x4xf32>
    %cst_4 = arith.constant 0.000000e+00 : f32
    %4 = vector.broadcast %cst_4 : f32 to vector<1x16x1x4xf32>
    %c0_5 = arith.constant 0 : index
    %c0_6 = arith.constant 0 : index
    %c0_7 = arith.constant 0 : index
    %c0_8 = arith.constant 0 : index
    %5 = vector.load %arg6[%c0_5, %c0_6, %c0_7, %c0_8] : memref<1x18x18x4xf32, #tpu.memory_space<vmem>>, vector<1x1x18x4xf32>
    tpu.vector_store %arg6[%c0_5, %c0_6, %c0_7, %c0_8], %3 {strides = array<i32>} : memref<1x18x18x4xf32, #tpu.memory_space<vmem>>, vector<1x1x18x4xf32>,
    %c0_9 = arith.constant 0 : index
    %c17 = arith.constant 17 : index
    %c0_10 = arith.constant 0 : index
    %c0_11 = arith.constant 0 : index
    %6 = vector.load %arg6[%c0_9, %c17, %c0_10, %c0_11] : memref<1x18x18x4xf32, #tpu.memory_space<vmem>>, vector<1x1x18x4xf32>
    tpu.vector_store %arg6[%c0_9, %c17, %c0_10, %c0_11], %3 {strides = array<i32>} : memref<1x18x18x4xf32, #tpu.memory_space<vmem>>, vector<1x1x18x4xf32>,
    %c0_12 = arith.constant 0 : index
    %c1 = arith.constant 1 : index
    %c0_13 = arith.constant 0 : index
    %c0_14 = arith.constant 0 : index
    %7 = vector.load %arg6[%c0_12, %c1, %c0_13, %c0_14] : memref<1x18x18x4xf32, #tpu.memory_space<vmem>>, vector<1x16x1x4xf32>
    tpu.vector_store %arg6[%c0_12, %c1, %c0_13, %c0_14], %4 {strides = array<i32>} : memref<1x18x18x4xf32, #tpu.memory_space<vmem>>, vector<1x16x1x4xf32>,
    %c0_15 = arith.constant 0 : index
    %c1_16 = arith.constant 1 : index
    %c17_17 = arith.constant 17 : index
    %c0_18 = arith.constant 0 : index
    %8 = vector.load %arg6[%c0_15, %c1_16, %c17_17, %c0_18] : memref<1x18x18x4xf32, #tpu.memory_space<vmem>>, vector<1x16x1x4xf32>
    tpu.vector_store %arg6[%c0_15, %c1_16, %c17_17, %c0_18], %4 {strides = array<i32>} : memref<1x18x18x4xf32, #tpu.memory_space<vmem>>, vector<1x16x1x4xf32>,
    %c0_19 = arith.constant 0 : index
    %c1_20 = arith.constant 1 : index
    %c1_21 = arith.constant 1 : index
    %c0_22 = arith.constant 0 : index
    %9 = vector.load %arg6[%c0_19, %c1_20, %c1_21, %c0_22] : memref<1x18x18x4xf32, #tpu.memory_space<vmem>>, vector<1x16x16x4xf32>
    tpu.vector_store %arg6[%c0_19, %c1_20, %c1_21, %c0_22], %2 {strides = array<i32>} : memref<1x18x18x4xf32, #tpu.memory_space<vmem>>, vector<1x16x16x4xf32>,
    %c0_23 = arith.constant 0 : index
    %c0_24 = arith.constant 0 : index
    %c0_25 = arith.constant 0 : index
    %c0_26 = arith.constant 0 : index
    %10 = vector.load %arg6[%c0_23, %c0_24, %c0_25, %c0_26] : memref<1x18x18x4xf32, #tpu.memory_space<vmem>>, vector<1x16x16x4xf32>
    %c0_27 = arith.constant 0 : index
    %c0_28 = arith.constant 0 : index
    %c1_29 = arith.constant 1 : index
    %c0_30 = arith.constant 0 : index
    %11 = vector.load %arg6[%c0_27, %c0_28, %c1_29, %c0_30] : memref<1x18x18x4xf32, #tpu.memory_space<vmem>>, vector<1x16x16x4xf32>
    %c0_31 = arith.constant 0 : index
    %c0_32 = arith.constant 0 : index
    %c2 = arith.constant 2 : index
    %c0_33 = arith.constant 0 : index
    %12 = vector.load %arg6[%c0_31, %c0_32, %c2, %c0_33] : memref<1x18x18x4xf32, #tpu.memory_space<vmem>>, vector<1x16x16x4xf32>
    %c0_34 = arith.constant 0 : index
    %c1_35 = arith.constant 1 : index
    %c0_36 = arith.constant 0 : index
    %c0_37 = arith.constant 0 : index
    %13 = vector.load %arg6[%c0_34, %c1_35, %c0_36, %c0_37] : memref<1x18x18x4xf32, #tpu.memory_space<vmem>>, vector<1x16x16x4xf32>
    %c0_38 = arith.constant 0 : index
    %c1_39 = arith.constant 1 : index
    %c1_40 = arith.constant 1 : index
    %c0_41 = arith.constant 0 : index
    %14 = vector.load %arg6[%c0_38, %c1_39, %c1_40, %c0_41] : memref<1x18x18x4xf32, #tpu.memory_space<vmem>>, vector<1x16x16x4xf32>
    %c0_42 = arith.constant 0 : index
    %c1_43 = arith.constant 1 : index
    %c2_44 = arith.constant 2 : index
    %c0_45 = arith.constant 0 : index
    %15 = vector.load %arg6[%c0_42, %c1_43, %c2_44, %c0_45] : memref<1x18x18x4xf32, #tpu.memory_space<vmem>>, vector<1x16x16x4xf32>
    %c0_46 = arith.constant 0 : index
    %c2_47 = arith.constant 2 : index
    %c0_48 = arith.constant 0 : index
    %c0_49 = arith.constant 0 : index
    %16 = vector.load %arg6[%c0_46, %c2_47, %c0_48, %c0_49] : memref<1x18x18x4xf32, #tpu.memory_space<vmem>>, vector<1x16x16x4xf32>
    %c0_50 = arith.constant 0 : index
    %c2_51 = arith.constant 2 : index
    %c1_52 = arith.constant 1 : index
    %c0_53 = arith.constant 0 : index
    %17 = vector.load %arg6[%c0_50, %c2_51, %c1_52, %c0_53] : memref<1x18x18x4xf32, #tpu.memory_space<vmem>>, vector<1x16x16x4xf32>
    %c0_54 = arith.constant 0 : index
    %c2_55 = arith.constant 2 : index
    %c2_56 = arith.constant 2 : index
    %c0_57 = arith.constant 0 : index
    %18 = vector.load %arg6[%c0_54, %c2_55, %c2_56, %c0_57] : memref<1x18x18x4xf32, #tpu.memory_space<vmem>>, vector<1x16x16x4xf32>
    %19 = tpu.concatenate %10, %11, %12, %13, %14, %15, %16, %17, %18 in 3 : vector<1x16x16x4xf32>, vector<1x16x16x4xf32>, vector<1x16x16x4xf32>, vector<1x16x16x4xf32>, vector<1x16x16x4xf32>, vector<1x16x16x4xf32>, vector<1x16x16x4xf32>, vector<1x16x16x4xf32>, vector<1x16x16x4xf32> -> vector<1x16x16x36xf32>
    %20 = vector.shape_cast %19 : vector<1x16x16x36xf32> to vector<256x36xf32>
    %c0_58 = arith.constant 0 : index
    %c0_59 = arith.constant 0 : index
    %21 = vector.load %arg2[%c0_58, %c0_59] : memref<36x8xf32, #tpu.memory_space<vmem>>, vector<36x8xf32>
    %cst_60 = arith.constant dense<0.000000e+00> : vector<256x8xf32>
    %22 = tpu.matmul %20, %21, %cst_60 {dimension_numbers = #tpu.dot_dimension_numbers<[1], [0], [0], [1], [0, 0, 1, 1], [], []>} : vector<256x36xf32>, vector<36x8xf32>, vector<256x8xf32> -> vector<256x8xf32>
    %cst_61 = arith.constant 0.000000e+00 : f32
    %23 = vector.broadcast %cst_61 : f32 to vector<256x8xf32>
    %24 = arith.maximumf %22, %23 : vector<256x8xf32>
    %25 = vector.shape_cast %24 : vector<256x8xf32> to vector<1x16x16x8xf32>
    %cst_62 = arith.constant 0.000000e+00 : f32
    %26 = vector.broadcast %cst_62 : f32 to vector<1x1x18x8xf32>
    %cst_63 = arith.constant 0.000000e+00 : f32
    %27 = vector.broadcast %cst_63 : f32 to vector<1x16x1x8xf32>
    %c0_64 = arith.constant 0 : index
    %c0_65 = arith.constant 0 : index
    %c0_66 = arith.constant 0 : index
    %c0_67 = arith.constant 0 : index
    %28 = vector.load %arg7[%c0_64, %c0_65, %c0_66, %c0_67] : memref<1x18x18x8xf32, #tpu.memory_space<vmem>>, vector<1x1x18x8xf32>
    tpu.vector_store %arg7[%c0_64, %c0_65, %c0_66, %c0_67], %26 {strides = array<i32>} : memref<1x18x18x8xf32, #tpu.memory_space<vmem>>, vector<1x1x18x8xf32>,
    %c0_68 = arith.constant 0 : index
    %c17_69 = arith.constant 17 : index
    %c0_70 = arith.constant 0 : index
    %c0_71 = arith.constant 0 : index
    %29 = vector.load %arg7[%c0_68, %c17_69, %c0_70, %c0_71] : memref<1x18x18x8xf32, #tpu.memory_space<vmem>>, vector<1x1x18x8xf32>
    tpu.vector_store %arg7[%c0_68, %c17_69, %c0_70, %c0_71], %26 {strides = array<i32>} : memref<1x18x18x8xf32, #tpu.memory_space<vmem>>, vector<1x1x18x8xf32>,
    %c0_72 = arith.constant 0 : index
    %c1_73 = arith.constant 1 : index
    %c0_74 = arith.constant 0 : index
    %c0_75 = arith.constant 0 : index
    %30 = vector.load %arg7[%c0_72, %c1_73, %c0_74, %c0_75] : memref<1x18x18x8xf32, #tpu.memory_space<vmem>>, vector<1x16x1x8xf32>
    tpu.vector_store %arg7[%c0_72, %c1_73, %c0_74, %c0_75], %27 {strides = array<i32>} : memref<1x18x18x8xf32, #tpu.memory_space<vmem>>, vector<1x16x1x8xf32>,
    %c0_76 = arith.constant 0 : index
    %c1_77 = arith.constant 1 : index
    %c17_78 = arith.constant 17 : index
    %c0_79 = arith.constant 0 : index
    %31 = vector.load %arg7[%c0_76, %c1_77, %c17_78, %c0_79] : memref<1x18x18x8xf32, #tpu.memory_space<vmem>>, vector<1x16x1x8xf32>
    tpu.vector_store %arg7[%c0_76, %c1_77, %c17_78, %c0_79], %27 {strides = array<i32>} : memref<1x18x18x8xf32, #tpu.memory_space<vmem>>, vector<1x16x1x8xf32>,
    %c0_80 = arith.constant 0 : index
    %c1_81 = arith.constant 1 : index
    %c1_82 = arith.constant 1 : index
    %c0_83 = arith.constant 0 : index
    %32 = vector.load %arg7[%c0_80, %c1_81, %c1_82, %c0_83] : memref<1x18x18x8xf32, #tpu.memory_space<vmem>>, vector<1x16x16x8xf32>
    tpu.vector_store %arg7[%c0_80, %c1_81, %c1_82, %c0_83], %25 {strides = array<i32>} : memref<1x18x18x8xf32, #tpu.memory_space<vmem>>, vector<1x16x16x8xf32>,
    %c0_84 = arith.constant 0 : index
    %c0_85 = arith.constant 0 : index
    %c0_86 = arith.constant 0 : index
    %c0_87 = arith.constant 0 : index
    %33 = vector.load %arg7[%c0_84, %c0_85, %c0_86, %c0_87] : memref<1x18x18x8xf32, #tpu.memory_space<vmem>>, vector<1x16x16x8xf32>
    %c0_88 = arith.constant 0 : index
    %c0_89 = arith.constant 0 : index
    %c1_90 = arith.constant 1 : index
    %c0_91 = arith.constant 0 : index
    %34 = vector.load %arg7[%c0_88, %c0_89, %c1_90, %c0_91] : memref<1x18x18x8xf32, #tpu.memory_space<vmem>>, vector<1x16x16x8xf32>
    %c0_92 = arith.constant 0 : index
    %c0_93 = arith.constant 0 : index
    %c2_94 = arith.constant 2 : index
    %c0_95 = arith.constant 0 : index
    %35 = vector.load %arg7[%c0_92, %c0_93, %c2_94, %c0_95] : memref<1x18x18x8xf32, #tpu.memory_space<vmem>>, vector<1x16x16x8xf32>
    %c0_96 = arith.constant 0 : index
    %c1_97 = arith.constant 1 : index
    %c0_98 = arith.constant 0 : index
    %c0_99 = arith.constant 0 : index
    %36 = vector.load %arg7[%c0_96, %c1_97, %c0_98, %c0_99] : memref<1x18x18x8xf32, #tpu.memory_space<vmem>>, vector<1x16x16x8xf32>
    %c0_100 = arith.constant 0 : index
    %c1_101 = arith.constant 1 : index
    %c1_102 = arith.constant 1 : index
    %c0_103 = arith.constant 0 : index
    %37 = vector.load %arg7[%c0_100, %c1_101, %c1_102, %c0_103] : memref<1x18x18x8xf32, #tpu.memory_space<vmem>>, vector<1x16x16x8xf32>
    %c0_104 = arith.constant 0 : index
    %c1_105 = arith.constant 1 : index
    %c2_106 = arith.constant 2 : index
    %c0_107 = arith.constant 0 : index
    %38 = vector.load %arg7[%c0_104, %c1_105, %c2_106, %c0_107] : memref<1x18x18x8xf32, #tpu.memory_space<vmem>>, vector<1x16x16x8xf32>
    %c0_108 = arith.constant 0 : index
    %c2_109 = arith.constant 2 : index
    %c0_110 = arith.constant 0 : index
    %c0_111 = arith.constant 0 : index
    %39 = vector.load %arg7[%c0_108, %c2_109, %c0_110, %c0_111] : memref<1x18x18x8xf32, #tpu.memory_space<vmem>>, vector<1x16x16x8xf32>
    %c0_112 = arith.constant 0 : index
    %c2_113 = arith.constant 2 : index
    %c1_114 = arith.constant 1 : index
    %c0_115 = arith.constant 0 : index
    %40 = vector.load %arg7[%c0_112, %c2_113, %c1_114, %c0_115] : memref<1x18x18x8xf32, #tpu.memory_space<vmem>>, vector<1x16x16x8xf32>
    %c0_116 = arith.constant 0 : index
    %c2_117 = arith.constant 2 : index
    %c2_118 = arith.constant 2 : index
    %c0_119 = arith.constant 0 : index
    %41 = vector.load %arg7[%c0_116, %c2_117, %c2_118, %c0_119] : memref<1x18x18x8xf32, #tpu.memory_space<vmem>>, vector<1x16x16x8xf32>
    %42 = tpu.concatenate %33, %34, %35, %36, %37, %38, %39, %40, %41 in 3 : vector<1x16x16x8xf32>, vector<1x16x16x8xf32>, vector<1x16x16x8xf32>, vector<1x16x16x8xf32>, vector<1x16x16x8xf32>, vector<1x16x16x8xf32>, vector<1x16x16x8xf32>, vector<1x16x16x8xf32>, vector<1x16x16x8xf32> -> vector<1x16x16x72xf32>
    %43 = vector.shape_cast %42 : vector<1x16x16x72xf32> to vector<256x72xf32>
    %c0_120 = arith.constant 0 : index
    %c0_121 = arith.constant 0 : index
    %44 = vector.load %arg3[%c0_120, %c0_121] : memref<72x8xf32, #tpu.memory_space<vmem>>, vector<72x8xf32>
    %cst_122 = arith.constant dense<0.000000e+00> : vector<256x8xf32>
    %45 = tpu.matmul %43, %44, %cst_122 {dimension_numbers = #tpu.dot_dimension_numbers<[1], [0], [0], [1], [0, 0, 1, 1], [], []>} : vector<256x72xf32>, vector<72x8xf32>, vector<256x8xf32> -> vector<256x8xf32>
    %46 = vector.shape_cast %0 : vector<1x16x16x4xf32> to vector<256x4xf32>
    %c0_123 = arith.constant 0 : index
    %c0_124 = arith.constant 0 : index
    %47 = vector.load %arg4[%c0_123, %c0_124] : memref<4x8xf32, #tpu.memory_space<vmem>>, vector<4x8xf32>
    %cst_125 = arith.constant dense<0.000000e+00> : vector<256x8xf32>
    %48 = tpu.matmul %46, %47, %cst_125 {dimension_numbers = #tpu.dot_dimension_numbers<[1], [0], [0], [1], [0, 0, 1, 1], [], []>} : vector<256x4xf32>, vector<4x8xf32>, vector<256x8xf32> -> vector<256x8xf32>
    %49 = arith.addf %45, %48 : vector<256x8xf32>
    %50 = vector.shape_cast %49 : vector<256x8xf32> to vector<1x8x2x16x8xf32>
    %51 = vector.extract_strided_slice %50 {offsets = [0, 0, 0, 0, 0], sizes = [1, 8, 1, 16, 8], strides = [1, 1, 1, 1, 1]} : vector<1x8x2x16x8xf32> to vector<1x8x1x16x8xf32>
    %52 = vector.shape_cast %51 : vector<1x8x1x16x8xf32> to vector<1x8x16x8xf32>
    %53 = vector.extract_strided_slice %50 {offsets = [0, 0, 1, 0, 0], sizes = [1, 8, 1, 16, 8], strides = [1, 1, 1, 1, 1]} : vector<1x8x2x16x8xf32> to vector<1x8x1x16x8xf32>
    %54 = vector.shape_cast %53 : vector<1x8x1x16x8xf32> to vector<1x8x16x8xf32>
    %55 = arith.addf %52, %54 : vector<1x8x16x8xf32>
    %56 = vector.shape_cast %55 : vector<1x8x16x8xf32> to vector<128x8xf32>
    %c0_126 = arith.constant 0 : index
    %c0_127 = arith.constant 0 : index
    %57 = vector.load %arg8[%c0_126, %c0_127] : memref<128x8xf32, #tpu.memory_space<vmem>>, vector<128x8xf32>
    tpu.vector_store %arg8[%c0_126, %c0_127], %56 {strides = array<i32>} : memref<128x8xf32, #tpu.memory_space<vmem>>, vector<128x8xf32>,
    %c0_128 = arith.constant 0 : index
    %c0_129 = arith.constant 0 : index
    %58 = tpu.strided_load %arg8[%c0_128, %c0_129] {strides = array<i32: 2, 1>} : memref<128x8xf32, #tpu.memory_space<vmem>>, vector<64x8xf32>
    %c1_130 = arith.constant 1 : index
    %c0_131 = arith.constant 0 : index
    %59 = tpu.strided_load %arg8[%c1_130, %c0_131] {strides = array<i32: 2, 1>} : memref<128x8xf32, #tpu.memory_space<vmem>>, vector<64x8xf32>
    %60 = arith.addf %58, %59 : vector<64x8xf32>
    %cst_132 = arith.constant 2.500000e-01 : f32
    %61 = vector.broadcast %cst_132 : f32 to vector<64x8xf32>
    %62 = arith.mulf %61, %60 : vector<64x8xf32>
    %63 = vector.shape_cast %62 : vector<64x8xf32> to vector<1x8x8x8xf32>
    %c0_133 = arith.constant 0 : index
    %c0_134 = arith.constant 0 : index
    %c0_135 = arith.constant 0 : index
    %c0_136 = arith.constant 0 : index
    %64 = vector.load %arg5[%c0_133, %c0_134, %c0_135, %c0_136] : memref<1x8x8x8xf32, #tpu.memory_space<vmem>>, vector<1x8x8x8xf32>
    tpu.vector_store %arg5[%c0_133, %c0_134, %c0_135, %c0_136], %63 {strides = array<i32>} : memref<1x8x8x8xf32, #tpu.memory_space<vmem>>, vector<1x8x8x8xf32>,
    return
  }
  func.func @transform_0(%arg0: i32) -> (i32, i32, i32, i32) {
    %c0_i32 = arith.constant 0 : i32
    %c0_i32_0 = arith.constant 0 : i32
    %c0_i32_1 = arith.constant 0 : i32
    %c0_i32_2 = arith.constant 0 : i32
    return %arg0, %c0_i32, %c0_i32_0, %c0_i32_1 : i32, i32, i32, i32
  }
  func.func @transform_1(%arg0: i32) -> (i32, i32) {
    %c0_i32 = arith.constant 0 : i32
    %c0_i32_0 = arith.constant 0 : i32
    %c0_i32_1 = arith.constant 0 : i32
    return %c0_i32, %c0_i32_0 : i32, i32
  }
  func.func @transform_2(%arg0: i32) -> (i32, i32) {
    %c0_i32 = arith.constant 0 : i32
    %c0_i32_0 = arith.constant 0 : i32
    %c0_i32_1 = arith.constant 0 : i32
    return %c0_i32, %c0_i32_0 : i32, i32
  }
  func.func @transform_3(%arg0: i32) -> (i32, i32) {
    %c0_i32 = arith.constant 0 : i32
    %c0_i32_0 = arith.constant 0 : i32
    %c0_i32_1 = arith.constant 0 : i32
    return %c0_i32, %c0_i32_0 : i32, i32
  }
  func.func @transform_4(%arg0: i32) -> (i32, i32, i32, i32) {
    %c0_i32 = arith.constant 0 : i32
    %c0_i32_0 = arith.constant 0 : i32
    %c0_i32_1 = arith.constant 0 : i32
    %c0_i32_2 = arith.constant 0 : i32
    return %arg0, %c0_i32, %c0_i32_0, %c0_i32_1 : i32, i32, i32, i32
  }
}

</mosaic_0001>

<llo_original>
// kernel: tpu_custom_call.1
$region0: #{tpu_custom_call.1}
  #allocation0 [shape = 'u32[]', space=smem, size = 0x4, offset = 0x4, fixed_abs, tag = 'smem constant byte address 0x4 - core index']
  #allocation1 [shape = 'u32[72,128]{1,0:T(1,128)}', space=vmem, size = 0x9000, scoped, tag = 'internal scratch']
  #allocation2 [shape = 'f32[1,18,18,4]{3,2,1,0:T(8,128)}', space=vmem, size = 0x36000, scoped, tag = 'scratch operand']
  #allocation3 [shape = 'f32[1,18,18,8]{3,2,1,0:T(8,128)}', space=vmem, size = 0x36000, scoped, tag = 'scratch operand']
  #allocation4 [shape = 'f32[128,8]{1,0:T(8,128)}', space=vmem, size = 0x10000, scoped, tag = 'scratch operand']
  %s0 = inlined_call_operand.vmem [shape: f32[2,16,16,4], index: 0, kind: input, shape index: {}]
  %s1 = inlined_call_operand.vmem [shape: f32[36,8], index: 1, kind: input, shape index: {}]
  %s2 = inlined_call_operand.vmem [shape: f32[72,8], index: 2, kind: input, shape index: {}]
  %s3 = inlined_call_operand.vmem [shape: f32[4,8], index: 3, kind: input, shape index: {}]
  %s4 = inlined_call_operand.hbm [shape: f32[2,8,8,8], index: 4, kind: output, shape index: {}]
  %s5 = sld [smem:[#allocation0]]
  $region49: #{tpu_custom_call.1} parent=0
    _
  %s7 = ssub.s32 1, %s5
  %s8 = scalar_select 0, %s7, %s5
  $region1: #{tpu_custom_call.1} parent=0
    #allocation5 [shape = 'u8[65536]{0}', space=vmem, size = 0x10000, scoped, tag = 'output window, operand 0']
    #allocation6 [shape = 's32[2]{0}', space=sflag, size = 0x8, scoped, tag = 'scoped memory for tpu_custom_call.1']
    %9 = vsyncpa [#allocation6], 0
    %s10 = scalar_lea.sflag [#allocation6], 1
    %11 = vsyncpa %s10, 0
    loop: start=0, step=1, limit=4
    $region2: #{tpu_custom_call.1} parent=1 // loop_pre_header
      _
    $region3: #{tpu_custom_call.1} parent=1 // loop_header
      %s13 = sphi 0, %s17
      %p14 = scmp.ge.s32.totalorder %s13, 4
      %s23 = sphi 0, %s25
      %s26 = sphi 0, %s23
      %s27 = sphi 0, %s26
      %s43 = sphi 0, %s27
      %s47 = sphi 0, %s47
      %s49 = sphi 0, %s47
      %s50 = sphi 0, %s49
      %s64 = sphi 0, %s50
      %s68 = sphi 0, %s68
      %s70 = sphi 0, %s68
      %s71 = sphi 0, %s70
      %s85 = sphi 0, %s71
      %s89 = sphi 0, %s89
      %s91 = sphi 0, %s89
      %s92 = sphi 0, %s91
      %s106 = sphi 0, %s92
      %s112 = sphi 0, %s114
      %s115 = sphi 0, %s112
      %s116 = sphi 0, %s115
      %s132 = sphi 0, %s116
    $region4: #{tpu_custom_call.1} parent=1 // loop_header_branch
      %16 = sbr.rel (%p14) target = $region8
    $region5: #{tpu_custom_call.1} parent=1 // loop_body
      %s18 = ssub.s32 %s13, 1
      %s19 = ssub.s32 %s13, 2
      %s20 = sadd.s32 %s13, 1
      %s21 = ssub.s32 %s13, %s20
      %p22 = scmp.eq.s32.totalorder %s21, 0
      %s24 = sadd.s32 %s23, 1
      %s25 = scalar_select %p22, %s23, %s24
      %p28 = pneg %p22
      %p29 = scmp.eq.s32.totalorder %s13, 1
      %p30 = por %p28, %p29
      %p31 = scmp.ne.s32.totalorder %s23, %s26
      %p32 = scmp.eq.s32.totalorder %s13, 0
      %p33 = por %p31, %p32
      %p34 = scmp.ne.s32.totalorder %s23, %s26
      %p35 = scmp.eq.s32.totalorder %s18, 1
      %p36 = por %p34, %p35
      %p37 = scmp.ne.s32.totalorder %s26, %s27
      %p38 = scmp.eq.s32.totalorder %s18, 0
      %p39 = por %p37, %p38
      %p40 = scmp.ne.s32.totalorder %s26, %s27
      %p41 = scmp.eq.s32.totalorder %s19, 1
      %p42 = por %p40, %p41
      %p44 = scmp.ne.s32.totalorder %s27, %s43
      %p45 = scmp.eq.s32.totalorder %s19, 0
      %p46 = por %p44, %p45
      %s48 = sadd.s32 %s47, 1
      %p51 = scmp.eq.s32.totalorder %s13, 1
      %p52 = scmp.ne.s32.totalorder %s47, %s49
      %p53 = scmp.eq.s32.totalorder %s13, 0
      %p54 = por %p52, %p53
      %p55 = scmp.ne.s32.totalorder %s47, %s49
      %p56 = scmp.eq.s32.totalorder %s18, 1
      %p57 = por %p55, %p56
      %p58 = scmp.ne.s32.totalorder %s49, %s50
      %p59 = scmp.eq.s32.totalorder %s18, 0
      %p60 = por %p58, %p59
      %p61 = scmp.ne.s32.totalorder %s49, %s50
      %p62 = scmp.eq.s32.totalorder %s19, 1
      %p63 = por %p61, %p62
      %p65 = scmp.ne.s32.totalorder %s50, %s64
      %p66 = scmp.eq.s32.totalorder %s19, 0
      %p67 = por %p65, %p66
      %s69 = sadd.s32 %s68, 1
      %p72 = scmp.eq.s32.totalorder %s13, 1
      %p73 = scmp.ne.s32.totalorder %s68, %s70
      %p74 = scmp.eq.s32.totalorder %s13, 0
      %p75 = por %p73, %p74
      %p76 = scmp.ne.s32.totalorder %s68, %s70
      %p77 = scmp.eq.s32.totalorder %s18, 1
      %p78 = por %p76, %p77
      %p79 = scmp.ne.s32.totalorder %s70, %s71
      %p80 = scmp.eq.s32.totalorder %s18, 0
      %p81 = por %p79, %p80
      %p82 = scmp.ne.s32.totalorder %s70, %s71
      %p83 = scmp.eq.s32.totalorder %s19, 1
      %p84 = por %p82, %p83
      %p86 = scmp.ne.s32.totalorder %s71, %s85
      %p87 = scmp.eq.s32.totalorder %s19, 0
      %p88 = por %p86, %p87
      %s90 = sadd.s32 %s89, 1
      %p93 = scmp.eq.s32.totalorder %s13, 1
      %p94 = scmp.ne.s32.totalorder %s89, %s91
      %p95 = scmp.eq.s32.totalorder %s13, 0
      %p96 = por %p94, %p95
      %p97 = scmp.ne.s32.totalorder %s89, %s91
      %p98 = scmp.eq.s32.totalorder %s18, 1
      %p99 = por %p97, %p98
      %p100 = scmp.ne.s32.totalorder %s91, %s92
      %p101 = scmp.eq.s32.totalorder %s18, 0
      %p102 = por %p100, %p101
      %p103 = scmp.ne.s32.totalorder %s91, %s92
      %p104 = scmp.eq.s32.totalorder %s19, 1
      %p105 = por %p103, %p104
      %p107 = scmp.ne.s32.totalorder %s92, %s106
      %p108 = scmp.eq.s32.totalorder %s19, 0
      %p109 = por %p107, %p108
      %s110 = ssub.s32 %s13, %s20
      %p111 = scmp.eq.s32.totalorder %s110, 0
      %s113 = sadd.s32 %s112, 1
      %s114 = scalar_select %p111, %s112, %s113
      %p117 = pneg %p111
      %p118 = scmp.eq.s32.totalorder %s13, 1
      %p119 = por %p117, %p118
      %p120 = scmp.ne.s32.totalorder %s112, %s115
      %p121 = scmp.eq.s32.totalorder %s13, 0
      %p122 = por %p120, %p121
      %p123 = scmp.ne.s32.totalorder %s112, %s115
      %p124 = scmp.eq.s32.totalorder %s18, 1
      %p125 = por %p123, %p124
      %p126 = scmp.ne.s32.totalorder %s115, %s116
      %p127 = scmp.eq.s32.totalorder %s18, 0
      %p128 = por %p126, %p127
      %p129 = scmp.ne.s32.totalorder %s115, %s116
      %p130 = scmp.eq.s32.totalorder %s19, 1
      %p131 = por %p129, %p130
      %p133 = scmp.ne.s32.totalorder %s116, %s132
      %p134 = scmp.eq.s32.totalorder %s19, 0
      %p135 = por %p133, %p134
      %p136 = scmp.le.s32.totalorder 1, %s13
      %p137 = scmp.lt.s32.totalorder %s13, 3
      %p138 = pnand %p136, %p137
      %p139 = pneg %p138
      // Predicated region
      $region9: #{tpu_custom_call.1} parent=5 // pred_check
        _
      $region10: #{tpu_custom_call.1} parent=5 // pred_check_branch
        %141 = sbr.rel (%p138) target = $region12
      $region11: #{tpu_custom_call.1} parent=5 // pred_region
        %s142 = ssub.s32 %s13, 1
        // Predicated region
        $region13: #{tpu_custom_call.1} parent=11 // pred_check
          %p143 = pneg %p60
        $region14: #{tpu_custom_call.1} parent=11 // pred_check_branch
          %145 = sbr.rel (%p143) target = $region16
        $region15: #{tpu_custom_call.1} parent=11 // pred_region
          _
        $region16: #{tpu_custom_call.1} parent=11 // pred_fallthru
          _
        // Predicated region
        $region17: #{tpu_custom_call.1} parent=11 // pred_check
          %p146 = pneg %p81
        $region18: #{tpu_custom_call.1} parent=11 // pred_check_branch
          %148 = sbr.rel (%p146) target = $region20
        $region19: #{tpu_custom_call.1} parent=11 // pred_region
          _
        $region20: #{tpu_custom_call.1} parent=11 // pred_fallthru
          _
        // Predicated region
        $region21: #{tpu_custom_call.1} parent=11 // pred_check
          %p149 = pneg %p102
        $region22: #{tpu_custom_call.1} parent=11 // pred_check_branch
          %151 = sbr.rel (%p149) target = $region24
        $region23: #{tpu_custom_call.1} parent=11 // pred_region
          _
        $region24: #{tpu_custom_call.1} parent=11 // pred_fallthru
          _
      $region12: #{tpu_custom_call.1} parent=5 // pred_fallthru
        _
      %p152 = scmp.lt.s32.totalorder %s13, 2
      // Predicated region
      $region25: #{tpu_custom_call.1} parent=5 // pred_check
        %p153 = pneg %p152
      $region26: #{tpu_custom_call.1} parent=5 // pred_check_branch
        %155 = sbr.rel (%p153) target = $region28
      $region27: #{tpu_custom_call.1} parent=5 // pred_region
        // Predicated region
        $region29: #{tpu_custom_call.1} parent=27 // pred_check
          %p156 = pneg %p33
        $region30: #{tpu_custom_call.1} parent=27 // pred_check_branch
          %158 = sbr.rel (%p156) target = $region32
        $region31: #{tpu_custom_call.1} parent=27 // pred_region
          %p159 = scmp.lt.s32.totalorder %s13, 1
          %s160 = scalar_select %p159, %s13, 1
          %s161 = smul.addr %s160, 32
          %s162 = smul.addr %s161, 8
          %s163 = scalar_lea.vmem %s0, %s162
        $region32: #{tpu_custom_call.1} parent=27 // pred_fallthru
          _
      $region28: #{tpu_custom_call.1} parent=5 // pred_fallthru
        _
      %p164 = scmp.le.s32.totalorder 1, %s13
      %p165 = scmp.lt.s32.totalorder %s13, 3
      %p166 = pnand %p164, %p165
      %p167 = pneg %p166
      // Predicated region
      $region33: #{tpu_custom_call.1} parent=5 // pred_check
        _
      $region34: #{tpu_custom_call.1} parent=5 // pred_check_branch
        %169 = sbr.rel (%p166) target = $region36
      $region35: #{tpu_custom_call.1} parent=5 // pred_region
        %s170 = ssub.s32 %s13, 1
        %p171 = scmp.lt.s32.totalorder %s18, 1
        %s172 = scalar_select %p171, %s18, 1
        %s173 = smul.addr %s172, 32
        %s174 = smul.addr %s173, 8
        %s175 = scalar_lea.vmem %s0, %s174
        %p176 = pneg %p39
        %p177 = pneg %p36
        %p178 = pneg %p60
        %p179 = pneg %p57
        %p180 = pneg %p81
        %p181 = pneg %p78
        %p182 = pneg %p102
        %p183 = pneg %p99
        %p184 = pneg %p128
        %p185 = pneg %p125
        %s186 = sand.u32 %s115, 1
        %s187 = scalar_lea.sflag [#allocation6], %s186
        %s188 = sand.u32 %s115, 1
        %s189 = smul.addr %s188, 64
        %s190 = scalar_lea.vmem [#allocation5], %s189
        %p191 = scmp.lt.s32.totalorder %s18, 1
        %s192 = scalar_select %p191, %s18, 1
        %s193 = smul.addr %s192, 32
        %s194 = smul.addr %s193, 8
        %s195 = scalar_lea.vmem %s0, %s194
        %v196 = vld [vmem:[%s195] sm:$0xff]
        %v197 = vld [vmem:[%s195 + $0x8] sm:$0xff]
        %v198 = vld [vmem:[%s195 + $0x10] sm:$0xff]
        %v199 = vld [vmem:[%s195 + $0x18] sm:$0xff]
        %v200 = vld [vmem:[%s195 + $0x20] sm:$0xff]
        %v201 = vld [vmem:[%s195 + $0x28] sm:$0xff]
        %v202 = vld [vmem:[%s195 + $0x30] sm:$0xff]
        %v203 = vld [vmem:[%s195 + $0x38] sm:$0xff]
        %v204 = vld [vmem:[%s195 + $0x40] sm:$0xff]
        %v205 = vld [vmem:[%s195 + $0x48] sm:$0xff]
        %v206 = vld [vmem:[%s195 + $0x50] sm:$0xff]
        %v207 = vld [vmem:[%s195 + $0x58] sm:$0xff]
        %v208 = vld [vmem:[%s195 + $0x60] sm:$0xff]
        %v209 = vld [vmem:[%s195 + $0x68] sm:$0xff]
        %v210 = vld [vmem:[%s195 + $0x70] sm:$0xff]
        %v211 = vld [vmem:[%s195 + $0x78] sm:$0xff]
        %v212 = vld [vmem:[%s195 + $0x80] sm:$0xff]
        %v213 = vld [vmem:[%s195 + $0x88] sm:$0xff]
        %v214 = vld [vmem:[%s195 + $0x90] sm:$0xff]
        %v215 = vld [vmem:[%s195 + $0x98] sm:$0xff]
        %v216 = vld [vmem:[%s195 + $0xa0] sm:$0xff]
        %v217 = vld [vmem:[%s195 + $0xa8] sm:$0xff]
        %v218 = vld [vmem:[%s195 + $0xb0] sm:$0xff]
        %v219 = vld [vmem:[%s195 + $0xb8] sm:$0xff]
        %v220 = vld [vmem:[%s195 + $0xc0] sm:$0xff]
        %v221 = vld [vmem:[%s195 + $0xc8] sm:$0xff]
        %v222 = vld [vmem:[%s195 + $0xd0] sm:$0xff]
        %v223 = vld [vmem:[%s195 + $0xd8] sm:$0xff]
        %v224 = vld [vmem:[%s195 + $0xe0] sm:$0xff]
        %v225 = vld [vmem:[%s195 + $0xe8] sm:$0xff]
        %v226 = vld [vmem:[%s195 + $0xf0] sm:$0xff]
        %v227 = vld [vmem:[%s195 + $0xf8] sm:$0xff]
        %v228 = vmax.f32 %v196, 0.0
        %v229 = vmax.f32 %v197, 0.0
        %v230 = vmax.f32 %v198, 0.0
        %v231 = vmax.f32 %v199, 0.0
        %v232 = vmax.f32 %v200, 0.0
        %v233 = vmax.f32 %v201, 0.0
        %v234 = vmax.f32 %v202, 0.0
        %v235 = vmax.f32 %v203, 0.0
        %v236 = vmax.f32 %v204, 0.0
        %v237 = vmax.f32 %v205, 0.0
        %v238 = vmax.f32 %v206, 0.0
        %v239 = vmax.f32 %v207, 0.0
        %v240 = vmax.f32 %v208, 0.0
        %v241 = vmax.f32 %v209, 0.0
        %v242 = vmax.f32 %v210, 0.0
        %v243 = vmax.f32 %v211, 0.0
        %v244 = vmax.f32 %v212, 0.0
        %v245 = vmax.f32 %v213, 0.0
        %v246 = vmax.f32 %v214, 0.0
        %v247 = vmax.f32 %v215, 0.0
        %v248 = vmax.f32 %v216, 0.0
        %v249 = vmax.f32 %v217, 0.0
        %v250 = vmax.f32 %v218, 0.0
        %v251 = vmax.f32 %v219, 0.0
        %v252 = vmax.f32 %v220, 0.0
        %v253 = vmax.f32 %v221, 0.0
        %v254 = vmax.f32 %v222, 0.0
        %v255 = vmax.f32 %v223, 0.0
        %v256 = vmax.f32 %v224, 0.0
        %v257 = vmax.f32 %v225, 0.0
        %v258 = vmax.f32 %v226, 0.0
        %v259 = vmax.f32 %v227, 0.0
        %vm260 = vcmask 31744
        %261 = vst.msk [vmem:[#allocation2] sm:$0xff] %vm260, 0.0
        %262 = vst.msk [vmem:[#allocation2 + $0x8] sm:$0xff] %vm260, 0.0
        %vm263 = vcmask 25600
        %264 = vst.msk [vmem:[#allocation2 + $0x10] sm:$0x3] %vm263, 0.0
        %s265 = scalar_lea.vmem [#allocation2], 408
        %266 = vst.msk [vmem:[%s265] sm:$0xff] %vm260, 0.0
        %267 = vst.msk [vmem:[%s265 + $0x8] sm:$0xff] %vm260, 0.0
        %268 = vst.msk [vmem:[%s265 + $0x10] sm:$0x3] %vm263, 0.0
        %s269 = scalar_lea.vmem [#allocation2], 24
        %vm270 = vcmask 24576
        %271 = vst.msk [vmem:[%s269] sm:$0x1] %vm270, 0.0
        %272 = vst.msk [vmem:[%s269 + $0x18] sm:$0x1] %vm270, 0.0
        %273 = vst.msk [vmem:[%s269 + $0x30] sm:$0x1] %vm270, 0.0
        %274 = vst.msk [vmem:[%s269 + $0x48] sm:$0x1] %vm270, 0.0
        %275 = vst.msk [vmem:[%s269 + $0x60] sm:$0x1] %vm270, 0.0
        %276 = vst.msk [vmem:[%s269 + $0x78] sm:$0x1] %vm270, 0.0
        %277 = vst.msk [vmem:[%s269 + $0x90] sm:$0x1] %vm270, 0.0
        %278 = vst.msk [vmem:[%s269 + $0xa8] sm:$0x1] %vm270, 0.0
        %279 = vst.msk [vmem:[%s269 + $0xc0] sm:$0x1] %vm270, 0.0
        %280 = vst.msk [vmem:[%s269 + $0xd8] sm:$0x1] %vm270, 0.0
        %281 = vst.msk [vmem:[%s269 + $0xf0] sm:$0x1] %vm270, 0.0
        %282 = vst.msk [vmem:[%s269 + $0x108] sm:$0x1] %vm270, 0.0
        %283 = vst.msk [vmem:[%s269 + $0x120] sm:$0x1] %vm270, 0.0
        %284 = vst.msk [vmem:[%s269 + $0x138] sm:$0x1] %vm270, 0.0
        %285 = vst.msk [vmem:[%s269 + $0x150] sm:$0x1] %vm270, 0.0
        %286 = vst.msk [vmem:[%s269 + $0x168] sm:$0x1] %vm270, 0.0
        %287 = vst.msk [vmem:[%s269 + $0x11] sm:$0x1] %vm270, 0.0
        %288 = vst.msk [vmem:[%s269 + $0x29] sm:$0x1] %vm270, 0.0
        %289 = vst.msk [vmem:[%s269 + $0x41] sm:$0x1] %vm270, 0.0
        %290 = vst.msk [vmem:[%s269 + $0x59] sm:$0x1] %vm270, 0.0
        %291 = vst.msk [vmem:[%s269 + $0x71] sm:$0x1] %vm270, 0.0
        %292 = vst.msk [vmem:[%s269 + $0x89] sm:$0x1] %vm270, 0.0
        %293 = vst.msk [vmem:[%s269 + $0xa1] sm:$0x1] %vm270, 0.0
        %294 = vst.msk [vmem:[%s269 + $0xb9] sm:$0x1] %vm270, 0.0
        %295 = vst.msk [vmem:[%s269 + $0xd1] sm:$0x1] %vm270, 0.0
        %296 = vst.msk [vmem:[%s269 + $0xe9] sm:$0x1] %vm270, 0.0
        %297 = vst.msk [vmem:[%s269 + $0x101] sm:$0x1] %vm270, 0.0
        %298 = vst.msk [vmem:[%s269 + $0x119] sm:$0x1] %vm270, 0.0
        %299 = vst.msk [vmem:[%s269 + $0x131] sm:$0x1] %vm270, 0.0
        %300 = vst.msk [vmem:[%s269 + $0x149] sm:$0x1] %vm270, 0.0
        %301 = vst.msk [vmem:[%s269 + $0x161] sm:$0x1] %vm270, 0.0
        %302 = vst.msk [vmem:[%s269 + $0x179] sm:$0x1] %vm270, 0.0
        %303 = vst.msk [vmem:[%s269 + $0x1] sm:$0xff] %vm260, %v228
        %304 = vst.msk [vmem:[%s269 + $0x9] sm:$0xff] %vm260, %v229
        %305 = vst.msk [vmem:[%s269 + $0x19] sm:$0xff] %vm260, %v230
        %306 = vst.msk [vmem:[%s269 + $0x21] sm:$0xff] %vm260, %v231
        %307 = vst.msk [vmem:[%s269 + $0x31] sm:$0xff] %vm260, %v232
        %308 = vst.msk [vmem:[%s269 + $0x39] sm:$0xff] %vm260, %v233
        %309 = vst.msk [vmem:[%s269 + $0x49] sm:$0xff] %vm260, %v234
        %310 = vst.msk [vmem:[%s269 + $0x51] sm:$0xff] %vm260, %v235
        %311 = vst.msk [vmem:[%s269 + $0x61] sm:$0xff] %vm260, %v236
        %312 = vst.msk [vmem:[%s269 + $0x69] sm:$0xff] %vm260, %v237
        %313 = vst.msk [vmem:[%s269 + $0x79] sm:$0xff] %vm260, %v238
        %314 = vst.msk [vmem:[%s269 + $0x81] sm:$0xff] %vm260, %v239
        %315 = vst.msk [vmem:[%s269 + $0x91] sm:$0xff] %vm260, %v240
        %316 = vst.msk [vmem:[%s269 + $0x99] sm:$0xff] %vm260, %v241
        %317 = vst.msk [vmem:[%s269 + $0xa9] sm:$0xff] %vm260, %v242
        %318 = vst.msk [vmem:[%s269 + $0xb1] sm:$0xff] %vm260, %v243
        %319 = vst.msk [vmem:[%s269 + $0xc1] sm:$0xff] %vm260, %v244
        %320 = vst.msk [vmem:[%s269 + $0xc9] sm:$0xff] %vm260, %v245
        %321 = vst.msk [vmem:[%s269 + $0xd9] sm:$0xff] %vm260, %v246
        %322 = vst.msk [vmem:[%s269 + $0xe1] sm:$0xff] %vm260, %v247
        %323 = vst.msk [vmem:[%s269 + $0xf1] sm:$0xff] %vm260, %v248
        %324 = vst.msk [vmem:[%s269 + $0xf9] sm:$0xff] %vm260, %v249
        %325 = vst.msk [vmem:[%s269 + $0x109] sm:$0xff] %vm260, %v250
        %326 = vst.msk [vmem:[%s269 + $0x111] sm:$0xff] %vm260, %v251
        %327 = vst.msk [vmem:[%s269 + $0x121] sm:$0xff] %vm260, %v252
        %328 = vst.msk [vmem:[%s269 + $0x129] sm:$0xff] %vm260, %v253
        %329 = vst.msk [vmem:[%s269 + $0x139] sm:$0xff] %vm260, %v254
        %330 = vst.msk [vmem:[%s269 + $0x141] sm:$0xff] %vm260, %v255
        %331 = vst.msk [vmem:[%s269 + $0x151] sm:$0xff] %vm260, %v256
        %332 = vst.msk [vmem:[%s269 + $0x159] sm:$0xff] %vm260, %v257
        %333 = vst.msk [vmem:[%s269 + $0x169] sm:$0xff] %vm260, %v258
        %334 = vst.msk [vmem:[%s269 + $0x171] sm:$0xff] %vm260, %v259
        %v335 = vld [vmem:[#allocation2] sm:$0xff]
        %v336 = vld [vmem:[#allocation2 + $0x8] sm:$0xff]
        %v337 = vld [vmem:[#allocation2 + $0x18] sm:$0xff]
        %v338 = vld [vmem:[#allocation2 + $0x20] sm:$0xff]
        %v339 = vld [vmem:[#allocation2 + $0x30] sm:$0xff]
        %v340 = vld [vmem:[#allocation2 + $0x38] sm:$0xff]
        %v341 = vld [vmem:[#allocation2 + $0x48] sm:$0xff]
        %v342 = vld [vmem:[#allocation2 + $0x50] sm:$0xff]
        %v343 = vld [vmem:[#allocation2 + $0x60] sm:$0xff]
        %v344 = vld [vmem:[#allocation2 + $0x68] sm:$0xff]
        %v345 = vld [vmem:[#allocation2 + $0x78] sm:$0xff]
        %v346 = vld [vmem:[#allocation2 + $0x80] sm:$0xff]
        %v347 = vld [vmem:[#allocation2 + $0x90] sm:$0xff]
        %v348 = vld [vmem:[#allocation2 + $0x98] sm:$0xff]
        %v349 = vld [vmem:[#allocation2 + $0xa8] sm:$0xff]
        %v350 = vld [vmem:[#allocation2 + $0xb0] sm:$0xff]
        %v351 = vld [vmem:[#allocation2 + $0xc0] sm:$0xff]
        %v352 = vld [vmem:[#allocation2 + $0xc8] sm:$0xff]
        %v353 = vld [vmem:[#allocation2 + $0xd8] sm:$0xff]
        %v354 = vld [vmem:[#allocation2 + $0xe0] sm:$0xff]
        %v355 = vld [vmem:[#allocation2 + $0xf0] sm:$0xff]
        %v356 = vld [vmem:[#allocation2 + $0xf8] sm:$0xff]
        %v357 = vld [vmem:[#allocation2 + $0x108] sm:$0xff]
        %v358 = vld [vmem:[#allocation2 + $0x110] sm:$0xff]
        %v359 = vld [vmem:[#allocation2 + $0x120] sm:$0xff]
        %v360 = vld [vmem:[#allocation2 + $0x128] sm:$0xff]
        %v361 = vld [vmem:[#allocation2 + $0x138] sm:$0xff]
        %v362 = vld [vmem:[#allocation2 + $0x140] sm:$0xff]
        %v363 = vld [vmem:[#allocation2 + $0x150] sm:$0xff]
        %v364 = vld [vmem:[#allocation2 + $0x158] sm:$0xff]
        %v365 = vld [vmem:[#allocation2 + $0x168] sm:$0xff]
        %v366 = vld [vmem:[#allocation2 + $0x170] sm:$0xff]
        %v367 = vld [vmem:[#allocation2 + $0x1] sm:$0xff]
        %v368 = vld [vmem:[#allocation2 + $0x9] sm:$0xff]
        %v369 = vld [vmem:[#allocation2 + $0x19] sm:$0xff]
        %v370 = vld [vmem:[#allocation2 + $0x21] sm:$0xff]
        %v371 = vld [vmem:[#allocation2 + $0x31] sm:$0xff]
        %v372 = vld [vmem:[#allocation2 + $0x39] sm:$0xff]
        %v373 = vld [vmem:[#allocation2 + $0x49] sm:$0xff]
        %v374 = vld [vmem:[#allocation2 + $0x51] sm:$0xff]
        %v375 = vld [vmem:[#allocation2 + $0x61] sm:$0xff]
        %v376 = vld [vmem:[#allocation2 + $0x69] sm:$0xff]
        %v377 = vld [vmem:[#allocation2 + $0x79] sm:$0xff]
        %v378 = vld [vmem:[#allocation2 + $0x81] sm:$0xff]
        %v379 = vld [vmem:[#allocation2 + $0x91] sm:$0xff]
        %v380 = vld [vmem:[#allocation2 + $0x99] sm:$0xff]
        %v381 = vld [vmem:[#allocation2 + $0xa9] sm:$0xff]
        %v382 = vld [vmem:[#allocation2 + $0xb1] sm:$0xff]
        %v383 = vld [vmem:[#allocation2 + $0xc1] sm:$0xff]
        %v384 = vld [vmem:[#allocation2 + $0xc9] sm:$0xff]
        %v385 = vld [vmem:[#allocation2 + $0xd9] sm:$0xff]
        %v386 = vld [vmem:[#allocation2 + $0xe1] sm:$0xff]
        %v387 = vld [vmem:[#allocation2 + $0xf1] sm:$0xff]
        %v388 = vld [vmem:[#allocation2 + $0xf9] sm:$0xff]
        %v389 = vld [vmem:[#allocation2 + $0x109] sm:$0xff]
        %v390 = vld [vmem:[#allocation2 + $0x111] sm:$0xff]
        %v391 = vld [vmem:[#allocation2 + $0x121] sm:$0xff]
        %v392 = vld [vmem:[#allocation2 + $0x129] sm:$0xff]
        %v393 = vld [vmem:[#allocation2 + $0x139] sm:$0xff]
        %v394 = vld [vmem:[#allocation2 + $0x141] sm:$0xff]
        %v395 = vld [vmem:[#allocation2 + $0x151] sm:$0xff]
        %v396 = vld [vmem:[#allocation2 + $0x159] sm:$0xff]
        %v397 = vld [vmem:[#allocation2 + $0x169] sm:$0xff]
        %v398 = vld [vmem:[#allocation2 + $0x171] sm:$0xff]
        %v399 = vld [vmem:[#allocation2 + $0x2] sm:$0xff]
        %v400 = vld [vmem:[#allocation2 + $0xa] sm:$0xff]
        %v401 = vld [vmem:[#allocation2 + $0x1a] sm:$0xff]
        %v402 = vld [vmem:[#allocation2 + $0x22] sm:$0xff]
        %v403 = vld [vmem:[#allocation2 + $0x32] sm:$0xff]
        %v404 = vld [vmem:[#allocation2 + $0x3a] sm:$0xff]
        %v405 = vld [vmem:[#allocation2 + $0x4a] sm:$0xff]
        %v406 = vld [vmem:[#allocation2 + $0x52] sm:$0xff]
        %v407 = vld [vmem:[#allocation2 + $0x62] sm:$0xff]
        %v408 = vld [vmem:[#allocation2 + $0x6a] sm:$0xff]
        %v409 = vld [vmem:[#allocation2 + $0x7a] sm:$0xff]
        %v410 = vld [vmem:[#allocation2 + $0x82] sm:$0xff]
        %v411 = vld [vmem:[#allocation2 + $0x92] sm:$0xff]
        %v412 = vld [vmem:[#allocation2 + $0x9a] sm:$0xff]
        %v413 = vld [vmem:[#allocation2 + $0xaa] sm:$0xff]
        %v414 = vld [vmem:[#allocation2 + $0xb2] sm:$0xff]
        %v415 = vld [vmem:[#allocation2 + $0xc2] sm:$0xff]
        %v416 = vld [vmem:[#allocation2 + $0xca] sm:$0xff]
        %v417 = vld [vmem:[#allocation2 + $0xda] sm:$0xff]
        %v418 = vld [vmem:[#allocation2 + $0xe2] sm:$0xff]
        %v419 = vld [vmem:[#allocation2 + $0xf2] sm:$0xff]
        %v420 = vld [vmem:[#allocation2 + $0xfa] sm:$0xff]
        %v421 = vld [vmem:[#allocation2 + $0x10a] sm:$0xff]
        %v422 = vld [vmem:[#allocation2 + $0x112] sm:$0xff]
        %v423 = vld [vmem:[#allocation2 + $0x122] sm:$0xff]
        %v424 = vld [vmem:[#allocation2 + $0x12a] sm:$0xff]
        %v425 = vld [vmem:[#allocation2 + $0x13a] sm:$0xff]
        %v426 = vld [vmem:[#allocation2 + $0x142] sm:$0xff]
        %v427 = vld [vmem:[#allocation2 + $0x152] sm:$0xff]
        %v428 = vld [vmem:[#allocation2 + $0x15a] sm:$0xff]
        %v429 = vld [vmem:[#allocation2 + $0x16a] sm:$0xff]
        %v430 = vld [vmem:[#allocation2 + $0x172] sm:$0xff]
        %v431 = vld [vmem:[%s269] sm:$0xff]
        %v432 = vld [vmem:[%s269 + $0x8] sm:$0xff]
        %v433 = vld [vmem:[%s269 + $0x18] sm:$0xff]
        %v434 = vld [vmem:[%s269 + $0x20] sm:$0xff]
        %v435 = vld [vmem:[%s269 + $0x30] sm:$0xff]
        %v436 = vld [vmem:[%s269 + $0x38] sm:$0xff]
        %v437 = vld [vmem:[%s269 + $0x48] sm:$0xff]
        %v438 = vld [vmem:[%s269 + $0x50] sm:$0xff]
        %v439 = vld [vmem:[%s269 + $0x60] sm:$0xff]
        %v440 = vld [vmem:[%s269 + $0x68] sm:$0xff]
        %v441 = vld [vmem:[%s269 + $0x78] sm:$0xff]
        %v442 = vld [vmem:[%s269 + $0x80] sm:$0xff]
        %v443 = vld [vmem:[%s269 + $0x90] sm:$0xff]
        %v444 = vld [vmem:[%s269 + $0x98] sm:$0xff]
        %v445 = vld [vmem:[%s269 + $0xa8] sm:$0xff]
        %v446 = vld [vmem:[%s269 + $0xb0] sm:$0xff]
        %v447 = vld [vmem:[%s269 + $0xc0] sm:$0xff]
        %v448 = vld [vmem:[%s269 + $0xc8] sm:$0xff]
        %v449 = vld [vmem:[%s269 + $0xd8] sm:$0xff]
        %v450 = vld [vmem:[%s269 + $0xe0] sm:$0xff]
        %v451 = vld [vmem:[%s269 + $0xf0] sm:$0xff]
        %v452 = vld [vmem:[%s269 + $0xf8] sm:$0xff]
        %v453 = vld [vmem:[%s269 + $0x108] sm:$0xff]
        %v454 = vld [vmem:[%s269 + $0x110] sm:$0xff]
        %v455 = vld [vmem:[%s269 + $0x120] sm:$0xff]
        %v456 = vld [vmem:[%s269 + $0x128] sm:$0xff]
        %v457 = vld [vmem:[%s269 + $0x138] sm:$0xff]
        %v458 = vld [vmem:[%s269 + $0x140] sm:$0xff]
        %v459 = vld [vmem:[%s269 + $0x150] sm:$0xff]
        %v460 = vld [vmem:[%s269 + $0x158] sm:$0xff]
        %v461 = vld [vmem:[%s269 + $0x168] sm:$0xff]
        %v462 = vld [vmem:[%s269 + $0x170] sm:$0xff]
        %v463 = vld [vmem:[%s269 + $0x1] sm:$0xff]
        %v464 = vld [vmem:[%s269 + $0x9] sm:$0xff]
        %v465 = vld [vmem:[%s269 + $0x19] sm:$0xff]
        %v466 = vld [vmem:[%s269 + $0x21] sm:$0xff]
        %v467 = vld [vmem:[%s269 + $0x31] sm:$0xff]
        %v468 = vld [vmem:[%s269 + $0x39] sm:$0xff]
        %v469 = vld [vmem:[%s269 + $0x49] sm:$0xff]
        %v470 = vld [vmem:[%s269 + $0x51] sm:$0xff]
        %v471 = vld [vmem:[%s269 + $0x61] sm:$0xff]
        %v472 = vld [vmem:[%s269 + $0x69] sm:$0xff]
        %v473 = vld [vmem:[%s269 + $0x79] sm:$0xff]
        %v474 = vld [vmem:[%s269 + $0x81] sm:$0xff]
        %v475 = vld [vmem:[%s269 + $0x91] sm:$0xff]
        %v476 = vld [vmem:[%s269 + $0x99] sm:$0xff]
        %v477 = vld [vmem:[%s269 + $0xa9] sm:$0xff]
        %v478 = vld [vmem:[%s269 + $0xb1] sm:$0xff]
        %v479 = vld [vmem:[%s269 + $0xc1] sm:$0xff]
        %v480 = vld [vmem:[%s269 + $0xc9] sm:$0xff]
        %v481 = vld [vmem:[%s269 + $0xd9] sm:$0xff]
        %v482 = vld [vmem:[%s269 + $0xe1] sm:$0xff]
        %v483 = vld [vmem:[%s269 + $0xf1] sm:$0xff]
        %v484 = vld [vmem:[%s269 + $0xf9] sm:$0xff]
        %v485 = vld [vmem:[%s269 + $0x109] sm:$0xff]
        %v486 = vld [vmem:[%s269 + $0x111] sm:$0xff]
        %v487 = vld [vmem:[%s269 + $0x121] sm:$0xff]
        %v488 = vld [vmem:[%s269 + $0x129] sm:$0xff]
        %v489 = vld [vmem:[%s269 + $0x139] sm:$0xff]
        %v490 = vld [vmem:[%s269 + $0x141] sm:$0xff]
        %v491 = vld [vmem:[%s269 + $0x151] sm:$0xff]
        %v492 = vld [vmem:[%s269 + $0x159] sm:$0xff]
        %v493 = vld [vmem:[%s269 + $0x169] sm:$0xff]
        %v494 = vld [vmem:[%s269 + $0x171] sm:$0xff]
        %v495 = vld [vmem:[%s269 + $0x2] sm:$0xff]
        %v496 = vld [vmem:[%s269 + $0xa] sm:$0xff]
        %v497 = vld [vmem:[%s269 + $0x1a] sm:$0xff]
        %v498 = vld [vmem:[%s269 + $0x22] sm:$0xff]
        %v499 = vld [vmem:[%s269 + $0x32] sm:$0xff]
        %v500 = vld [vmem:[%s269 + $0x3a] sm:$0xff]
        %v501 = vld [vmem:[%s269 + $0x4a] sm:$0xff]
        %v502 = vld [vmem:[%s269 + $0x52] sm:$0xff]
        %v503 = vld [vmem:[%s269 + $0x62] sm:$0xff]
        %v504 = vld [vmem:[%s269 + $0x6a] sm:$0xff]
        %v505 = vld [vmem:[%s269 + $0x7a] sm:$0xff]
        %v506 = vld [vmem:[%s269 + $0x82] sm:$0xff]
        %v507 = vld [vmem:[%s269 + $0x92] sm:$0xff]
        %v508 = vld [vmem:[%s269 + $0x9a] sm:$0xff]
        %v509 = vld [vmem:[%s269 + $0xaa] sm:$0xff]
        %v510 = vld [vmem:[%s269 + $0xb2] sm:$0xff]
        %v511 = vld [vmem:[%s269 + $0xc2] sm:$0xff]
        %v512 = vld [vmem:[%s269 + $0xca] sm:$0xff]
        %v513 = vld [vmem:[%s269 + $0xda] sm:$0xff]
        %v514 = vld [vmem:[%s269 + $0xe2] sm:$0xff]
        %v515 = vld [vmem:[%s269 + $0xf2] sm:$0xff]
        %v516 = vld [vmem:[%s269 + $0xfa] sm:$0xff]
        %v517 = vld [vmem:[%s269 + $0x10a] sm:$0xff]
        %v518 = vld [vmem:[%s269 + $0x112] sm:$0xff]
        %v519 = vld [vmem:[%s269 + $0x122] sm:$0xff]
        %v520 = vld [vmem:[%s269 + $0x12a] sm:$0xff]
        %v521 = vld [vmem:[%s269 + $0x13a] sm:$0xff]
        %v522 = vld [vmem:[%s269 + $0x142] sm:$0xff]
        %v523 = vld [vmem:[%s269 + $0x152] sm:$0xff]
        %v524 = vld [vmem:[%s269 + $0x15a] sm:$0xff]
        %v525 = vld [vmem:[%s269 + $0x16a] sm:$0xff]
        %v526 = vld [vmem:[%s269 + $0x172] sm:$0xff]
        %s527 = scalar_lea.vmem [#allocation2], 48
        %v528 = vld [vmem:[%s527] sm:$0xff]
        %v529 = vld [vmem:[%s527 + $0x8] sm:$0xff]
        %v530 = vld [vmem:[%s527 + $0x18] sm:$0xff]
        %v531 = vld [vmem:[%s527 + $0x20] sm:$0xff]
        %v532 = vld [vmem:[%s527 + $0x30] sm:$0xff]
        %v533 = vld [vmem:[%s527 + $0x38] sm:$0xff]
        %v534 = vld [vmem:[%s527 + $0x48] sm:$0xff]
        %v535 = vld [vmem:[%s527 + $0x50] sm:$0xff]
        %v536 = vld [vmem:[%s527 + $0x60] sm:$0xff]
        %v537 = vld [vmem:[%s527 + $0x68] sm:$0xff]
        %v538 = vld [vmem:[%s527 + $0x78] sm:$0xff]
        %v539 = vld [vmem:[%s527 + $0x80] sm:$0xff]
        %v540 = vld [vmem:[%s527 + $0x90] sm:$0xff]
        %v541 = vld [vmem:[%s527 + $0x98] sm:$0xff]
        %v542 = vld [vmem:[%s527 + $0xa8] sm:$0xff]
        %v543 = vld [vmem:[%s527 + $0xb0] sm:$0xff]
        %v544 = vld [vmem:[%s527 + $0xc0] sm:$0xff]
        %v545 = vld [vmem:[%s527 + $0xc8] sm:$0xff]
        %v546 = vld [vmem:[%s527 + $0xd8] sm:$0xff]
        %v547 = vld [vmem:[%s527 + $0xe0] sm:$0xff]
        %v548 = vld [vmem:[%s527 + $0xf0] sm:$0xff]
        %v549 = vld [vmem:[%s527 + $0xf8] sm:$0xff]
        %v550 = vld [vmem:[%s527 + $0x108] sm:$0xff]
        %v551 = vld [vmem:[%s527 + $0x110] sm:$0xff]
        %v552 = vld [vmem:[%s527 + $0x120] sm:$0xff]
        %v553 = vld [vmem:[%s527 + $0x128] sm:$0xff]
        %v554 = vld [vmem:[%s527 + $0x138] sm:$0xff]
        %v555 = vld [vmem:[%s527 + $0x140] sm:$0xff]
        %v556 = vld [vmem:[%s527 + $0x150] sm:$0xff]
        %v557 = vld [vmem:[%s527 + $0x158] sm:$0xff]
        %v558 = vld [vmem:[%s527 + $0x168] sm:$0xff]
        %v559 = vld [vmem:[%s527 + $0x170] sm:$0xff]
        %v560 = vld [vmem:[%s527 + $0x1] sm:$0xff]
        %v561 = vld [vmem:[%s527 + $0x9] sm:$0xff]
        %v562 = vld [vmem:[%s527 + $0x19] sm:$0xff]
        %v563 = vld [vmem:[%s527 + $0x21] sm:$0xff]
        %v564 = vld [vmem:[%s527 + $0x31] sm:$0xff]
        %v565 = vld [vmem:[%s527 + $0x39] sm:$0xff]
        %v566 = vld [vmem:[%s527 + $0x49] sm:$0xff]
        %v567 = vld [vmem:[%s527 + $0x51] sm:$0xff]
        %v568 = vld [vmem:[%s527 + $0x61] sm:$0xff]
        %v569 = vld [vmem:[%s527 + $0x69] sm:$0xff]
        %v570 = vld [vmem:[%s527 + $0x79] sm:$0xff]
        %v571 = vld [vmem:[%s527 + $0x81] sm:$0xff]
        %v572 = vld [vmem:[%s527 + $0x91] sm:$0xff]
        %v573 = vld [vmem:[%s527 + $0x99] sm:$0xff]
        %v574 = vld [vmem:[%s527 + $0xa9] sm:$0xff]
        %v575 = vld [vmem:[%s527 + $0xb1] sm:$0xff]
        %v576 = vld [vmem:[%s527 + $0xc1] sm:$0xff]
        %v577 = vld [vmem:[%s527 + $0xc9] sm:$0xff]
        %v578 = vld [vmem:[%s527 + $0xd9] sm:$0xff]
        %v579 = vld [vmem:[%s527 + $0xe1] sm:$0xff]
        %v580 = vld [vmem:[%s527 + $0xf1] sm:$0xff]
        %v581 = vld [vmem:[%s527 + $0xf9] sm:$0xff]
        %v582 = vld [vmem:[%s527 + $0x109] sm:$0xff]
        %v583 = vld [vmem:[%s527 + $0x111] sm:$0xff]
        %v584 = vld [vmem:[%s527 + $0x121] sm:$0xff]
        %v585 = vld [vmem:[%s527 + $0x129] sm:$0xff]
        %v586 = vld [vmem:[%s527 + $0x139] sm:$0xff]
        %v587 = vld [vmem:[%s527 + $0x141] sm:$0xff]
        %v588 = vld [vmem:[%s527 + $0x151] sm:$0xff]
        %v589 = vld [vmem:[%s527 + $0x159] sm:$0xff]
        %v590 = vld [vmem:[%s527 + $0x169] sm:$0xff]
        %v591 = vld [vmem:[%s527 + $0x171] sm:$0xff]
        %v592 = vld [vmem:[%s527 + $0x2] sm:$0xff]
        %v593 = vld [vmem:[%s527 + $0xa] sm:$0xff]
        %v594 = vld [vmem:[%s527 + $0x1a] sm:$0xff]
        %v595 = vld [vmem:[%s527 + $0x22] sm:$0xff]
        %v596 = vld [vmem:[%s527 + $0x32] sm:$0xff]
        %v597 = vld [vmem:[%s527 + $0x3a] sm:$0xff]
        %v598 = vld [vmem:[%s527 + $0x4a] sm:$0xff]
        %v599 = vld [vmem:[%s527 + $0x52] sm:$0xff]
        %v600 = vld [vmem:[%s527 + $0x62] sm:$0xff]
        %v601 = vld [vmem:[%s527 + $0x6a] sm:$0xff]
        %v602 = vld [vmem:[%s527 + $0x7a] sm:$0xff]
        %v603 = vld [vmem:[%s527 + $0x82] sm:$0xff]
        %v604 = vld [vmem:[%s527 + $0x92] sm:$0xff]
        %v605 = vld [vmem:[%s527 + $0x9a] sm:$0xff]
        %v606 = vld [vmem:[%s527 + $0xaa] sm:$0xff]
        %v607 = vld [vmem:[%s527 + $0xb2] sm:$0xff]
        %v608 = vld [vmem:[%s527 + $0xc2] sm:$0xff]
        %v609 = vld [vmem:[%s527 + $0xca] sm:$0xff]
        %v610 = vld [vmem:[%s527 + $0xda] sm:$0xff]
        %v611 = vld [vmem:[%s527 + $0xe2] sm:$0xff]
        %v612 = vld [vmem:[%s527 + $0xf2] sm:$0xff]
        %v613 = vld [vmem:[%s527 + $0xfa] sm:$0xff]
        %v614 = vld [vmem:[%s527 + $0x10a] sm:$0xff]
        %v615 = vld [vmem:[%s527 + $0x112] sm:$0xff]
        %v616 = vld [vmem:[%s527 + $0x122] sm:$0xff]
        %v617 = vld [vmem:[%s527 + $0x12a] sm:$0xff]
        %v618 = vld [vmem:[%s527 + $0x13a] sm:$0xff]
        %v619 = vld [vmem:[%s527 + $0x142] sm:$0xff]
        %v620 = vld [vmem:[%s527 + $0x152] sm:$0xff]
        %v621 = vld [vmem:[%s527 + $0x15a] sm:$0xff]
        %v622 = vld [vmem:[%s527 + $0x16a] sm:$0xff]
        %v623 = vld [vmem:[%s527 + $0x172] sm:$0xff]
        %656 = vrot.lane.b32.xlu0 %v367, 4
        %v657 = vpop.permute.xlu0 %656
        %658 = vrot.lane.b32.xlu0 %v368, 4
        %v659 = vpop.permute.xlu0 %658
        %660 = vrot.lane.b32.xlu0 %v369, 4
        %v661 = vpop.permute.xlu0 %660
        %662 = vrot.lane.b32.xlu0 %v370, 4
        %v663 = vpop.permute.xlu0 %662
        %664 = vrot.lane.b32.xlu0 %v371, 4
        %v665 = vpop.permute.xlu0 %664
        %666 = vrot.lane.b32.xlu0 %v372, 4
        %v667 = vpop.permute.xlu0 %666
        %668 = vrot.lane.b32.xlu0 %v373, 4
        %v669 = vpop.permute.xlu0 %668
        %670 = vrot.lane.b32.xlu0 %v374, 4
        %v671 = vpop.permute.xlu0 %670
        %672 = vrot.lane.b32.xlu0 %v375, 4
        %v673 = vpop.permute.xlu0 %672
        %674 = vrot.lane.b32.xlu0 %v376, 4
        %v675 = vpop.permute.xlu0 %674
        %676 = vrot.lane.b32.xlu0 %v377, 4
        %v677 = vpop.permute.xlu0 %676
        %678 = vrot.lane.b32.xlu0 %v378, 4
        %v679 = vpop.permute.xlu0 %678
        %680 = vrot.lane.b32.xlu0 %v379, 4
        %v681 = vpop.permute.xlu0 %680
        %682 = vrot.lane.b32.xlu0 %v380, 4
        %v683 = vpop.permute.xlu0 %682
        %684 = vrot.lane.b32.xlu0 %v381, 4
        %v685 = vpop.permute.xlu0 %684
        %686 = vrot.lane.b32.xlu0 %v382, 4
        %v687 = vpop.permute.xlu0 %686
        %688 = vrot.lane.b32.xlu0 %v383, 4
        %v689 = vpop.permute.xlu0 %688
        %690 = vrot.lane.b32.xlu0 %v384, 4
        %v691 = vpop.permute.xlu0 %690
        %692 = vrot.lane.b32.xlu0 %v385, 4
        %v693 = vpop.permute.xlu0 %692
        %694 = vrot.lane.b32.xlu0 %v386, 4
        %v695 = vpop.permute.xlu0 %694
        %696 = vrot.lane.b32.xlu0 %v387, 4
        %v697 = vpop.permute.xlu0 %696
        %698 = vrot.lane.b32.xlu0 %v388, 4
        %v699 = vpop.permute.xlu0 %698
        %700 = vrot.lane.b32.xlu0 %v389, 4
        %v701 = vpop.permute.xlu0 %700
        %702 = vrot.lane.b32.xlu0 %v390, 4
        %v703 = vpop.permute.xlu0 %702
        %704 = vrot.lane.b32.xlu0 %v391, 4
        %v705 = vpop.permute.xlu0 %704
        %706 = vrot.lane.b32.xlu0 %v392, 4
        %v707 = vpop.permute.xlu0 %706
        %708 = vrot.lane.b32.xlu0 %v393, 4
        %v709 = vpop.permute.xlu0 %708
        %710 = vrot.lane.b32.xlu0 %v394, 4
        %v711 = vpop.permute.xlu0 %710
        %712 = vrot.lane.b32.xlu0 %v395, 4
        %v713 = vpop.permute.xlu0 %712
        %714 = vrot.lane.b32.xlu0 %v396, 4
        %v715 = vpop.permute.xlu0 %714
        %716 = vrot.lane.b32.xlu0 %v397, 4
        %v717 = vpop.permute.xlu0 %716
        %718 = vrot.lane.b32.xlu0 %v398, 4
        %v719 = vpop.permute.xlu0 %718
        %784 = vrot.lane.b32.xlu0 %v399, 8
        %v785 = vpop.permute.xlu0 %784
        %786 = vrot.lane.b32.xlu0 %v400, 8
        %v787 = vpop.permute.xlu0 %786
        %788 = vrot.lane.b32.xlu0 %v401, 8
        %v789 = vpop.permute.xlu0 %788
        %790 = vrot.lane.b32.xlu0 %v402, 8
        %v791 = vpop.permute.xlu0 %790
        %792 = vrot.lane.b32.xlu0 %v403, 8
        %v793 = vpop.permute.xlu0 %792
        %794 = vrot.lane.b32.xlu0 %v404, 8
        %v795 = vpop.permute.xlu0 %794
        %796 = vrot.lane.b32.xlu0 %v405, 8
        %v797 = vpop.permute.xlu0 %796
        %798 = vrot.lane.b32.xlu0 %v406, 8
        %v799 = vpop.permute.xlu0 %798
        %800 = vrot.lane.b32.xlu0 %v407, 8
        %v801 = vpop.permute.xlu0 %800
        %802 = vrot.lane.b32.xlu0 %v408, 8
        %v803 = vpop.permute.xlu0 %802
        %804 = vrot.lane.b32.xlu0 %v409, 8
        %v805 = vpop.permute.xlu0 %804
        %806 = vrot.lane.b32.xlu0 %v410, 8
        %v807 = vpop.permute.xlu0 %806
        %808 = vrot.lane.b32.xlu0 %v411, 8
        %v809 = vpop.permute.xlu0 %808
        %810 = vrot.lane.b32.xlu0 %v412, 8
        %v811 = vpop.permute.xlu0 %810
        %812 = vrot.lane.b32.xlu0 %v413, 8
        %v813 = vpop.permute.xlu0 %812
        %814 = vrot.lane.b32.xlu0 %v414, 8
        %v815 = vpop.permute.xlu0 %814
        %816 = vrot.lane.b32.xlu0 %v415, 8
        %v817 = vpop.permute.xlu0 %816
        %818 = vrot.lane.b32.xlu0 %v416, 8
        %v819 = vpop.permute.xlu0 %818
        %820 = vrot.lane.b32.xlu0 %v417, 8
        %v821 = vpop.permute.xlu0 %820
        %822 = vrot.lane.b32.xlu0 %v418, 8
        %v823 = vpop.permute.xlu0 %822
        %824 = vrot.lane.b32.xlu0 %v419, 8
        %v825 = vpop.permute.xlu0 %824
        %826 = vrot.lane.b32.xlu0 %v420, 8
        %v827 = vpop.permute.xlu0 %826
        %828 = vrot.lane.b32.xlu0 %v421, 8
        %v829 = vpop.permute.xlu0 %828
        %830 = vrot.lane.b32.xlu0 %v422, 8
        %v831 = vpop.permute.xlu0 %830
        %832 = vrot.lane.b32.xlu0 %v423, 8
        %v833 = vpop.permute.xlu0 %832
        %834 = vrot.lane.b32.xlu0 %v424, 8
        %v835 = vpop.permute.xlu0 %834
        %836 = vrot.lane.b32.xlu0 %v425, 8
        %v837 = vpop.permute.xlu0 %836
        %838 = vrot.lane.b32.xlu0 %v426, 8
        %v839 = vpop.permute.xlu0 %838
        %840 = vrot.lane.b32.xlu0 %v427, 8
        %v841 = vpop.permute.xlu0 %840
        %842 = vrot.lane.b32.xlu0 %v428, 8
        %v843 = vpop.permute.xlu0 %842
        %844 = vrot.lane.b32.xlu0 %v429, 8
        %v845 = vpop.permute.xlu0 %844
        %846 = vrot.lane.b32.xlu0 %v430, 8
        %v847 = vpop.permute.xlu0 %846
        %912 = vrot.lane.b32.xlu0 %v431, 12
        %v913 = vpop.permute.xlu0 %912
        %914 = vrot.lane.b32.xlu0 %v432, 12
        %v915 = vpop.permute.xlu0 %914
        %916 = vrot.lane.b32.xlu0 %v433, 12
        %v917 = vpop.permute.xlu0 %916
        %918 = vrot.lane.b32.xlu0 %v434, 12
        %v919 = vpop.permute.xlu0 %918
        %920 = vrot.lane.b32.xlu0 %v435, 12
        %v921 = vpop.permute.xlu0 %920
        %922 = vrot.lane.b32.xlu0 %v436, 12
        %v923 = vpop.permute.xlu0 %922
        %924 = vrot.lane.b32.xlu0 %v437, 12
        %v925 = vpop.permute.xlu0 %924
        %926 = vrot.lane.b32.xlu0 %v438, 12
        %v927 = vpop.permute.xlu0 %926
        %928 = vrot.lane.b32.xlu0 %v439, 12
        %v929 = vpop.permute.xlu0 %928
        %930 = vrot.lane.b32.xlu0 %v440, 12
        %v931 = vpop.permute.xlu0 %930
        %932 = vrot.lane.b32.xlu0 %v441, 12
        %v933 = vpop.permute.xlu0 %932
        %934 = vrot.lane.b32.xlu0 %v442, 12
        %v935 = vpop.permute.xlu0 %934
        %936 = vrot.lane.b32.xlu0 %v443, 12
        %v937 = vpop.permute.xlu0 %936
        %938 = vrot.lane.b32.xlu0 %v444, 12
        %v939 = vpop.permute.xlu0 %938
        %940 = vrot.lane.b32.xlu0 %v445, 12
        %v941 = vpop.permute.xlu0 %940
        %942 = vrot.lane.b32.xlu0 %v446, 12
        %v943 = vpop.permute.xlu0 %942
        %944 = vrot.lane.b32.xlu0 %v447, 12
        %v945 = vpop.permute.xlu0 %944
        %946 = vrot.lane.b32.xlu0 %v448, 12
        %v947 = vpop.permute.xlu0 %946
        %948 = vrot.lane.b32.xlu0 %v449, 12
        %v949 = vpop.permute.xlu0 %948
        %950 = vrot.lane.b32.xlu0 %v450, 12
        %v951 = vpop.permute.xlu0 %950
        %952 = vrot.lane.b32.xlu0 %v451, 12
        %v953 = vpop.permute.xlu0 %952
        %954 = vrot.lane.b32.xlu0 %v452, 12
        %v955 = vpop.permute.xlu0 %954
        %956 = vrot.lane.b32.xlu0 %v453, 12
        %v957 = vpop.permute.xlu0 %956
        %958 = vrot.lane.b32.xlu0 %v454, 12
        %v959 = vpop.permute.xlu0 %958
        %960 = vrot.lane.b32.xlu0 %v455, 12
        %v961 = vpop.permute.xlu0 %960
        %962 = vrot.lane.b32.xlu0 %v456, 12
        %v963 = vpop.permute.xlu0 %962
        %964 = vrot.lane.b32.xlu0 %v457, 12
        %v965 = vpop.permute.xlu0 %964
        %966 = vrot.lane.b32.xlu0 %v458, 12
        %v967 = vpop.permute.xlu0 %966
        %968 = vrot.lane.b32.xlu0 %v459, 12
        %v969 = vpop.permute.xlu0 %968
        %970 = vrot.lane.b32.xlu0 %v460, 12
        %v971 = vpop.permute.xlu0 %970
        %972 = vrot.lane.b32.xlu0 %v461, 12
        %v973 = vpop.permute.xlu0 %972
        %974 = vrot.lane.b32.xlu0 %v462, 12
        %v975 = vpop.permute.xlu0 %974
        %1040 = vrot.lane.b32.xlu0 %v463, 16
        %v1041 = vpop.permute.xlu0 %1040
        %1042 = vrot.lane.b32.xlu0 %v464, 16
        %v1043 = vpop.permute.xlu0 %1042
        %1044 = vrot.lane.b32.xlu0 %v465, 16
        %v1045 = vpop.permute.xlu0 %1044
        %1046 = vrot.lane.b32.xlu0 %v466, 16
        %v1047 = vpop.permute.xlu0 %1046
        %1048 = vrot.lane.b32.xlu0 %v467, 16
        %v1049 = vpop.permute.xlu0 %1048
        %1050 = vrot.lane.b32.xlu0 %v468, 16
        %v1051 = vpop.permute.xlu0 %1050
        %1052 = vrot.lane.b32.xlu0 %v469, 16
        %v1053 = vpop.permute.xlu0 %1052
        %1054 = vrot.lane.b32.xlu0 %v470, 16
        %v1055 = vpop.permute.xlu0 %1054
        %1056 = vrot.lane.b32.xlu0 %v471, 16
        %v1057 = vpop.permute.xlu0 %1056
        %1058 = vrot.lane.b32.xlu0 %v472, 16
        %v1059 = vpop.permute.xlu0 %1058
        %1060 = vrot.lane.b32.xlu0 %v473, 16
        %v1061 = vpop.permute.xlu0 %1060
        %1062 = vrot.lane.b32.xlu0 %v474, 16
        %v1063 = vpop.permute.xlu0 %1062
        %1064 = vrot.lane.b32.xlu0 %v475, 16
        %v1065 = vpop.permute.xlu0 %1064
        %1066 = vrot.lane.b32.xlu0 %v476, 16
        %v1067 = vpop.permute.xlu0 %1066
        %1068 = vrot.lane.b32.xlu0 %v477, 16
        %v1069 = vpop.permute.xlu0 %1068
        %1070 = vrot.lane.b32.xlu0 %v478, 16
        %v1071 = vpop.permute.xlu0 %1070
        %1072 = vrot.lane.b32.xlu0 %v479, 16
        %v1073 = vpop.permute.xlu0 %1072
        %1074 = vrot.lane.b32.xlu0 %v480, 16
        %v1075 = vpop.permute.xlu0 %1074
        %1076 = vrot.lane.b32.xlu0 %v481, 16
        %v1077 = vpop.permute.xlu0 %1076
        %1078 = vrot.lane.b32.xlu0 %v482, 16
        %v1079 = vpop.permute.xlu0 %1078
        %1080 = vrot.lane.b32.xlu0 %v483, 16
        %v1081 = vpop.permute.xlu0 %1080
        %1082 = vrot.lane.b32.xlu0 %v484, 16
        %v1083 = vpop.permute.xlu0 %1082
        %1084 = vrot.lane.b32.xlu0 %v485, 16
        %v1085 = vpop.permute.xlu0 %1084
        %1086 = vrot.lane.b32.xlu0 %v486, 16
        %v1087 = vpop.permute.xlu0 %1086
        %1088 = vrot.lane.b32.xlu0 %v487, 16
        %v1089 = vpop.permute.xlu0 %1088
        %1090 = vrot.lane.b32.xlu0 %v488, 16
        %v1091 = vpop.permute.xlu0 %1090
        %1092 = vrot.lane.b32.xlu0 %v489, 16
        %v1093 = vpop.permute.xlu0 %1092
        %1094 = vrot.lane.b32.xlu0 %v490, 16
        %v1095 = vpop.permute.xlu0 %1094
        %1096 = vrot.lane.b32.xlu0 %v491, 16
        %v1097 = vpop.permute.xlu0 %1096
        %1098 = vrot.lane.b32.xlu0 %v492, 16
        %v1099 = vpop.permute.xlu0 %1098
        %1100 = vrot.lane.b32.xlu0 %v493, 16
        %v1101 = vpop.permute.xlu0 %1100
        %1102 = vrot.lane.b32.xlu0 %v494, 16
        %v1103 = vpop.permute.xlu0 %1102
        %1168 = vrot.lane.b32.xlu0 %v495, 20
        %v1169 = vpop.permute.xlu0 %1168
        %1170 = vrot.lane.b32.xlu0 %v496, 20
        %v1171 = vpop.permute.xlu0 %1170
        %1172 = vrot.lane.b32.xlu0 %v497, 20
        %v1173 = vpop.permute.xlu0 %1172
        %1174 = vrot.lane.b32.xlu0 %v498, 20
        %v1175 = vpop.permute.xlu0 %1174
        %1176 = vrot.lane.b32.xlu0 %v499, 20
        %v1177 = vpop.permute.xlu0 %1176
        %1178 = vrot.lane.b32.xlu0 %v500, 20
        %v1179 = vpop.permute.xlu0 %1178
        %1180 = vrot.lane.b32.xlu0 %v501, 20
        %v1181 = vpop.permute.xlu0 %1180
        %1182 = vrot.lane.b32.xlu0 %v502, 20
        %v1183 = vpop.permute.xlu0 %1182
        %1184 = vrot.lane.b32.xlu0 %v503, 20
        %v1185 = vpop.permute.xlu0 %1184
        %1186 = vrot.lane.b32.xlu0 %v504, 20
        %v1187 = vpop.permute.xlu0 %1186
        %1188 = vrot.lane.b32.xlu0 %v505, 20
        %v1189 = vpop.permute.xlu0 %1188
        %1190 = vrot.lane.b32.xlu0 %v506, 20
        %v1191 = vpop.permute.xlu0 %1190
        %1192 = vrot.lane.b32.xlu0 %v507, 20
        %v1193 = vpop.permute.xlu0 %1192
        %1194 = vrot.lane.b32.xlu0 %v508, 20
        %v1195 = vpop.permute.xlu0 %1194
        %1196 = vrot.lane.b32.xlu0 %v509, 20
        %v1197 = vpop.permute.xlu0 %1196
        %1198 = vrot.lane.b32.xlu0 %v510, 20
        %v1199 = vpop.permute.xlu0 %1198
        %1200 = vrot.lane.b32.xlu0 %v511, 20
        %v1201 = vpop.permute.xlu0 %1200
        %1202 = vrot.lane.b32.xlu0 %v512, 20
        %v1203 = vpop.permute.xlu0 %1202
        %1204 = vrot.lane.b32.xlu0 %v513, 20
        %v1205 = vpop.permute.xlu0 %1204
        %1206 = vrot.lane.b32.xlu0 %v514, 20
        %v1207 = vpop.permute.xlu0 %1206
        %1208 = vrot.lane.b32.xlu0 %v515, 20
        %v1209 = vpop.permute.xlu0 %1208
        %1210 = vrot.lane.b32.xlu0 %v516, 20
        %v1211 = vpop.permute.xlu0 %1210
        %1212 = vrot.lane.b32.xlu0 %v517, 20
        %v1213 = vpop.permute.xlu0 %1212
        %1214 = vrot.lane.b32.xlu0 %v518, 20
        %v1215 = vpop.permute.xlu0 %1214
        %1216 = vrot.lane.b32.xlu0 %v519, 20
        %v1217 = vpop.permute.xlu0 %1216
        %1218 = vrot.lane.b32.xlu0 %v520, 20
        %v1219 = vpop.permute.xlu0 %1218
        %1220 = vrot.lane.b32.xlu0 %v521, 20
        %v1221 = vpop.permute.xlu0 %1220
        %1222 = vrot.lane.b32.xlu0 %v522, 20
        %v1223 = vpop.permute.xlu0 %1222
        %1224 = vrot.lane.b32.xlu0 %v523, 20
        %v1225 = vpop.permute.xlu0 %1224
        %1226 = vrot.lane.b32.xlu0 %v524, 20
        %v1227 = vpop.permute.xlu0 %1226
        %1228 = vrot.lane.b32.xlu0 %v525, 20
        %v1229 = vpop.permute.xlu0 %1228
        %1230 = vrot.lane.b32.xlu0 %v526, 20
        %v1231 = vpop.permute.xlu0 %1230
        %1296 = vrot.lane.b32.xlu0 %v528, 24
        %v1297 = vpop.permute.xlu0 %1296
        %1298 = vrot.lane.b32.xlu0 %v529, 24
        %v1299 = vpop.permute.xlu0 %1298
        %1300 = vrot.lane.b32.xlu0 %v530, 24
        %v1301 = vpop.permute.xlu0 %1300
        %1302 = vrot.lane.b32.xlu0 %v531, 24
        %v1303 = vpop.permute.xlu0 %1302
        %1304 = vrot.lane.b32.xlu0 %v532, 24
        %v1305 = vpop.permute.xlu0 %1304
        %1306 = vrot.lane.b32.xlu0 %v533, 24
        %v1307 = vpop.permute.xlu0 %1306
        %1308 = vrot.lane.b32.xlu0 %v534, 24
        %v1309 = vpop.permute.xlu0 %1308
        %1310 = vrot.lane.b32.xlu0 %v535, 24
        %v1311 = vpop.permute.xlu0 %1310
        %1312 = vrot.lane.b32.xlu0 %v536, 24
        %v1313 = vpop.permute.xlu0 %1312
        %1314 = vrot.lane.b32.xlu0 %v537, 24
        %v1315 = vpop.permute.xlu0 %1314
        %1316 = vrot.lane.b32.xlu0 %v538, 24
        %v1317 = vpop.permute.xlu0 %1316
        %1318 = vrot.lane.b32.xlu0 %v539, 24
        %v1319 = vpop.permute.xlu0 %1318
        %1320 = vrot.lane.b32.xlu0 %v540, 24
        %v1321 = vpop.permute.xlu0 %1320
        %1322 = vrot.lane.b32.xlu0 %v541, 24
        %v1323 = vpop.permute.xlu0 %1322
        %1324 = vrot.lane.b32.xlu0 %v542, 24
        %v1325 = vpop.permute.xlu0 %1324
        %1326 = vrot.lane.b32.xlu0 %v543, 24
        %v1327 = vpop.permute.xlu0 %1326
        %1328 = vrot.lane.b32.xlu0 %v544, 24
        %v1329 = vpop.permute.xlu0 %1328
        %1330 = vrot.lane.b32.xlu0 %v545, 24
        %v1331 = vpop.permute.xlu0 %1330
        %1332 = vrot.lane.b32.xlu0 %v546, 24
        %v1333 = vpop.permute.xlu0 %1332
        %1334 = vrot.lane.b32.xlu0 %v547, 24
        %v1335 = vpop.permute.xlu0 %1334
        %1336 = vrot.lane.b32.xlu0 %v548, 24
        %v1337 = vpop.permute.xlu0 %1336
        %1338 = vrot.lane.b32.xlu0 %v549, 24
        %v1339 = vpop.permute.xlu0 %1338
        %1340 = vrot.lane.b32.xlu0 %v550, 24
        %v1341 = vpop.permute.xlu0 %1340
        %1342 = vrot.lane.b32.xlu0 %v551, 24
        %v1343 = vpop.permute.xlu0 %1342
        %1344 = vrot.lane.b32.xlu0 %v552, 24
        %v1345 = vpop.permute.xlu0 %1344
        %1346 = vrot.lane.b32.xlu0 %v553, 24
        %v1347 = vpop.permute.xlu0 %1346
        %1348 = vrot.lane.b32.xlu0 %v554, 24
        %v1349 = vpop.permute.xlu0 %1348
        %1350 = vrot.lane.b32.xlu0 %v555, 24
        %v1351 = vpop.permute.xlu0 %1350
        %1352 = vrot.lane.b32.xlu0 %v556, 24
        %v1353 = vpop.permute.xlu0 %1352
        %1354 = vrot.lane.b32.xlu0 %v557, 24
        %v1355 = vpop.permute.xlu0 %1354
        %1356 = vrot.lane.b32.xlu0 %v558, 24
        %v1357 = vpop.permute.xlu0 %1356
        %1358 = vrot.lane.b32.xlu0 %v559, 24
        %v1359 = vpop.permute.xlu0 %1358
        %1424 = vrot.lane.b32.xlu0 %v560, 28
        %v1425 = vpop.permute.xlu0 %1424
        %1426 = vrot.lane.b32.xlu0 %v561, 28
        %v1427 = vpop.permute.xlu0 %1426
        %1428 = vrot.lane.b32.xlu0 %v562, 28
        %v1429 = vpop.permute.xlu0 %1428
        %1430 = vrot.lane.b32.xlu0 %v563, 28
        %v1431 = vpop.permute.xlu0 %1430
        %1432 = vrot.lane.b32.xlu0 %v564, 28
        %v1433 = vpop.permute.xlu0 %1432
        %1434 = vrot.lane.b32.xlu0 %v565, 28
        %v1435 = vpop.permute.xlu0 %1434
        %1436 = vrot.lane.b32.xlu0 %v566, 28
        %v1437 = vpop.permute.xlu0 %1436
        %1438 = vrot.lane.b32.xlu0 %v567, 28
        %v1439 = vpop.permute.xlu0 %1438
        %1440 = vrot.lane.b32.xlu0 %v568, 28
        %v1441 = vpop.permute.xlu0 %1440
        %1442 = vrot.lane.b32.xlu0 %v569, 28
        %v1443 = vpop.permute.xlu0 %1442
        %1444 = vrot.lane.b32.xlu0 %v570, 28
        %v1445 = vpop.permute.xlu0 %1444
        %1446 = vrot.lane.b32.xlu0 %v571, 28
        %v1447 = vpop.permute.xlu0 %1446
        %1448 = vrot.lane.b32.xlu0 %v572, 28
        %v1449 = vpop.permute.xlu0 %1448
        %1450 = vrot.lane.b32.xlu0 %v573, 28
        %v1451 = vpop.permute.xlu0 %1450
        %1452 = vrot.lane.b32.xlu0 %v574, 28
        %v1453 = vpop.permute.xlu0 %1452
        %1454 = vrot.lane.b32.xlu0 %v575, 28
        %v1455 = vpop.permute.xlu0 %1454
        %1456 = vrot.lane.b32.xlu0 %v576, 28
        %v1457 = vpop.permute.xlu0 %1456
        %1458 = vrot.lane.b32.xlu0 %v577, 28
        %v1459 = vpop.permute.xlu0 %1458
        %1460 = vrot.lane.b32.xlu0 %v578, 28
        %v1461 = vpop.permute.xlu0 %1460
        %1462 = vrot.lane.b32.xlu0 %v579, 28
        %v1463 = vpop.permute.xlu0 %1462
        %1464 = vrot.lane.b32.xlu0 %v580, 28
        %v1465 = vpop.permute.xlu0 %1464
        %1466 = vrot.lane.b32.xlu0 %v581, 28
        %v1467 = vpop.permute.xlu0 %1466
        %1468 = vrot.lane.b32.xlu0 %v582, 28
        %v1469 = vpop.permute.xlu0 %1468
        %1470 = vrot.lane.b32.xlu0 %v583, 28
        %v1471 = vpop.permute.xlu0 %1470
        %1472 = vrot.lane.b32.xlu0 %v584, 28
        %v1473 = vpop.permute.xlu0 %1472
        %1474 = vrot.lane.b32.xlu0 %v585, 28
        %v1475 = vpop.permute.xlu0 %1474
        %1476 = vrot.lane.b32.xlu0 %v586, 28
        %v1477 = vpop.permute.xlu0 %1476
        %1478 = vrot.lane.b32.xlu0 %v587, 28
        %v1479 = vpop.permute.xlu0 %1478
        %1480 = vrot.lane.b32.xlu0 %v588, 28
        %v1481 = vpop.permute.xlu0 %1480
        %1482 = vrot.lane.b32.xlu0 %v589, 28
        %v1483 = vpop.permute.xlu0 %1482
        %1484 = vrot.lane.b32.xlu0 %v590, 28
        %v1485 = vpop.permute.xlu0 %1484
        %1486 = vrot.lane.b32.xlu0 %v591, 28
        %v1487 = vpop.permute.xlu0 %1486
        %1552 = vrot.lane.b32.xlu0 %v592, 32
        %v1553 = vpop.permute.xlu0 %1552
        %1554 = vrot.lane.b32.xlu0 %v593, 32
        %v1555 = vpop.permute.xlu0 %1554
        %1556 = vrot.lane.b32.xlu0 %v594, 32
        %v1557 = vpop.permute.xlu0 %1556
        %1558 = vrot.lane.b32.xlu0 %v595, 32
        %v1559 = vpop.permute.xlu0 %1558
        %1560 = vrot.lane.b32.xlu0 %v596, 32
        %v1561 = vpop.permute.xlu0 %1560
        %1562 = vrot.lane.b32.xlu0 %v597, 32
        %v1563 = vpop.permute.xlu0 %1562
        %1564 = vrot.lane.b32.xlu0 %v598, 32
        %v1565 = vpop.permute.xlu0 %1564
        %1566 = vrot.lane.b32.xlu0 %v599, 32
        %v1567 = vpop.permute.xlu0 %1566
        %1568 = vrot.lane.b32.xlu0 %v600, 32
        %v1569 = vpop.permute.xlu0 %1568
        %1570 = vrot.lane.b32.xlu0 %v601, 32
        %v1571 = vpop.permute.xlu0 %1570
        %1572 = vrot.lane.b32.xlu0 %v602, 32
        %v1573 = vpop.permute.xlu0 %1572
        %1574 = vrot.lane.b32.xlu0 %v603, 32
        %v1575 = vpop.permute.xlu0 %1574
        %1576 = vrot.lane.b32.xlu0 %v604, 32
        %v1577 = vpop.permute.xlu0 %1576
        %1578 = vrot.lane.b32.xlu0 %v605, 32
        %v1579 = vpop.permute.xlu0 %1578
        %1580 = vrot.lane.b32.xlu0 %v606, 32
        %v1581 = vpop.permute.xlu0 %1580
        %1582 = vrot.lane.b32.xlu0 %v607, 32
        %v1583 = vpop.permute.xlu0 %1582
        %1584 = vrot.lane.b32.xlu0 %v608, 32
        %v1585 = vpop.permute.xlu0 %1584
        %1586 = vrot.lane.b32.xlu0 %v609, 32
        %v1587 = vpop.permute.xlu0 %1586
        %1588 = vrot.lane.b32.xlu0 %v610, 32
        %v1589 = vpop.permute.xlu0 %1588
        %1590 = vrot.lane.b32.xlu0 %v611, 32
        %v1591 = vpop.permute.xlu0 %1590
        %1592 = vrot.lane.b32.xlu0 %v612, 32
        %v1593 = vpop.permute.xlu0 %1592
        %1594 = vrot.lane.b32.xlu0 %v613, 32
        %v1595 = vpop.permute.xlu0 %1594
        %1596 = vrot.lane.b32.xlu0 %v614, 32
        %v1597 = vpop.permute.xlu0 %1596
        %1598 = vrot.lane.b32.xlu0 %v615, 32
        %v1599 = vpop.permute.xlu0 %1598
        %1600 = vrot.lane.b32.xlu0 %v616, 32
        %v1601 = vpop.permute.xlu0 %1600
        %1602 = vrot.lane.b32.xlu0 %v617, 32
        %v1603 = vpop.permute.xlu0 %1602
        %1604 = vrot.lane.b32.xlu0 %v618, 32
        %v1605 = vpop.permute.xlu0 %1604
        %1606 = vrot.lane.b32.xlu0 %v619, 32
        %v1607 = vpop.permute.xlu0 %1606
        %1608 = vrot.lane.b32.xlu0 %v620, 32
        %v1609 = vpop.permute.xlu0 %1608
        %1610 = vrot.lane.b32.xlu0 %v621, 32
        %v1611 = vpop.permute.xlu0 %1610
        %1612 = vrot.lane.b32.xlu0 %v622, 32
        %v1613 = vpop.permute.xlu0 %1612
        %1614 = vrot.lane.b32.xlu0 %v623, 32
        %v1615 = vpop.permute.xlu0 %1614
        %v1648 = vsel %vm260, %v335, %v657
        %v1649 = vsel %vm260, %v336, %v659
        %v1650 = vsel %vm260, %v337, %v661
        %v1651 = vsel %vm260, %v338, %v663
        %v1652 = vsel %vm260, %v339, %v665
        %v1653 = vsel %vm260, %v340, %v667
        %v1654 = vsel %vm260, %v341, %v669
        %v1655 = vsel %vm260, %v342, %v671
        %v1656 = vsel %vm260, %v343, %v673
        %v1657 = vsel %vm260, %v344, %v675
        %v1658 = vsel %vm260, %v345, %v677
        %v1659 = vsel %vm260, %v346, %v679
        %v1660 = vsel %vm260, %v347, %v681
        %v1661 = vsel %vm260, %v348, %v683
        %v1662 = vsel %vm260, %v349, %v685
        %v1663 = vsel %vm260, %v350, %v687
        %v1664 = vsel %vm260, %v351, %v689
        %v1665 = vsel %vm260, %v352, %v691
        %v1666 = vsel %vm260, %v353, %v693
        %v1667 = vsel %vm260, %v354, %v695
        %v1668 = vsel %vm260, %v355, %v697
        %v1669 = vsel %vm260, %v356, %v699
        %v1670 = vsel %vm260, %v357, %v701
        %v1671 = vsel %vm260, %v358, %v703
        %v1672 = vsel %vm260, %v359, %v705
        %v1673 = vsel %vm260, %v360, %v707
        %v1674 = vsel %vm260, %v361, %v709
        %v1675 = vsel %vm260, %v362, %v711
        %v1676 = vsel %vm260, %v363, %v713
        %v1677 = vsel %vm260, %v364, %v715
        %v1678 = vsel %vm260, %v365, %v717
        %v1679 = vsel %vm260, %v366, %v719
        %vm1680 = vcmask 64512
        %v1681 = vsel %vm1680, %v1648, %v785
        %v1682 = vsel %vm1680, %v1649, %v787
        %v1683 = vsel %vm1680, %v1650, %v789
        %v1684 = vsel %vm1680, %v1651, %v791
        %v1685 = vsel %vm1680, %v1652, %v793
        %v1686 = vsel %vm1680, %v1653, %v795
        %v1687 = vsel %vm1680, %v1654, %v797
        %v1688 = vsel %vm1680, %v1655, %v799
        %v1689 = vsel %vm1680, %v1656, %v801
        %v1690 = vsel %vm1680, %v1657, %v803
        %v1691 = vsel %vm1680, %v1658, %v805
        %v1692 = vsel %vm1680, %v1659, %v807
        %v1693 = vsel %vm1680, %v1660, %v809
        %v1694 = vsel %vm1680, %v1661, %v811
        %v1695 = vsel %vm1680, %v1662, %v813
        %v1696 = vsel %vm1680, %v1663, %v815
        %v1697 = vsel %vm1680, %v1664, %v817
        %v1698 = vsel %vm1680, %v1665, %v819
        %v1699 = vsel %vm1680, %v1666, %v821
        %v1700 = vsel %vm1680, %v1667, %v823
        %v1701 = vsel %vm1680, %v1668, %v825
        %v1702 = vsel %vm1680, %v1669, %v827
        %v1703 = vsel %vm1680, %v1670, %v829
        %v1704 = vsel %vm1680, %v1671, %v831
        %v1705 = vsel %vm1680, %v1672, %v833
        %v1706 = vsel %vm1680, %v1673, %v835
        %v1707 = vsel %vm1680, %v1674, %v837
        %v1708 = vsel %vm1680, %v1675, %v839
        %v1709 = vsel %vm1680, %v1676, %v841
        %v1710 = vsel %vm1680, %v1677, %v843
        %v1711 = vsel %vm1680, %v1678, %v845
        %v1712 = vsel %vm1680, %v1679, %v847
        %vm1713 = vcmask 97280
        %v1714 = vsel %vm1713, %v1681, %v913
        %v1715 = vsel %vm1713, %v1682, %v915
        %v1716 = vsel %vm1713, %v1683, %v917
        %v1717 = vsel %vm1713, %v1684, %v919
        %v1718 = vsel %vm1713, %v1685, %v921
        %v1719 = vsel %vm1713, %v1686, %v923
        %v1720 = vsel %vm1713, %v1687, %v925
        %v1721 = vsel %vm1713, %v1688, %v927
        %v1722 = vsel %vm1713, %v1689, %v929
        %v1723 = vsel %vm1713, %v1690, %v931
        %v1724 = vsel %vm1713, %v1691, %v933
        %v1725 = vsel %vm1713, %v1692, %v935
        %v1726 = vsel %vm1713, %v1693, %v937
        %v1727 = vsel %vm1713, %v1694, %v939
        %v1728 = vsel %vm1713, %v1695, %v941
        %v1729 = vsel %vm1713, %v1696, %v943
        %v1730 = vsel %vm1713, %v1697, %v945
        %v1731 = vsel %vm1713, %v1698, %v947
        %v1732 = vsel %vm1713, %v1699, %v949
        %v1733 = vsel %vm1713, %v1700, %v951
        %v1734 = vsel %vm1713, %v1701, %v953
        %v1735 = vsel %vm1713, %v1702, %v955
        %v1736 = vsel %vm1713, %v1703, %v957
        %v1737 = vsel %vm1713, %v1704, %v959
        %v1738 = vsel %vm1713, %v1705, %v961
        %v1739 = vsel %vm1713, %v1706, %v963
        %v1740 = vsel %vm1713, %v1707, %v965
        %v1741 = vsel %vm1713, %v1708, %v967
        %v1742 = vsel %vm1713, %v1709, %v969
        %v1743 = vsel %vm1713, %v1710, %v971
        %v1744 = vsel %vm1713, %v1711, %v973
        %v1745 = vsel %vm1713, %v1712, %v975
        %vm1746 = vcmask 130048
        %v1747 = vsel %vm1746, %v1714, %v1041
        %v1748 = vsel %vm1746, %v1715, %v1043
        %v1749 = vsel %vm1746, %v1716, %v1045
        %v1750 = vsel %vm1746, %v1717, %v1047
        %v1751 = vsel %vm1746, %v1718, %v1049
        %v1752 = vsel %vm1746, %v1719, %v1051
        %v1753 = vsel %vm1746, %v1720, %v1053
        %v1754 = vsel %vm1746, %v1721, %v1055
        %v1755 = vsel %vm1746, %v1722, %v1057
        %v1756 = vsel %vm1746, %v1723, %v1059
        %v1757 = vsel %vm1746, %v1724, %v1061
        %v1758 = vsel %vm1746, %v1725, %v1063
        %v1759 = vsel %vm1746, %v1726, %v1065
        %v1760 = vsel %vm1746, %v1727, %v1067
        %v1761 = vsel %vm1746, %v1728, %v1069
        %v1762 = vsel %vm1746, %v1729, %v1071
        %v1763 = vsel %vm1746, %v1730, %v1073
        %v1764 = vsel %vm1746, %v1731, %v1075
        %v1765 = vsel %vm1746, %v1732, %v1077
        %v1766 = vsel %vm1746, %v1733, %v1079
        %v1767 = vsel %vm1746, %v1734, %v1081
        %v1768 = vsel %vm1746, %v1735, %v1083
        %v1769 = vsel %vm1746, %v1736, %v1085
        %v1770 = vsel %vm1746, %v1737, %v1087
        %v1771 = vsel %vm1746, %v1738, %v1089
        %v1772 = vsel %vm1746, %v1739, %v1091
        %v1773 = vsel %vm1746, %v1740, %v1093
        %v1774 = vsel %vm1746, %v1741, %v1095
        %v1775 = vsel %vm1746, %v1742, %v1097
        %v1776 = vsel %vm1746, %v1743, %v1099
        %v1777 = vsel %vm1746, %v1744, %v1101
        %v1778 = vsel %vm1746, %v1745, %v1103
        %vm1779 = vcmask 162816
        %v1780 = vsel %vm1779, %v1747, %v1169
        %v1781 = vsel %vm1779, %v1748, %v1171
        %v1782 = vsel %vm1779, %v1749, %v1173
        %v1783 = vsel %vm1779, %v1750, %v1175
        %v1784 = vsel %vm1779, %v1751, %v1177
        %v1785 = vsel %vm1779, %v1752, %v1179
        %v1786 = vsel %vm1779, %v1753, %v1181
        %v1787 = vsel %vm1779, %v1754, %v1183
        %v1788 = vsel %vm1779, %v1755, %v1185
        %v1789 = vsel %vm1779, %v1756, %v1187
        %v1790 = vsel %vm1779, %v1757, %v1189
        %v1791 = vsel %vm1779, %v1758, %v1191
        %v1792 = vsel %vm1779, %v1759, %v1193
        %v1793 = vsel %vm1779, %v1760, %v1195
        %v1794 = vsel %vm1779, %v1761, %v1197
        %v1795 = vsel %vm1779, %v1762, %v1199
        %v1796 = vsel %vm1779, %v1763, %v1201
        %v1797 = vsel %vm1779, %v1764, %v1203
        %v1798 = vsel %vm1779, %v1765, %v1205
        %v1799 = vsel %vm1779, %v1766, %v1207
        %v1800 = vsel %vm1779, %v1767, %v1209
        %v1801 = vsel %vm1779, %v1768, %v1211
        %v1802 = vsel %vm1779, %v1769, %v1213
        %v1803 = vsel %vm1779, %v1770, %v1215
        %v1804 = vsel %vm1779, %v1771, %v1217
        %v1805 = vsel %vm1779, %v1772, %v1219
        %v1806 = vsel %vm1779, %v1773, %v1221
        %v1807 = vsel %vm1779, %v1774, %v1223
        %v1808 = vsel %vm1779, %v1775, %v1225
        %v1809 = vsel %vm1779, %v1776, %v1227
        %v1810 = vsel %vm1779, %v1777, %v1229
        %v1811 = vsel %vm1779, %v1778, %v1231
        %vm1812 = vcmask 195584
        %v1813 = vsel %vm1812, %v1780, %v1297
        %v1814 = vsel %vm1812, %v1781, %v1299
        %v1815 = vsel %vm1812, %v1782, %v1301
        %v1816 = vsel %vm1812, %v1783, %v1303
        %v1817 = vsel %vm1812, %v1784, %v1305
        %v1818 = vsel %vm1812, %v1785, %v1307
        %v1819 = vsel %vm1812, %v1786, %v1309
        %v1820 = vsel %vm1812, %v1787, %v1311
        %v1821 = vsel %vm1812, %v1788, %v1313
        %v1822 = vsel %vm1812, %v1789, %v1315
        %v1823 = vsel %vm1812, %v1790, %v1317
        %v1824 = vsel %vm1812, %v1791, %v1319
        %v1825 = vsel %vm1812, %v1792, %v1321
        %v1826 = vsel %vm1812, %v1793, %v1323
        %v1827 = vsel %vm1812, %v1794, %v1325
        %v1828 = vsel %vm1812, %v1795, %v1327
        %v1829 = vsel %vm1812, %v1796, %v1329
        %v1830 = vsel %vm1812, %v1797, %v1331
        %v1831 = vsel %vm1812, %v1798, %v1333
        %v1832 = vsel %vm1812, %v1799, %v1335
        %v1833 = vsel %vm1812, %v1800, %v1337
        %v1834 = vsel %vm1812, %v1801, %v1339
        %v1835 = vsel %vm1812, %v1802, %v1341
        %v1836 = vsel %vm1812, %v1803, %v1343
        %v1837 = vsel %vm1812, %v1804, %v1345
        %v1838 = vsel %vm1812, %v1805, %v1347
        %v1839 = vsel %vm1812, %v1806, %v1349
        %v1840 = vsel %vm1812, %v1807, %v1351
        %v1841 = vsel %vm1812, %v1808, %v1353
        %v1842 = vsel %vm1812, %v1809, %v1355
        %v1843 = vsel %vm1812, %v1810, %v1357
        %v1844 = vsel %vm1812, %v1811, %v1359
        %vm1845 = vcmask 228352
        %v1846 = vsel %vm1845, %v1813, %v1425
        %v1847 = vsel %vm1845, %v1814, %v1427
        %v1848 = vsel %vm1845, %v1815, %v1429
        %v1849 = vsel %vm1845, %v1816, %v1431
        %v1850 = vsel %vm1845, %v1817, %v1433
        %v1851 = vsel %vm1845, %v1818, %v1435
        %v1852 = vsel %vm1845, %v1819, %v1437
        %v1853 = vsel %vm1845, %v1820, %v1439
        %v1854 = vsel %vm1845, %v1821, %v1441
        %v1855 = vsel %vm1845, %v1822, %v1443
        %v1856 = vsel %vm1845, %v1823, %v1445
        %v1857 = vsel %vm1845, %v1824, %v1447
        %v1858 = vsel %vm1845, %v1825, %v1449
        %v1859 = vsel %vm1845, %v1826, %v1451
        %v1860 = vsel %vm1845, %v1827, %v1453
        %v1861 = vsel %vm1845, %v1828, %v1455
        %v1862 = vsel %vm1845, %v1829, %v1457
        %v1863 = vsel %vm1845, %v1830, %v1459
        %v1864 = vsel %vm1845, %v1831, %v1461
        %v1865 = vsel %vm1845, %v1832, %v1463
        %v1866 = vsel %vm1845, %v1833, %v1465
        %v1867 = vsel %vm1845, %v1834, %v1467
        %v1868 = vsel %vm1845, %v1835, %v1469
        %v1869 = vsel %vm1845, %v1836, %v1471
        %v1870 = vsel %vm1845, %v1837, %v1473
        %v1871 = vsel %vm1845, %v1838, %v1475
        %v1872 = vsel %vm1845, %v1839, %v1477
        %v1873 = vsel %vm1845, %v1840, %v1479
        %v1874 = vsel %vm1845, %v1841, %v1481
        %v1875 = vsel %vm1845, %v1842, %v1483
        %v1876 = vsel %vm1845, %v1843, %v1485
        %v1877 = vsel %vm1845, %v1844, %v1487
        %vm1878 = vcmask 261120
        %v1879 = vsel %vm1878, %v1846, %v1553
        %v1880 = vsel %vm1878, %v1847, %v1555
        %v1881 = vsel %vm1878, %v1848, %v1557
        %v1882 = vsel %vm1878, %v1849, %v1559
        %v1883 = vsel %vm1878, %v1850, %v1561
        %v1884 = vsel %vm1878, %v1851, %v1563
        %v1885 = vsel %vm1878, %v1852, %v1565
        %v1886 = vsel %vm1878, %v1853, %v1567
        %v1887 = vsel %vm1878, %v1854, %v1569
        %v1888 = vsel %vm1878, %v1855, %v1571
        %v1889 = vsel %vm1878, %v1856, %v1573
        %v1890 = vsel %vm1878, %v1857, %v1575
        %v1891 = vsel %vm1878, %v1858, %v1577
        %v1892 = vsel %vm1878, %v1859, %v1579
        %v1893 = vsel %vm1878, %v1860, %v1581
        %v1894 = vsel %vm1878, %v1861, %v1583
        %v1895 = vsel %vm1878, %v1862, %v1585
        %v1896 = vsel %vm1878, %v1863, %v1587
        %v1897 = vsel %vm1878, %v1864, %v1589
        %v1898 = vsel %vm1878, %v1865, %v1591
        %v1899 = vsel %vm1878, %v1866, %v1593
        %v1900 = vsel %vm1878, %v1867, %v1595
        %v1901 = vsel %vm1878, %v1868, %v1597
        %v1902 = vsel %vm1878, %v1869, %v1599
        %v1903 = vsel %vm1878, %v1870, %v1601
        %v1904 = vsel %vm1878, %v1871, %v1603
        %v1905 = vsel %vm1878, %v1872, %v1605
        %v1906 = vsel %vm1878, %v1873, %v1607
        %v1907 = vsel %vm1878, %v1874, %v1609
        %v1908 = vsel %vm1878, %v1875, %v1611
        %v1909 = vsel %vm1878, %v1876, %v1613
        %v1910 = vsel %vm1878, %v1877, %v1615
        %v1911 = vld [vmem:[%s1] sm:$0xff]
        %v1912 = vld [vmem:[%s1 + $0x8] sm:$0xff]
        %v1913 = vld [vmem:[%s1 + $0x10] sm:$0xff]
        %v1914 = vld [vmem:[%s1 + $0x18] sm:$0xff]
        %v1915 = vld [vmem:[%s1 + $0x20] sm:$0xf]
        %vm1916 = vcmask 293888
        %v1918 = vsel %vm1916, %v1879, 0
        %v1921 = vsel %vm1916, %v1880, 0
        %v1924 = vsel %vm1916, %v1881, 0
        %v1927 = vsel %vm1916, %v1882, 0
        %v1930 = vsel %vm1916, %v1883, 0
        %v1933 = vsel %vm1916, %v1884, 0
        %v1936 = vsel %vm1916, %v1885, 0
        %v1939 = vsel %vm1916, %v1886, 0
        %v1942 = vsel %vm1916, %v1887, 0
        %v1945 = vsel %vm1916, %v1888, 0
        %v1948 = vsel %vm1916, %v1889, 0
        %v1951 = vsel %vm1916, %v1890, 0
        %v1954 = vsel %vm1916, %v1891, 0
        %v1957 = vsel %vm1916, %v1892, 0
        %v1960 = vsel %vm1916, %v1893, 0
        %v1963 = vsel %vm1916, %v1894, 0
        %v1966 = vsel %vm1916, %v1895, 0
        %v1969 = vsel %vm1916, %v1896, 0
        %v1972 = vsel %vm1916, %v1897, 0
        %v1975 = vsel %vm1916, %v1898, 0
        %v1978 = vsel %vm1916, %v1899, 0
        %v1981 = vsel %vm1916, %v1900, 0
        %v1984 = vsel %vm1916, %v1901, 0
        %v1987 = vsel %vm1916, %v1902, 0
        %v1990 = vsel %vm1916, %v1903, 0
        %v1993 = vsel %vm1916, %v1904, 0
        %v1996 = vsel %vm1916, %v1905, 0
        %v1999 = vsel %vm1916, %v1906, 0
        %v2002 = vsel %vm1916, %v1907, 0
        %v2005 = vsel %vm1916, %v1908, 0
        %v2008 = vsel %vm1916, %v1909, 0
        %v2011 = vsel %vm1916, %v1910, 0
        %vm2013 = vcmask 1043456
        %v2015 = vsel %vm2013, %v1915, 0
        %2017 = vmatpush.msra.mxu0 0.0
        %2018 = vmatpush.msra.mxu0 0.0
        %2019 = vmatpush.msra.mxu0 0.0
        %2020 = vmatpush.msra.mxu0 0.0
        %2021 = vmatpush.msra.mxu0 0.0
        %2022 = vmatpush.msra.mxu0 0.0
        %2023 = vmatpush.msra.mxu0 0.0
        %2024 = vmatpush.msra.mxu0 0.0
        %2025 = vmatpush.msra.mxu0 0.0
        %2026 = vmatpush.msra.mxu0 0.0
        %2027 = vmatpush.msra.mxu0 0.0
        %2028 = vmatpush.msra.mxu0 %v2015
        %2029 = vmatpush.msra.mxu0 %v1914
        %2030 = vmatpush.msra.mxu0 %v1913
        %2031 = vmatpush.msra.mxu0 %v1912
        %2032 = vmatpush.msra.mxu0 %v1911
        %2033 = vmatmul.f32.gmra.mxu0 %v1918
        %v2034 = vpop.f32.mrf.mxu0
        %v2035 = vadd.f32 0.0, %v2034
        %2036 = vmatmul.f32.gmra.mxu0 %v1921
        %v2037 = vpop.f32.mrf.mxu0
        %v2038 = vadd.f32 0.0, %v2037
        %2039 = vmatmul.f32.gmra.mxu0 %v1924
        %v2040 = vpop.f32.mrf.mxu0
        %v2041 = vadd.f32 0.0, %v2040
        %2042 = vmatmul.f32.gmra.mxu0 %v1927
        %v2043 = vpop.f32.mrf.mxu0
        %v2044 = vadd.f32 0.0, %v2043
        %2045 = vmatmul.f32.gmra.mxu0 %v1930
        %v2046 = vpop.f32.mrf.mxu0
        %v2047 = vadd.f32 0.0, %v2046
        %2048 = vmatmul.f32.gmra.mxu0 %v1933
        %v2049 = vpop.f32.mrf.mxu0
        %v2050 = vadd.f32 0.0, %v2049
        %2051 = vmatmul.f32.gmra.mxu0 %v1936
        %v2052 = vpop.f32.mrf.mxu0
        %v2053 = vadd.f32 0.0, %v2052
        %2054 = vmatmul.f32.gmra.mxu0 %v1939
        %v2055 = vpop.f32.mrf.mxu0
        %v2056 = vadd.f32 0.0, %v2055
        %2057 = vmatmul.f32.gmra.mxu0 %v1942
        %v2058 = vpop.f32.mrf.mxu0
        %v2059 = vadd.f32 0.0, %v2058
        %2060 = vmatmul.f32.gmra.mxu0 %v1945
        %v2061 = vpop.f32.mrf.mxu0
        %v2062 = vadd.f32 0.0, %v2061
        %2063 = vmatmul.f32.gmra.mxu0 %v1948
        %v2064 = vpop.f32.mrf.mxu0
        %v2065 = vadd.f32 0.0, %v2064
        %2066 = vmatmul.f32.gmra.mxu0 %v1951
        %v2067 = vpop.f32.mrf.mxu0
        %v2068 = vadd.f32 0.0, %v2067
        %2069 = vmatmul.f32.gmra.mxu0 %v1954
        %v2070 = vpop.f32.mrf.mxu0
        %v2071 = vadd.f32 0.0, %v2070
        %2072 = vmatmul.f32.gmra.mxu0 %v1957
        %v2073 = vpop.f32.mrf.mxu0
        %v2074 = vadd.f32 0.0, %v2073
        %2075 = vmatmul.f32.gmra.mxu0 %v1960
        %v2076 = vpop.f32.mrf.mxu0
        %v2077 = vadd.f32 0.0, %v2076
        %2078 = vmatmul.f32.gmra.mxu0 %v1963
        %v2079 = vpop.f32.mrf.mxu0
        %v2080 = vadd.f32 0.0, %v2079
        %2081 = vmatmul.f32.gmra.mxu0 %v1966
        %v2082 = vpop.f32.mrf.mxu0
        %v2083 = vadd.f32 0.0, %v2082
        %2084 = vmatmul.f32.gmra.mxu0 %v1969
        %v2085 = vpop.f32.mrf.mxu0
        %v2086 = vadd.f32 0.0, %v2085
        %2087 = vmatmul.f32.gmra.mxu0 %v1972
        %v2088 = vpop.f32.mrf.mxu0
        %v2089 = vadd.f32 0.0, %v2088
        %2090 = vmatmul.f32.gmra.mxu0 %v1975
        %v2091 = vpop.f32.mrf.mxu0
        %v2092 = vadd.f32 0.0, %v2091
        %2093 = vmatmul.f32.gmra.mxu0 %v1978
        %v2094 = vpop.f32.mrf.mxu0
        %v2095 = vadd.f32 0.0, %v2094
        %2096 = vmatmul.f32.gmra.mxu0 %v1981
        %v2097 = vpop.f32.mrf.mxu0
        %v2098 = vadd.f32 0.0, %v2097
        %2099 = vmatmul.f32.gmra.mxu0 %v1984
        %v2100 = vpop.f32.mrf.mxu0
        %v2101 = vadd.f32 0.0, %v2100
        %2102 = vmatmul.f32.gmra.mxu0 %v1987
        %v2103 = vpop.f32.mrf.mxu0
        %v2104 = vadd.f32 0.0, %v2103
        %2105 = vmatmul.f32.gmra.mxu0 %v1990
        %v2106 = vpop.f32.mrf.mxu0
        %v2107 = vadd.f32 0.0, %v2106
        %2108 = vmatmul.f32.gmra.mxu0 %v1993
        %v2109 = vpop.f32.mrf.mxu0
        %v2110 = vadd.f32 0.0, %v2109
        %2111 = vmatmul.f32.gmra.mxu0 %v1996
        %v2112 = vpop.f32.mrf.mxu0
        %v2113 = vadd.f32 0.0, %v2112
        %2114 = vmatmul.f32.gmra.mxu0 %v1999
        %v2115 = vpop.f32.mrf.mxu0
        %v2116 = vadd.f32 0.0, %v2115
        %2117 = vmatmul.f32.gmra.mxu0 %v2002
        %v2118 = vpop.f32.mrf.mxu0
        %v2119 = vadd.f32 0.0, %v2118
        %2120 = vmatmul.f32.gmra.mxu0 %v2005
        %v2121 = vpop.f32.mrf.mxu0
        %v2122 = vadd.f32 0.0, %v2121
        %2123 = vmatmul.f32.gmra.mxu0 %v2008
        %v2124 = vpop.f32.mrf.mxu0
        %v2125 = vadd.f32 0.0, %v2124
        %2126 = vmatmul.f32.gmra.mxu0 %v2011
        %v2127 = vpop.f32.mrf.mxu0
        %v2128 = vadd.f32 0.0, %v2127
        %2129 = vdwg.mxu0
        %v2130 = vmax.f32 %v2035, 0.0
        %v2131 = vmax.f32 %v2038, 0.0
        %v2132 = vmax.f32 %v2041, 0.0
        %v2133 = vmax.f32 %v2044, 0.0
        %v2134 = vmax.f32 %v2047, 0.0
        %v2135 = vmax.f32 %v2050, 0.0
        %v2136 = vmax.f32 %v2053, 0.0
        %v2137 = vmax.f32 %v2056, 0.0
        %v2138 = vmax.f32 %v2059, 0.0
        %v2139 = vmax.f32 %v2062, 0.0
        %v2140 = vmax.f32 %v2065, 0.0
        %v2141 = vmax.f32 %v2068, 0.0
        %v2142 = vmax.f32 %v2071, 0.0
        %v2143 = vmax.f32 %v2074, 0.0
        %v2144 = vmax.f32 %v2077, 0.0
        %v2145 = vmax.f32 %v2080, 0.0
        %v2146 = vmax.f32 %v2083, 0.0
        %v2147 = vmax.f32 %v2086, 0.0
        %v2148 = vmax.f32 %v2089, 0.0
        %v2149 = vmax.f32 %v2092, 0.0
        %v2150 = vmax.f32 %v2095, 0.0
        %v2151 = vmax.f32 %v2098, 0.0
        %v2152 = vmax.f32 %v2101, 0.0
        %v2153 = vmax.f32 %v2104, 0.0
        %v2154 = vmax.f32 %v2107, 0.0
        %v2155 = vmax.f32 %v2110, 0.0
        %v2156 = vmax.f32 %v2113, 0.0
        %v2157 = vmax.f32 %v2116, 0.0
        %v2158 = vmax.f32 %v2119, 0.0
        %v2159 = vmax.f32 %v2122, 0.0
        %v2160 = vmax.f32 %v2125, 0.0
        %v2161 = vmax.f32 %v2128, 0.0
        %2162 = vst.msk [vmem:[#allocation3] sm:$0xff] %vm1680, 0.0
        %2163 = vst.msk [vmem:[#allocation3 + $0x8] sm:$0xff] %vm1680, 0.0
        %vm2164 = vcmask 58368
        %2165 = vst.msk [vmem:[#allocation3 + $0x10] sm:$0x3] %vm2164, 0.0
        %s2166 = scalar_lea.vmem [#allocation3], 408
        %2167 = vst.msk [vmem:[%s2166] sm:$0xff] %vm1680, 0.0
        %2168 = vst.msk [vmem:[%s2166 + $0x8] sm:$0xff] %vm1680, 0.0
        %2169 = vst.msk [vmem:[%s2166 + $0x10] sm:$0x3] %vm2164, 0.0
        %s2170 = scalar_lea.vmem [#allocation3], 24
        %vm2171 = vcmask 57344
        %2172 = vst.msk [vmem:[%s2170] sm:$0x1] %vm2171, 0.0
        %2173 = vst.msk [vmem:[%s2170 + $0x18] sm:$0x1] %vm2171, 0.0
        %2174 = vst.msk [vmem:[%s2170 + $0x30] sm:$0x1] %vm2171, 0.0
        %2175 = vst.msk [vmem:[%s2170 + $0x48] sm:$0x1] %vm2171, 0.0
        %2176 = vst.msk [vmem:[%s2170 + $0x60] sm:$0x1] %vm2171, 0.0
        %2177 = vst.msk [vmem:[%s2170 + $0x78] sm:$0x1] %vm2171, 0.0
        %2178 = vst.msk [vmem:[%s2170 + $0x90] sm:$0x1] %vm2171, 0.0
        %2179 = vst.msk [vmem:[%s2170 + $0xa8] sm:$0x1] %vm2171, 0.0
        %2180 = vst.msk [vmem:[%s2170 + $0xc0] sm:$0x1] %vm2171, 0.0
        %2181 = vst.msk [vmem:[%s2170 + $0xd8] sm:$0x1] %vm2171, 0.0
        %2182 = vst.msk [vmem:[%s2170 + $0xf0] sm:$0x1] %vm2171, 0.0
        %2183 = vst.msk [vmem:[%s2170 + $0x108] sm:$0x1] %vm2171, 0.0
        %2184 = vst.msk [vmem:[%s2170 + $0x120] sm:$0x1] %vm2171, 0.0
        %2185 = vst.msk [vmem:[%s2170 + $0x138] sm:$0x1] %vm2171, 0.0
        %2186 = vst.msk [vmem:[%s2170 + $0x150] sm:$0x1] %vm2171, 0.0
        %2187 = vst.msk [vmem:[%s2170 + $0x168] sm:$0x1] %vm2171, 0.0
        %2188 = vst.msk [vmem:[%s2170 + $0x11] sm:$0x1] %vm2171, 0.0
        %2189 = vst.msk [vmem:[%s2170 + $0x29] sm:$0x1] %vm2171, 0.0
        %2190 = vst.msk [vmem:[%s2170 + $0x41] sm:$0x1] %vm2171, 0.0
        %2191 = vst.msk [vmem:[%s2170 + $0x59] sm:$0x1] %vm2171, 0.0
        %2192 = vst.msk [vmem:[%s2170 + $0x71] sm:$0x1] %vm2171, 0.0
        %2193 = vst.msk [vmem:[%s2170 + $0x89] sm:$0x1] %vm2171, 0.0
        %2194 = vst.msk [vmem:[%s2170 + $0xa1] sm:$0x1] %vm2171, 0.0
        %2195 = vst.msk [vmem:[%s2170 + $0xb9] sm:$0x1] %vm2171, 0.0
        %2196 = vst.msk [vmem:[%s2170 + $0xd1] sm:$0x1] %vm2171, 0.0
        %2197 = vst.msk [vmem:[%s2170 + $0xe9] sm:$0x1] %vm2171, 0.0
        %2198 = vst.msk [vmem:[%s2170 + $0x101] sm:$0x1] %vm2171, 0.0
        %2199 = vst.msk [vmem:[%s2170 + $0x119] sm:$0x1] %vm2171, 0.0
        %2200 = vst.msk [vmem:[%s2170 + $0x131] sm:$0x1] %vm2171, 0.0
        %2201 = vst.msk [vmem:[%s2170 + $0x149] sm:$0x1] %vm2171, 0.0
        %2202 = vst.msk [vmem:[%s2170 + $0x161] sm:$0x1] %vm2171, 0.0
        %2203 = vst.msk [vmem:[%s2170 + $0x179] sm:$0x1] %vm2171, 0.0
        %2204 = vst.msk [vmem:[%s2170 + $0x1] sm:$0xff] %vm1680, %v2130
        %2205 = vst.msk [vmem:[%s2170 + $0x9] sm:$0xff] %vm1680, %v2131
        %2206 = vst.msk [vmem:[%s2170 + $0x19] sm:$0xff] %vm1680, %v2132
        %2207 = vst.msk [vmem:[%s2170 + $0x21] sm:$0xff] %vm1680, %v2133
        %2208 = vst.msk [vmem:[%s2170 + $0x31] sm:$0xff] %vm1680, %v2134
        %2209 = vst.msk [vmem:[%s2170 + $0x39] sm:$0xff] %vm1680, %v2135
        %2210 = vst.msk [vmem:[%s2170 + $0x49] sm:$0xff] %vm1680, %v2136
        %2211 = vst.msk [vmem:[%s2170 + $0x51] sm:$0xff] %vm1680, %v2137
        %2212 = vst.msk [vmem:[%s2170 + $0x61] sm:$0xff] %vm1680, %v2138
        %2213 = vst.msk [vmem:[%s2170 + $0x69] sm:$0xff] %vm1680, %v2139
        %2214 = vst.msk [vmem:[%s2170 + $0x79] sm:$0xff] %vm1680, %v2140
        %2215 = vst.msk [vmem:[%s2170 + $0x81] sm:$0xff] %vm1680, %v2141
        %2216 = vst.msk [vmem:[%s2170 + $0x91] sm:$0xff] %vm1680, %v2142
        %2217 = vst.msk [vmem:[%s2170 + $0x99] sm:$0xff] %vm1680, %v2143
        %2218 = vst.msk [vmem:[%s2170 + $0xa9] sm:$0xff] %vm1680, %v2144
        %2219 = vst.msk [vmem:[%s2170 + $0xb1] sm:$0xff] %vm1680, %v2145
        %2220 = vst.msk [vmem:[%s2170 + $0xc1] sm:$0xff] %vm1680, %v2146
        %2221 = vst.msk [vmem:[%s2170 + $0xc9] sm:$0xff] %vm1680, %v2147
        %2222 = vst.msk [vmem:[%s2170 + $0xd9] sm:$0xff] %vm1680, %v2148
        %2223 = vst.msk [vmem:[%s2170 + $0xe1] sm:$0xff] %vm1680, %v2149
        %2224 = vst.msk [vmem:[%s2170 + $0xf1] sm:$0xff] %vm1680, %v2150
        %2225 = vst.msk [vmem:[%s2170 + $0xf9] sm:$0xff] %vm1680, %v2151
        %2226 = vst.msk [vmem:[%s2170 + $0x109] sm:$0xff] %vm1680, %v2152
        %2227 = vst.msk [vmem:[%s2170 + $0x111] sm:$0xff] %vm1680, %v2153
        %2228 = vst.msk [vmem:[%s2170 + $0x121] sm:$0xff] %vm1680, %v2154
        %2229 = vst.msk [vmem:[%s2170 + $0x129] sm:$0xff] %vm1680, %v2155
        %2230 = vst.msk [vmem:[%s2170 + $0x139] sm:$0xff] %vm1680, %v2156
        %2231 = vst.msk [vmem:[%s2170 + $0x141] sm:$0xff] %vm1680, %v2157
        %2232 = vst.msk [vmem:[%s2170 + $0x151] sm:$0xff] %vm1680, %v2158
        %2233 = vst.msk [vmem:[%s2170 + $0x159] sm:$0xff] %vm1680, %v2159
        %2234 = vst.msk [vmem:[%s2170 + $0x169] sm:$0xff] %vm1680, %v2160
        %2235 = vst.msk [vmem:[%s2170 + $0x171] sm:$0xff] %vm1680, %v2161
        %v2236 = vld [vmem:[#allocation3] sm:$0xff]
        %v2237 = vld [vmem:[#allocation3 + $0x8] sm:$0xff]
        %v2238 = vld [vmem:[#allocation3 + $0x18] sm:$0xff]
        %v2239 = vld [vmem:[#allocation3 + $0x20] sm:$0xff]
        %v2240 = vld [vmem:[#allocation3 + $0x30] sm:$0xff]
        %v2241 = vld [vmem:[#allocation3 + $0x38] sm:$0xff]
        %v2242 = vld [vmem:[#allocation3 + $0x48] sm:$0xff]
        %v2243 = vld [vmem:[#allocation3 + $0x50] sm:$0xff]
        %v2244 = vld [vmem:[#allocation3 + $0x60] sm:$0xff]
        %v2245 = vld [vmem:[#allocation3 + $0x68] sm:$0xff]
        %v2246 = vld [vmem:[#allocation3 + $0x78] sm:$0xff]
        %v2247 = vld [vmem:[#allocation3 + $0x80] sm:$0xff]
        %v2248 = vld [vmem:[#allocation3 + $0x90] sm:$0xff]
        %v2249 = vld [vmem:[#allocation3 + $0x98] sm:$0xff]
        %v2250 = vld [vmem:[#allocation3 + $0xa8] sm:$0xff]
        %v2251 = vld [vmem:[#allocation3 + $0xb0] sm:$0xff]
        %v2252 = vld [vmem:[#allocation3 + $0xc0] sm:$0xff]
        %v2253 = vld [vmem:[#allocation3 + $0xc8] sm:$0xff]
        %v2254 = vld [vmem:[#allocation3 + $0xd8] sm:$0xff]
        %v2255 = vld [vmem:[#allocation3 + $0xe0] sm:$0xff]
        %v2256 = vld [vmem:[#allocation3 + $0xf0] sm:$0xff]
        %v2257 = vld [vmem:[#allocation3 + $0xf8] sm:$0xff]
        %v2258 = vld [vmem:[#allocation3 + $0x108] sm:$0xff]
        %v2259 = vld [vmem:[#allocation3 + $0x110] sm:$0xff]
        %v2260 = vld [vmem:[#allocation3 + $0x120] sm:$0xff]
        %v2261 = vld [vmem:[#allocation3 + $0x128] sm:$0xff]
        %v2262 = vld [vmem:[#allocation3 + $0x138] sm:$0xff]
        %v2263 = vld [vmem:[#allocation3 + $0x140] sm:$0xff]
        %v2264 = vld [vmem:[#allocation3 + $0x150] sm:$0xff]
        %v2265 = vld [vmem:[#allocation3 + $0x158] sm:$0xff]
        %v2266 = vld [vmem:[#allocation3 + $0x168] sm:$0xff]
        %v2267 = vld [vmem:[#allocation3 + $0x170] sm:$0xff]
        %v2268 = vld [vmem:[#allocation3 + $0x1] sm:$0xff]
        %v2269 = vld [vmem:[#allocation3 + $0x9] sm:$0xff]
        %v2270 = vld [vmem:[#allocation3 + $0x19] sm:$0xff]
        %v2271 = vld [vmem:[#allocation3 + $0x21] sm:$0xff]
        %v2272 = vld [vmem:[#allocation3 + $0x31] sm:$0xff]
        %v2273 = vld [vmem:[#allocation3 + $0x39] sm:$0xff]
        %v2274 = vld [vmem:[#allocation3 + $0x49] sm:$0xff]
        %v2275 = vld [vmem:[#allocation3 + $0x51] sm:$0xff]
        %v2276 = vld [vmem:[#allocation3 + $0x61] sm:$0xff]
        %v2277 = vld [vmem:[#allocation3 + $0x69] sm:$0xff]
        %v2278 = vld [vmem:[#allocation3 + $0x79] sm:$0xff]
        %v2279 = vld [vmem:[#allocation3 + $0x81] sm:$0xff]
        %v2280 = vld [vmem:[#allocation3 + $0x91] sm:$0xff]
        %v2281 = vld [vmem:[#allocation3 + $0x99] sm:$0xff]
        %v2282 = vld [vmem:[#allocation3 + $0xa9] sm:$0xff]
        %v2283 = vld [vmem:[#allocation3 + $0xb1] sm:$0xff]
        %v2284 = vld [vmem:[#allocation3 + $0xc1] sm:$0xff]
        %v2285 = vld [vmem:[#allocation3 + $0xc9] sm:$0xff]
        %v2286 = vld [vmem:[#allocation3 + $0xd9] sm:$0xff]
        %v2287 = vld [vmem:[#allocation3 + $0xe1] sm:$0xff]
        %v2288 = vld [vmem:[#allocation3 + $0xf1] sm:$0xff]
        %v2289 = vld [vmem:[#allocation3 + $0xf9] sm:$0xff]
        %v2290 = vld [vmem:[#allocation3 + $0x109] sm:$0xff]
        %v2291 = vld [vmem:[#allocation3 + $0x111] sm:$0xff]
        %v2292 = vld [vmem:[#allocation3 + $0x121] sm:$0xff]
        %v2293 = vld [vmem:[#allocation3 + $0x129] sm:$0xff]
        %v2294 = vld [vmem:[#allocation3 + $0x139] sm:$0xff]
        %v2295 = vld [vmem:[#allocation3 + $0x141] sm:$0xff]
        %v2296 = vld [vmem:[#allocation3 + $0x151] sm:$0xff]
        %v2297 = vld [vmem:[#allocation3 + $0x159] sm:$0xff]
        %v2298 = vld [vmem:[#allocation3 + $0x169] sm:$0xff]
        %v2299 = vld [vmem:[#allocation3 + $0x171] sm:$0xff]
        %v2300 = vld [vmem:[#allocation3 + $0x2] sm:$0xff]
        %v2301 = vld [vmem:[#allocation3 + $0xa] sm:$0xff]
        %v2302 = vld [vmem:[#allocation3 + $0x1a] sm:$0xff]
        %v2303 = vld [vmem:[#allocation3 + $0x22] sm:$0xff]
        %v2304 = vld [vmem:[#allocation3 + $0x32] sm:$0xff]
        %v2305 = vld [vmem:[#allocation3 + $0x3a] sm:$0xff]
        %v2306 = vld [vmem:[#allocation3 + $0x4a] sm:$0xff]
        %v2307 = vld [vmem:[#allocation3 + $0x52] sm:$0xff]
        %v2308 = vld [vmem:[#allocation3 + $0x62] sm:$0xff]
        %v2309 = vld [vmem:[#allocation3 + $0x6a] sm:$0xff]
        %v2310 = vld [vmem:[#allocation3 + $0x7a] sm:$0xff]
        %v2311 = vld [vmem:[#allocation3 + $0x82] sm:$0xff]
        %v2312 = vld [vmem:[#allocation3 + $0x92] sm:$0xff]
        %v2313 = vld [vmem:[#allocation3 + $0x9a] sm:$0xff]
        %v2314 = vld [vmem:[#allocation3 + $0xaa] sm:$0xff]
        %v2315 = vld [vmem:[#allocation3 + $0xb2] sm:$0xff]
        %v2316 = vld [vmem:[#allocation3 + $0xc2] sm:$0xff]
        %v2317 = vld [vmem:[#allocation3 + $0xca] sm:$0xff]
        %v2318 = vld [vmem:[#allocation3 + $0xda] sm:$0xff]
        %v2319 = vld [vmem:[#allocation3 + $0xe2] sm:$0xff]
        %v2320 = vld [vmem:[#allocation3 + $0xf2] sm:$0xff]
        %v2321 = vld [vmem:[#allocation3 + $0xfa] sm:$0xff]
        %v2322 = vld [vmem:[#allocation3 + $0x10a] sm:$0xff]
        %v2323 = vld [vmem:[#allocation3 + $0x112] sm:$0xff]
        %v2324 = vld [vmem:[#allocation3 + $0x122] sm:$0xff]
        %v2325 = vld [vmem:[#allocation3 + $0x12a] sm:$0xff]
        %v2326 = vld [vmem:[#allocation3 + $0x13a] sm:$0xff]
        %v2327 = vld [vmem:[#allocation3 + $0x142] sm:$0xff]
        %v2328 = vld [vmem:[#allocation3 + $0x152] sm:$0xff]
        %v2329 = vld [vmem:[#allocation3 + $0x15a] sm:$0xff]
        %v2330 = vld [vmem:[#allocation3 + $0x16a] sm:$0xff]
        %v2331 = vld [vmem:[#allocation3 + $0x172] sm:$0xff]
        %v2332 = vld [vmem:[%s2170] sm:$0xff]
        %v2333 = vld [vmem:[%s2170 + $0x8] sm:$0xff]
        %v2334 = vld [vmem:[%s2170 + $0x18] sm:$0xff]
        %v2335 = vld [vmem:[%s2170 + $0x20] sm:$0xff]
        %v2336 = vld [vmem:[%s2170 + $0x30] sm:$0xff]
        %v2337 = vld [vmem:[%s2170 + $0x38] sm:$0xff]
        %v2338 = vld [vmem:[%s2170 + $0x48] sm:$0xff]
        %v2339 = vld [vmem:[%s2170 + $0x50] sm:$0xff]
        %v2340 = vld [vmem:[%s2170 + $0x60] sm:$0xff]
        %v2341 = vld [vmem:[%s2170 + $0x68] sm:$0xff]
        %v2342 = vld [vmem:[%s2170 + $0x78] sm:$0xff]
        %v2343 = vld [vmem:[%s2170 + $0x80] sm:$0xff]
        %v2344 = vld [vmem:[%s2170 + $0x90] sm:$0xff]
        %v2345 = vld [vmem:[%s2170 + $0x98] sm:$0xff]
        %v2346 = vld [vmem:[%s2170 + $0xa8] sm:$0xff]
        %v2347 = vld [vmem:[%s2170 + $0xb0] sm:$0xff]
        %v2348 = vld [vmem:[%s2170 + $0xc0] sm:$0xff]
        %v2349 = vld [vmem:[%s2170 + $0xc8] sm:$0xff]
        %v2350 = vld [vmem:[%s2170 + $0xd8] sm:$0xff]
        %v2351 = vld [vmem:[%s2170 + $0xe0] sm:$0xff]
        %v2352 = vld [vmem:[%s2170 + $0xf0] sm:$0xff]
        %v2353 = vld [vmem:[%s2170 + $0xf8] sm:$0xff]
        %v2354 = vld [vmem:[%s2170 + $0x108] sm:$0xff]
        %v2355 = vld [vmem:[%s2170 + $0x110] sm:$0xff]
        %v2356 = vld [vmem:[%s2170 + $0x120] sm:$0xff]
        %v2357 = vld [vmem:[%s2170 + $0x128] sm:$0xff]
        %v2358 = vld [vmem:[%s2170 + $0x138] sm:$0xff]
        %v2359 = vld [vmem:[%s2170 + $0x140] sm:$0xff]
        %v2360 = vld [vmem:[%s2170 + $0x150] sm:$0xff]
        %v2361 = vld [vmem:[%s2170 + $0x158] sm:$0xff]
        %v2362 = vld [vmem:[%s2170 + $0x168] sm:$0xff]
        %v2363 = vld [vmem:[%s2170 + $0x170] sm:$0xff]
        %v2364 = vld [vmem:[%s2170 + $0x1] sm:$0xff]
        %v2365 = vld [vmem:[%s2170 + $0x9] sm:$0xff]
        %v2366 = vld [vmem:[%s2170 + $0x19] sm:$0xff]
        %v2367 = vld [vmem:[%s2170 + $0x21] sm:$0xff]
        %v2368 = vld [vmem:[%s2170 + $0x31] sm:$0xff]
        %v2369 = vld [vmem:[%s2170 + $0x39] sm:$0xff]
        %v2370 = vld [vmem:[%s2170 + $0x49] sm:$0xff]
        %v2371 = vld [vmem:[%s2170 + $0x51] sm:$0xff]
        %v2372 = vld [vmem:[%s2170 + $0x61] sm:$0xff]
        %v2373 = vld [vmem:[%s2170 + $0x69] sm:$0xff]
        %v2374 = vld [vmem:[%s2170 + $0x79] sm:$0xff]
        %v2375 = vld [vmem:[%s2170 + $0x81] sm:$0xff]
        %v2376 = vld [vmem:[%s2170 + $0x91] sm:$0xff]
        %v2377 = vld [vmem:[%s2170 + $0x99] sm:$0xff]
        %v2378 = vld [vmem:[%s2170 + $0xa9] sm:$0xff]
        %v2379 = vld [vmem:[%s2170 + $0xb1] sm:$0xff]
        %v2380 = vld [vmem:[%s2170 + $0xc1] sm:$0xff]
        %v2381 = vld [vmem:[%s2170 + $0xc9] sm:$0xff]
        %v2382 = vld [vmem:[%s2170 + $0xd9] sm:$0xff]
        %v2383 = vld [vmem:[%s2170 + $0xe1] sm:$0xff]
        %v2384 = vld [vmem:[%s2170 + $0xf1] sm:$0xff]
        %v2385 = vld [vmem:[%s2170 + $0xf9] sm:$0xff]
        %v2386 = vld [vmem:[%s2170 + $0x109] sm:$0xff]
        %v2387 = vld [vmem:[%s2170 + $0x111] sm:$0xff]
        %v2388 = vld [vmem:[%s2170 + $0x121] sm:$0xff]
        %v2389 = vld [vmem:[%s2170 + $0x129] sm:$0xff]
        %v2390 = vld [vmem:[%s2170 + $0x139] sm:$0xff]
        %v2391 = vld [vmem:[%s2170 + $0x141] sm:$0xff]
        %v2392 = vld [vmem:[%s2170 + $0x151] sm:$0xff]
        %v2393 = vld [vmem:[%s2170 + $0x159] sm:$0xff]
        %v2394 = vld [vmem:[%s2170 + $0x169] sm:$0xff]
        %v2395 = vld [vmem:[%s2170 + $0x171] sm:$0xff]
        %v2396 = vld [vmem:[%s2170 + $0x2] sm:$0xff]
        %v2397 = vld [vmem:[%s2170 + $0xa] sm:$0xff]
        %v2398 = vld [vmem:[%s2170 + $0x1a] sm:$0xff]
        %v2399 = vld [vmem:[%s2170 + $0x22] sm:$0xff]
        %v2400 = vld [vmem:[%s2170 + $0x32] sm:$0xff]
        %v2401 = vld [vmem:[%s2170 + $0x3a] sm:$0xff]
        %v2402 = vld [vmem:[%s2170 + $0x4a] sm:$0xff]
        %v2403 = vld [vmem:[%s2170 + $0x52] sm:$0xff]
        %v2404 = vld [vmem:[%s2170 + $0x62] sm:$0xff]
        %v2405 = vld [vmem:[%s2170 + $0x6a] sm:$0xff]
        %v2406 = vld [vmem:[%s2170 + $0x7a] sm:$0xff]
        %v2407 = vld [vmem:[%s2170 + $0x82] sm:$0xff]
        %v2408 = vld [vmem:[%s2170 + $0x92] sm:$0xff]
        %v2409 = vld [vmem:[%s2170 + $0x9a] sm:$0xff]
        %v2410 = vld [vmem:[%s2170 + $0xaa] sm:$0xff]
        %v2411 = vld [vmem:[%s2170 + $0xb2] sm:$0xff]
        %v2412 = vld [vmem:[%s2170 + $0xc2] sm:$0xff]
        %v2413 = vld [vmem:[%s2170 + $0xca] sm:$0xff]
        %v2414 = vld [vmem:[%s2170 + $0xda] sm:$0xff]
        %v2415 = vld [vmem:[%s2170 + $0xe2] sm:$0xff]
        %v2416 = vld [vmem:[%s2170 + $0xf2] sm:$0xff]
        %v2417 = vld [vmem:[%s2170 + $0xfa] sm:$0xff]
        %v2418 = vld [vmem:[%s2170 + $0x10a] sm:$0xff]
        %v2419 = vld [vmem:[%s2170 + $0x112] sm:$0xff]
        %v2420 = vld [vmem:[%s2170 + $0x122] sm:$0xff]
        %v2421 = vld [vmem:[%s2170 + $0x12a] sm:$0xff]
        %v2422 = vld [vmem:[%s2170 + $0x13a] sm:$0xff]
        %v2423 = vld [vmem:[%s2170 + $0x142] sm:$0xff]
        %v2424 = vld [vmem:[%s2170 + $0x152] sm:$0xff]
        %v2425 = vld [vmem:[%s2170 + $0x15a] sm:$0xff]
        %v2426 = vld [vmem:[%s2170 + $0x16a] sm:$0xff]
        %v2427 = vld [vmem:[%s2170 + $0x172] sm:$0xff]
        %s2428 = scalar_lea.vmem [#allocation3], 48
        %v2429 = vld [vmem:[%s2428] sm:$0xff]
        %v2430 = vld [vmem:[%s2428 + $0x8] sm:$0xff]
        %v2431 = vld [vmem:[%s2428 + $0x18] sm:$0xff]
        %v2432 = vld [vmem:[%s2428 + $0x20] sm:$0xff]
        %v2433 = vld [vmem:[%s2428 + $0x30] sm:$0xff]
        %v2434 = vld [vmem:[%s2428 + $0x38] sm:$0xff]
        %v2435 = vld [vmem:[%s2428 + $0x48] sm:$0xff]
        %v2436 = vld [vmem:[%s2428 + $0x50] sm:$0xff]
        %v2437 = vld [vmem:[%s2428 + $0x60] sm:$0xff]
        %v2438 = vld [vmem:[%s2428 + $0x68] sm:$0xff]
        %v2439 = vld [vmem:[%s2428 + $0x78] sm:$0xff]
        %v2440 = vld [vmem:[%s2428 + $0x80] sm:$0xff]
        %v2441 = vld [vmem:[%s2428 + $0x90] sm:$0xff]
        %v2442 = vld [vmem:[%s2428 + $0x98] sm:$0xff]
        %v2443 = vld [vmem:[%s2428 + $0xa8] sm:$0xff]
        %v2444 = vld [vmem:[%s2428 + $0xb0] sm:$0xff]
        %v2445 = vld [vmem:[%s2428 + $0xc0] sm:$0xff]
        %v2446 = vld [vmem:[%s2428 + $0xc8] sm:$0xff]
        %v2447 = vld [vmem:[%s2428 + $0xd8] sm:$0xff]
        %v2448 = vld [vmem:[%s2428 + $0xe0] sm:$0xff]
        %v2449 = vld [vmem:[%s2428 + $0xf0] sm:$0xff]
        %v2450 = vld [vmem:[%s2428 + $0xf8] sm:$0xff]
        %v2451 = vld [vmem:[%s2428 + $0x108] sm:$0xff]
        %v2452 = vld [vmem:[%s2428 + $0x110] sm:$0xff]
        %v2453 = vld [vmem:[%s2428 + $0x120] sm:$0xff]
        %v2454 = vld [vmem:[%s2428 + $0x128] sm:$0xff]
        %v2455 = vld [vmem:[%s2428 + $0x138] sm:$0xff]
        %v2456 = vld [vmem:[%s2428 + $0x140] sm:$0xff]
        %v2457 = vld [vmem:[%s2428 + $0x150] sm:$0xff]
        %v2458 = vld [vmem:[%s2428 + $0x158] sm:$0xff]
        %v2459 = vld [vmem:[%s2428 + $0x168] sm:$0xff]
        %v2460 = vld [vmem:[%s2428 + $0x170] sm:$0xff]
        %v2461 = vld [vmem:[%s2428 + $0x1] sm:$0xff]
        %v2462 = vld [vmem:[%s2428 + $0x9] sm:$0xff]
        %v2463 = vld [vmem:[%s2428 + $0x19] sm:$0xff]
        %v2464 = vld [vmem:[%s2428 + $0x21] sm:$0xff]
        %v2465 = vld [vmem:[%s2428 + $0x31] sm:$0xff]
        %v2466 = vld [vmem:[%s2428 + $0x39] sm:$0xff]
        %v2467 = vld [vmem:[%s2428 + $0x49] sm:$0xff]
        %v2468 = vld [vmem:[%s2428 + $0x51] sm:$0xff]
        %v2469 = vld [vmem:[%s2428 + $0x61] sm:$0xff]
        %v2470 = vld [vmem:[%s2428 + $0x69] sm:$0xff]
        %v2471 = vld [vmem:[%s2428 + $0x79] sm:$0xff]
        %v2472 = vld [vmem:[%s2428 + $0x81] sm:$0xff]
        %v2473 = vld [vmem:[%s2428 + $0x91] sm:$0xff]
        %v2474 = vld [vmem:[%s2428 + $0x99] sm:$0xff]
        %v2475 = vld [vmem:[%s2428 + $0xa9] sm:$0xff]
        %v2476 = vld [vmem:[%s2428 + $0xb1] sm:$0xff]
        %v2477 = vld [vmem:[%s2428 + $0xc1] sm:$0xff]
        %v2478 = vld [vmem:[%s2428 + $0xc9] sm:$0xff]
        %v2479 = vld [vmem:[%s2428 + $0xd9] sm:$0xff]
        %v2480 = vld [vmem:[%s2428 + $0xe1] sm:$0xff]
        %v2481 = vld [vmem:[%s2428 + $0xf1] sm:$0xff]
        %v2482 = vld [vmem:[%s2428 + $0xf9] sm:$0xff]
        %v2483 = vld [vmem:[%s2428 + $0x109] sm:$0xff]
        %v2484 = vld [vmem:[%s2428 + $0x111] sm:$0xff]
        %v2485 = vld [vmem:[%s2428 + $0x121] sm:$0xff]
        %v2486 = vld [vmem:[%s2428 + $0x129] sm:$0xff]
        %v2487 = vld [vmem:[%s2428 + $0x139] sm:$0xff]
        %v2488 = vld [vmem:[%s2428 + $0x141] sm:$0xff]
        %v2489 = vld [vmem:[%s2428 + $0x151] sm:$0xff]
        %v2490 = vld [vmem:[%s2428 + $0x159] sm:$0xff]
        %v2491 = vld [vmem:[%s2428 + $0x169] sm:$0xff]
        %v2492 = vld [vmem:[%s2428 + $0x171] sm:$0xff]
        %v2493 = vld [vmem:[%s2428 + $0x2] sm:$0xff]
        %v2494 = vld [vmem:[%s2428 + $0xa] sm:$0xff]
        %v2495 = vld [vmem:[%s2428 + $0x1a] sm:$0xff]
        %v2496 = vld [vmem:[%s2428 + $0x22] sm:$0xff]
        %v2497 = vld [vmem:[%s2428 + $0x32] sm:$0xff]
        %v2498 = vld [vmem:[%s2428 + $0x3a] sm:$0xff]
        %v2499 = vld [vmem:[%s2428 + $0x4a] sm:$0xff]
        %v2500 = vld [vmem:[%s2428 + $0x52] sm:$0xff]
        %v2501 = vld [vmem:[%s2428 + $0x62] sm:$0xff]
        %v2502 = vld [vmem:[%s2428 + $0x6a] sm:$0xff]
        %v2503 = vld [vmem:[%s2428 + $0x7a] sm:$0xff]
        %v2504 = vld [vmem:[%s2428 + $0x82] sm:$0xff]
        %v2505 = vld [vmem:[%s2428 + $0x92] sm:$0xff]
        %v2506 = vld [vmem:[%s2428 + $0x9a] sm:$0xff]
        %v2507 = vld [vmem:[%s2428 + $0xaa] sm:$0xff]
        %v2508 = vld [vmem:[%s2428 + $0xb2] sm:$0xff]
        %v2509 = vld [vmem:[%s2428 + $0xc2] sm:$0xff]
        %v2510 = vld [vmem:[%s2428 + $0xca] sm:$0xff]
        %v2511 = vld [vmem:[%s2428 + $0xda] sm:$0xff]
        %v2512 = vld [vmem:[%s2428 + $0xe2] sm:$0xff]
        %v2513 = vld [vmem:[%s2428 + $0xf2] sm:$0xff]
        %v2514 = vld [vmem:[%s2428 + $0xfa] sm:$0xff]
        %v2515 = vld [vmem:[%s2428 + $0x10a] sm:$0xff]
        %v2516 = vld [vmem:[%s2428 + $0x112] sm:$0xff]
        %v2517 = vld [vmem:[%s2428 + $0x122] sm:$0xff]
        %v2518 = vld [vmem:[%s2428 + $0x12a] sm:$0xff]
        %v2519 = vld [vmem:[%s2428 + $0x13a] sm:$0xff]
        %v2520 = vld [vmem:[%s2428 + $0x142] sm:$0xff]
        %v2521 = vld [vmem:[%s2428 + $0x152] sm:$0xff]
        %v2522 = vld [vmem:[%s2428 + $0x15a] sm:$0xff]
        %v2523 = vld [vmem:[%s2428 + $0x16a] sm:$0xff]
        %v2524 = vld [vmem:[%s2428 + $0x172] sm:$0xff]
        %2557 = vrot.lane.b32.xlu0 %v2268, 8
        %v2558 = vpop.permute.xlu0 %2557
        %2559 = vrot.lane.b32.xlu0 %v2269, 8
        %v2560 = vpop.permute.xlu0 %2559
        %2561 = vrot.lane.b32.xlu0 %v2270, 8
        %v2562 = vpop.permute.xlu0 %2561
        %2563 = vrot.lane.b32.xlu0 %v2271, 8
        %v2564 = vpop.permute.xlu0 %2563
        %2565 = vrot.lane.b32.xlu0 %v2272, 8
        %v2566 = vpop.permute.xlu0 %2565
        %2567 = vrot.lane.b32.xlu0 %v2273, 8
        %v2568 = vpop.permute.xlu0 %2567
        %2569 = vrot.lane.b32.xlu0 %v2274, 8
        %v2570 = vpop.permute.xlu0 %2569
        %2571 = vrot.lane.b32.xlu0 %v2275, 8
        %v2572 = vpop.permute.xlu0 %2571
        %2573 = vrot.lane.b32.xlu0 %v2276, 8
        %v2574 = vpop.permute.xlu0 %2573
        %2575 = vrot.lane.b32.xlu0 %v2277, 8
        %v2576 = vpop.permute.xlu0 %2575
        %2577 = vrot.lane.b32.xlu0 %v2278, 8
        %v2578 = vpop.permute.xlu0 %2577
        %2579 = vrot.lane.b32.xlu0 %v2279, 8
        %v2580 = vpop.permute.xlu0 %2579
        %2581 = vrot.lane.b32.xlu0 %v2280, 8
        %v2582 = vpop.permute.xlu0 %2581
        %2583 = vrot.lane.b32.xlu0 %v2281, 8
        %v2584 = vpop.permute.xlu0 %2583
        %2585 = vrot.lane.b32.xlu0 %v2282, 8
        %v2586 = vpop.permute.xlu0 %2585
        %2587 = vrot.lane.b32.xlu0 %v2283, 8
        %v2588 = vpop.permute.xlu0 %2587
        %2589 = vrot.lane.b32.xlu0 %v2284, 8
        %v2590 = vpop.permute.xlu0 %2589
        %2591 = vrot.lane.b32.xlu0 %v2285, 8
        %v2592 = vpop.permute.xlu0 %2591
        %2593 = vrot.lane.b32.xlu0 %v2286, 8
        %v2594 = vpop.permute.xlu0 %2593
        %2595 = vrot.lane.b32.xlu0 %v2287, 8
        %v2596 = vpop.permute.xlu0 %2595
        %2597 = vrot.lane.b32.xlu0 %v2288, 8
        %v2598 = vpop.permute.xlu0 %2597
        %2599 = vrot.lane.b32.xlu0 %v2289, 8
        %v2600 = vpop.permute.xlu0 %2599
        %2601 = vrot.lane.b32.xlu0 %v2290, 8
        %v2602 = vpop.permute.xlu0 %2601
        %2603 = vrot.lane.b32.xlu0 %v2291, 8
        %v2604 = vpop.permute.xlu0 %2603
        %2605 = vrot.lane.b32.xlu0 %v2292, 8
        %v2606 = vpop.permute.xlu0 %2605
        %2607 = vrot.lane.b32.xlu0 %v2293, 8
        %v2608 = vpop.permute.xlu0 %2607
        %2609 = vrot.lane.b32.xlu0 %v2294, 8
        %v2610 = vpop.permute.xlu0 %2609
        %2611 = vrot.lane.b32.xlu0 %v2295, 8
        %v2612 = vpop.permute.xlu0 %2611
        %2613 = vrot.lane.b32.xlu0 %v2296, 8
        %v2614 = vpop.permute.xlu0 %2613
        %2615 = vrot.lane.b32.xlu0 %v2297, 8
        %v2616 = vpop.permute.xlu0 %2615
        %2617 = vrot.lane.b32.xlu0 %v2298, 8
        %v2618 = vpop.permute.xlu0 %2617
        %2619 = vrot.lane.b32.xlu0 %v2299, 8
        %v2620 = vpop.permute.xlu0 %2619
        %2685 = vrot.lane.b32.xlu0 %v2300, 16
        %v2686 = vpop.permute.xlu0 %2685
        %2687 = vrot.lane.b32.xlu0 %v2301, 16
        %v2688 = vpop.permute.xlu0 %2687
        %2689 = vrot.lane.b32.xlu0 %v2302, 16
        %v2690 = vpop.permute.xlu0 %2689
        %2691 = vrot.lane.b32.xlu0 %v2303, 16
        %v2692 = vpop.permute.xlu0 %2691
        %2693 = vrot.lane.b32.xlu0 %v2304, 16
        %v2694 = vpop.permute.xlu0 %2693
        %2695 = vrot.lane.b32.xlu0 %v2305, 16
        %v2696 = vpop.permute.xlu0 %2695
        %2697 = vrot.lane.b32.xlu0 %v2306, 16
        %v2698 = vpop.permute.xlu0 %2697
        %2699 = vrot.lane.b32.xlu0 %v2307, 16
        %v2700 = vpop.permute.xlu0 %2699
        %2701 = vrot.lane.b32.xlu0 %v2308, 16
        %v2702 = vpop.permute.xlu0 %2701
        %2703 = vrot.lane.b32.xlu0 %v2309, 16
        %v2704 = vpop.permute.xlu0 %2703
        %2705 = vrot.lane.b32.xlu0 %v2310, 16
        %v2706 = vpop.permute.xlu0 %2705
        %2707 = vrot.lane.b32.xlu0 %v2311, 16
        %v2708 = vpop.permute.xlu0 %2707
        %2709 = vrot.lane.b32.xlu0 %v2312, 16
        %v2710 = vpop.permute.xlu0 %2709
        %2711 = vrot.lane.b32.xlu0 %v2313, 16
        %v2712 = vpop.permute.xlu0 %2711
        %2713 = vrot.lane.b32.xlu0 %v2314, 16
        %v2714 = vpop.permute.xlu0 %2713
        %2715 = vrot.lane.b32.xlu0 %v2315, 16
        %v2716 = vpop.permute.xlu0 %2715
        %2717 = vrot.lane.b32.xlu0 %v2316, 16
        %v2718 = vpop.permute.xlu0 %2717
        %2719 = vrot.lane.b32.xlu0 %v2317, 16
        %v2720 = vpop.permute.xlu0 %2719
        %2721 = vrot.lane.b32.xlu0 %v2318, 16
        %v2722 = vpop.permute.xlu0 %2721
        %2723 = vrot.lane.b32.xlu0 %v2319, 16
        %v2724 = vpop.permute.xlu0 %2723
        %2725 = vrot.lane.b32.xlu0 %v2320, 16
        %v2726 = vpop.permute.xlu0 %2725
        %2727 = vrot.lane.b32.xlu0 %v2321, 16
        %v2728 = vpop.permute.xlu0 %2727
        %2729 = vrot.lane.b32.xlu0 %v2322, 16
        %v2730 = vpop.permute.xlu0 %2729
        %2731 = vrot.lane.b32.xlu0 %v2323, 16
        %v2732 = vpop.permute.xlu0 %2731
        %2733 = vrot.lane.b32.xlu0 %v2324, 16
        %v2734 = vpop.permute.xlu0 %2733
        %2735 = vrot.lane.b32.xlu0 %v2325, 16
        %v2736 = vpop.permute.xlu0 %2735
        %2737 = vrot.lane.b32.xlu0 %v2326, 16
        %v2738 = vpop.permute.xlu0 %2737
        %2739 = vrot.lane.b32.xlu0 %v2327, 16
        %v2740 = vpop.permute.xlu0 %2739
        %2741 = vrot.lane.b32.xlu0 %v2328, 16
        %v2742 = vpop.permute.xlu0 %2741
        %2743 = vrot.lane.b32.xlu0 %v2329, 16
        %v2744 = vpop.permute.xlu0 %2743
        %2745 = vrot.lane.b32.xlu0 %v2330, 16
        %v2746 = vpop.permute.xlu0 %2745
        %2747 = vrot.lane.b32.xlu0 %v2331, 16
        %v2748 = vpop.permute.xlu0 %2747
        %2813 = vrot.lane.b32.xlu0 %v2332, 24
        %v2814 = vpop.permute.xlu0 %2813
        %2815 = vrot.lane.b32.xlu0 %v2333, 24
        %v2816 = vpop.permute.xlu0 %2815
        %2817 = vrot.lane.b32.xlu0 %v2334, 24
        %v2818 = vpop.permute.xlu0 %2817
        %2819 = vrot.lane.b32.xlu0 %v2335, 24
        %v2820 = vpop.permute.xlu0 %2819
        %2821 = vrot.lane.b32.xlu0 %v2336, 24
        %v2822 = vpop.permute.xlu0 %2821
        %2823 = vrot.lane.b32.xlu0 %v2337, 24
        %v2824 = vpop.permute.xlu0 %2823
        %2825 = vrot.lane.b32.xlu0 %v2338, 24
        %v2826 = vpop.permute.xlu0 %2825
        %2827 = vrot.lane.b32.xlu0 %v2339, 24
        %v2828 = vpop.permute.xlu0 %2827
        %2829 = vrot.lane.b32.xlu0 %v2340, 24
        %v2830 = vpop.permute.xlu0 %2829
        %2831 = vrot.lane.b32.xlu0 %v2341, 24
        %v2832 = vpop.permute.xlu0 %2831
        %2833 = vrot.lane.b32.xlu0 %v2342, 24
        %v2834 = vpop.permute.xlu0 %2833
        %2835 = vrot.lane.b32.xlu0 %v2343, 24
        %v2836 = vpop.permute.xlu0 %2835
        %2837 = vrot.lane.b32.xlu0 %v2344, 24
        %v2838 = vpop.permute.xlu0 %2837
        %2839 = vrot.lane.b32.xlu0 %v2345, 24
        %v2840 = vpop.permute.xlu0 %2839
        %2841 = vrot.lane.b32.xlu0 %v2346, 24
        %v2842 = vpop.permute.xlu0 %2841
        %2843 = vrot.lane.b32.xlu0 %v2347, 24
        %v2844 = vpop.permute.xlu0 %2843
        %2845 = vrot.lane.b32.xlu0 %v2348, 24
        %v2846 = vpop.permute.xlu0 %2845
        %2847 = vrot.lane.b32.xlu0 %v2349, 24
        %v2848 = vpop.permute.xlu0 %2847
        %2849 = vrot.lane.b32.xlu0 %v2350, 24
        %v2850 = vpop.permute.xlu0 %2849
        %2851 = vrot.lane.b32.xlu0 %v2351, 24
        %v2852 = vpop.permute.xlu0 %2851
        %2853 = vrot.lane.b32.xlu0 %v2352, 24
        %v2854 = vpop.permute.xlu0 %2853
        %2855 = vrot.lane.b32.xlu0 %v2353, 24
        %v2856 = vpop.permute.xlu0 %2855
        %2857 = vrot.lane.b32.xlu0 %v2354, 24
        %v2858 = vpop.permute.xlu0 %2857
        %2859 = vrot.lane.b32.xlu0 %v2355, 24
        %v2860 = vpop.permute.xlu0 %2859
        %2861 = vrot.lane.b32.xlu0 %v2356, 24
        %v2862 = vpop.permute.xlu0 %2861
        %2863 = vrot.lane.b32.xlu0 %v2357, 24
        %v2864 = vpop.permute.xlu0 %2863
        %2865 = vrot.lane.b32.xlu0 %v2358, 24
        %v2866 = vpop.permute.xlu0 %2865
        %2867 = vrot.lane.b32.xlu0 %v2359, 24
        %v2868 = vpop.permute.xlu0 %2867
        %2869 = vrot.lane.b32.xlu0 %v2360, 24
        %v2870 = vpop.permute.xlu0 %2869
        %2871 = vrot.lane.b32.xlu0 %v2361, 24
        %v2872 = vpop.permute.xlu0 %2871
        %2873 = vrot.lane.b32.xlu0 %v2362, 24
        %v2874 = vpop.permute.xlu0 %2873
        %2875 = vrot.lane.b32.xlu0 %v2363, 24
        %v2876 = vpop.permute.xlu0 %2875
        %2941 = vrot.lane.b32.xlu0 %v2364, 32
        %v2942 = vpop.permute.xlu0 %2941
        %2943 = vrot.lane.b32.xlu0 %v2365, 32
        %v2944 = vpop.permute.xlu0 %2943
        %2945 = vrot.lane.b32.xlu0 %v2366, 32
        %v2946 = vpop.permute.xlu0 %2945
        %2947 = vrot.lane.b32.xlu0 %v2367, 32
        %v2948 = vpop.permute.xlu0 %2947
        %2949 = vrot.lane.b32.xlu0 %v2368, 32
        %v2950 = vpop.permute.xlu0 %2949
        %2951 = vrot.lane.b32.xlu0 %v2369, 32
        %v2952 = vpop.permute.xlu0 %2951
        %2953 = vrot.lane.b32.xlu0 %v2370, 32
        %v2954 = vpop.permute.xlu0 %2953
        %2955 = vrot.lane.b32.xlu0 %v2371, 32
        %v2956 = vpop.permute.xlu0 %2955
        %2957 = vrot.lane.b32.xlu0 %v2372, 32
        %v2958 = vpop.permute.xlu0 %2957
        %2959 = vrot.lane.b32.xlu0 %v2373, 32
        %v2960 = vpop.permute.xlu0 %2959
        %2961 = vrot.lane.b32.xlu0 %v2374, 32
        %v2962 = vpop.permute.xlu0 %2961
        %2963 = vrot.lane.b32.xlu0 %v2375, 32
        %v2964 = vpop.permute.xlu0 %2963
        %2965 = vrot.lane.b32.xlu0 %v2376, 32
        %v2966 = vpop.permute.xlu0 %2965
        %2967 = vrot.lane.b32.xlu0 %v2377, 32
        %v2968 = vpop.permute.xlu0 %2967
        %2969 = vrot.lane.b32.xlu0 %v2378, 32
        %v2970 = vpop.permute.xlu0 %2969
        %2971 = vrot.lane.b32.xlu0 %v2379, 32
        %v2972 = vpop.permute.xlu0 %2971
        %2973 = vrot.lane.b32.xlu0 %v2380, 32
        %v2974 = vpop.permute.xlu0 %2973
        %2975 = vrot.lane.b32.xlu0 %v2381, 32
        %v2976 = vpop.permute.xlu0 %2975
        %2977 = vrot.lane.b32.xlu0 %v2382, 32
        %v2978 = vpop.permute.xlu0 %2977
        %2979 = vrot.lane.b32.xlu0 %v2383, 32
        %v2980 = vpop.permute.xlu0 %2979
        %2981 = vrot.lane.b32.xlu0 %v2384, 32
        %v2982 = vpop.permute.xlu0 %2981
        %2983 = vrot.lane.b32.xlu0 %v2385, 32
        %v2984 = vpop.permute.xlu0 %2983
        %2985 = vrot.lane.b32.xlu0 %v2386, 32
        %v2986 = vpop.permute.xlu0 %2985
        %2987 = vrot.lane.b32.xlu0 %v2387, 32
        %v2988 = vpop.permute.xlu0 %2987
        %2989 = vrot.lane.b32.xlu0 %v2388, 32
        %v2990 = vpop.permute.xlu0 %2989
        %2991 = vrot.lane.b32.xlu0 %v2389, 32
        %v2992 = vpop.permute.xlu0 %2991
        %2993 = vrot.lane.b32.xlu0 %v2390, 32
        %v2994 = vpop.permute.xlu0 %2993
        %2995 = vrot.lane.b32.xlu0 %v2391, 32
        %v2996 = vpop.permute.xlu0 %2995
        %2997 = vrot.lane.b32.xlu0 %v2392, 32
        %v2998 = vpop.permute.xlu0 %2997
        %2999 = vrot.lane.b32.xlu0 %v2393, 32
        %v3000 = vpop.permute.xlu0 %2999
        %3001 = vrot.lane.b32.xlu0 %v2394, 32
        %v3002 = vpop.permute.xlu0 %3001
        %3003 = vrot.lane.b32.xlu0 %v2395, 32
        %v3004 = vpop.permute.xlu0 %3003
        %3069 = vrot.lane.b32.xlu0 %v2396, 40
        %v3070 = vpop.permute.xlu0 %3069
        %3071 = vrot.lane.b32.xlu0 %v2397, 40
        %v3072 = vpop.permute.xlu0 %3071
        %3073 = vrot.lane.b32.xlu0 %v2398, 40
        %v3074 = vpop.permute.xlu0 %3073
        %3075 = vrot.lane.b32.xlu0 %v2399, 40
        %v3076 = vpop.permute.xlu0 %3075
        %3077 = vrot.lane.b32.xlu0 %v2400, 40
        %v3078 = vpop.permute.xlu0 %3077
        %3079 = vrot.lane.b32.xlu0 %v2401, 40
        %v3080 = vpop.permute.xlu0 %3079
        %3081 = vrot.lane.b32.xlu0 %v2402, 40
        %v3082 = vpop.permute.xlu0 %3081
        %3083 = vrot.lane.b32.xlu0 %v2403, 40
        %v3084 = vpop.permute.xlu0 %3083
        %3085 = vrot.lane.b32.xlu0 %v2404, 40
        %v3086 = vpop.permute.xlu0 %3085
        %3087 = vrot.lane.b32.xlu0 %v2405, 40
        %v3088 = vpop.permute.xlu0 %3087
        %3089 = vrot.lane.b32.xlu0 %v2406, 40
        %v3090 = vpop.permute.xlu0 %3089
        %3091 = vrot.lane.b32.xlu0 %v2407, 40
        %v3092 = vpop.permute.xlu0 %3091
        %3093 = vrot.lane.b32.xlu0 %v2408, 40
        %v3094 = vpop.permute.xlu0 %3093
        %3095 = vrot.lane.b32.xlu0 %v2409, 40
        %v3096 = vpop.permute.xlu0 %3095
        %3097 = vrot.lane.b32.xlu0 %v2410, 40
        %v3098 = vpop.permute.xlu0 %3097
        %3099 = vrot.lane.b32.xlu0 %v2411, 40
        %v3100 = vpop.permute.xlu0 %3099
        %3101 = vrot.lane.b32.xlu0 %v2412, 40
        %v3102 = vpop.permute.xlu0 %3101
        %3103 = vrot.lane.b32.xlu0 %v2413, 40
        %v3104 = vpop.permute.xlu0 %3103
        %3105 = vrot.lane.b32.xlu0 %v2414, 40
        %v3106 = vpop.permute.xlu0 %3105
        %3107 = vrot.lane.b32.xlu0 %v2415, 40
        %v3108 = vpop.permute.xlu0 %3107
        %3109 = vrot.lane.b32.xlu0 %v2416, 40
        %v3110 = vpop.permute.xlu0 %3109
        %3111 = vrot.lane.b32.xlu0 %v2417, 40
        %v3112 = vpop.permute.xlu0 %3111
        %3113 = vrot.lane.b32.xlu0 %v2418, 40
        %v3114 = vpop.permute.xlu0 %3113
        %3115 = vrot.lane.b32.xlu0 %v2419, 40
        %v3116 = vpop.permute.xlu0 %3115
        %3117 = vrot.lane.b32.xlu0 %v2420, 40
        %v3118 = vpop.permute.xlu0 %3117
        %3119 = vrot.lane.b32.xlu0 %v2421, 40
        %v3120 = vpop.permute.xlu0 %3119
        %3121 = vrot.lane.b32.xlu0 %v2422, 40
        %v3122 = vpop.permute.xlu0 %3121
        %3123 = vrot.lane.b32.xlu0 %v2423, 40
        %v3124 = vpop.permute.xlu0 %3123
        %3125 = vrot.lane.b32.xlu0 %v2424, 40
        %v3126 = vpop.permute.xlu0 %3125
        %3127 = vrot.lane.b32.xlu0 %v2425, 40
        %v3128 = vpop.permute.xlu0 %3127
        %3129 = vrot.lane.b32.xlu0 %v2426, 40
        %v3130 = vpop.permute.xlu0 %3129
        %3131 = vrot.lane.b32.xlu0 %v2427, 40
        %v3132 = vpop.permute.xlu0 %3131
        %3197 = vrot.lane.b32.xlu0 %v2429, 48
        %v3198 = vpop.permute.xlu0 %3197
        %3199 = vrot.lane.b32.xlu0 %v2430, 48
        %v3200 = vpop.permute.xlu0 %3199
        %3201 = vrot.lane.b32.xlu0 %v2431, 48
        %v3202 = vpop.permute.xlu0 %3201
        %3203 = vrot.lane.b32.xlu0 %v2432, 48
        %v3204 = vpop.permute.xlu0 %3203
        %3205 = vrot.lane.b32.xlu0 %v2433, 48
        %v3206 = vpop.permute.xlu0 %3205
        %3207 = vrot.lane.b32.xlu0 %v2434, 48
        %v3208 = vpop.permute.xlu0 %3207
        %3209 = vrot.lane.b32.xlu0 %v2435, 48
        %v3210 = vpop.permute.xlu0 %3209
        %3211 = vrot.lane.b32.xlu0 %v2436, 48
        %v3212 = vpop.permute.xlu0 %3211
        %3213 = vrot.lane.b32.xlu0 %v2437, 48
        %v3214 = vpop.permute.xlu0 %3213
        %3215 = vrot.lane.b32.xlu0 %v2438, 48
        %v3216 = vpop.permute.xlu0 %3215
        %3217 = vrot.lane.b32.xlu0 %v2439, 48
        %v3218 = vpop.permute.xlu0 %3217
        %3219 = vrot.lane.b32.xlu0 %v2440, 48
        %v3220 = vpop.permute.xlu0 %3219
        %3221 = vrot.lane.b32.xlu0 %v2441, 48
        %v3222 = vpop.permute.xlu0 %3221
        %3223 = vrot.lane.b32.xlu0 %v2442, 48
        %v3224 = vpop.permute.xlu0 %3223
        %3225 = vrot.lane.b32.xlu0 %v2443, 48
        %v3226 = vpop.permute.xlu0 %3225
        %3227 = vrot.lane.b32.xlu0 %v2444, 48
        %v3228 = vpop.permute.xlu0 %3227
        %3229 = vrot.lane.b32.xlu0 %v2445, 48
        %v3230 = vpop.permute.xlu0 %3229
        %3231 = vrot.lane.b32.xlu0 %v2446, 48
        %v3232 = vpop.permute.xlu0 %3231
        %3233 = vrot.lane.b32.xlu0 %v2447, 48
        %v3234 = vpop.permute.xlu0 %3233
        %3235 = vrot.lane.b32.xlu0 %v2448, 48
        %v3236 = vpop.permute.xlu0 %3235
        %3237 = vrot.lane.b32.xlu0 %v2449, 48
        %v3238 = vpop.permute.xlu0 %3237
        %3239 = vrot.lane.b32.xlu0 %v2450, 48
        %v3240 = vpop.permute.xlu0 %3239
        %3241 = vrot.lane.b32.xlu0 %v2451, 48
        %v3242 = vpop.permute.xlu0 %3241
        %3243 = vrot.lane.b32.xlu0 %v2452, 48
        %v3244 = vpop.permute.xlu0 %3243
        %3245 = vrot.lane.b32.xlu0 %v2453, 48
        %v3246 = vpop.permute.xlu0 %3245
        %3247 = vrot.lane.b32.xlu0 %v2454, 48
        %v3248 = vpop.permute.xlu0 %3247
        %3249 = vrot.lane.b32.xlu0 %v2455, 48
        %v3250 = vpop.permute.xlu0 %3249
        %3251 = vrot.lane.b32.xlu0 %v2456, 48
        %v3252 = vpop.permute.xlu0 %3251
        %3253 = vrot.lane.b32.xlu0 %v2457, 48
        %v3254 = vpop.permute.xlu0 %3253
        %3255 = vrot.lane.b32.xlu0 %v2458, 48
        %v3256 = vpop.permute.xlu0 %3255
        %3257 = vrot.lane.b32.xlu0 %v2459, 48
        %v3258 = vpop.permute.xlu0 %3257
        %3259 = vrot.lane.b32.xlu0 %v2460, 48
        %v3260 = vpop.permute.xlu0 %3259
        %3325 = vrot.lane.b32.xlu0 %v2461, 56
        %v3326 = vpop.permute.xlu0 %3325
        %3327 = vrot.lane.b32.xlu0 %v2462, 56
        %v3328 = vpop.permute.xlu0 %3327
        %3329 = vrot.lane.b32.xlu0 %v2463, 56
        %v3330 = vpop.permute.xlu0 %3329
        %3331 = vrot.lane.b32.xlu0 %v2464, 56
        %v3332 = vpop.permute.xlu0 %3331
        %3333 = vrot.lane.b32.xlu0 %v2465, 56
        %v3334 = vpop.permute.xlu0 %3333
        %3335 = vrot.lane.b32.xlu0 %v2466, 56
        %v3336 = vpop.permute.xlu0 %3335
        %3337 = vrot.lane.b32.xlu0 %v2467, 56
        %v3338 = vpop.permute.xlu0 %3337
        %3339 = vrot.lane.b32.xlu0 %v2468, 56
        %v3340 = vpop.permute.xlu0 %3339
        %3341 = vrot.lane.b32.xlu0 %v2469, 56
        %v3342 = vpop.permute.xlu0 %3341
        %3343 = vrot.lane.b32.xlu0 %v2470, 56
        %v3344 = vpop.permute.xlu0 %3343
        %3345 = vrot.lane.b32.xlu0 %v2471, 56
        %v3346 = vpop.permute.xlu0 %3345
        %3347 = vrot.lane.b32.xlu0 %v2472, 56
        %v3348 = vpop.permute.xlu0 %3347
        %3349 = vrot.lane.b32.xlu0 %v2473, 56
        %v3350 = vpop.permute.xlu0 %3349
        %3351 = vrot.lane.b32.xlu0 %v2474, 56
        %v3352 = vpop.permute.xlu0 %3351
        %3353 = vrot.lane.b32.xlu0 %v2475, 56
        %v3354 = vpop.permute.xlu0 %3353
        %3355 = vrot.lane.b32.xlu0 %v2476, 56
        %v3356 = vpop.permute.xlu0 %3355
        %3357 = vrot.lane.b32.xlu0 %v2477, 56
        %v3358 = vpop.permute.xlu0 %3357
        %3359 = vrot.lane.b32.xlu0 %v2478, 56
        %v3360 = vpop.permute.xlu0 %3359
        %3361 = vrot.lane.b32.xlu0 %v2479, 56
        %v3362 = vpop.permute.xlu0 %3361
        %3363 = vrot.lane.b32.xlu0 %v2480, 56
        %v3364 = vpop.permute.xlu0 %3363
        %3365 = vrot.lane.b32.xlu0 %v2481, 56
        %v3366 = vpop.permute.xlu0 %3365
        %3367 = vrot.lane.b32.xlu0 %v2482, 56
        %v3368 = vpop.permute.xlu0 %3367
        %3369 = vrot.lane.b32.xlu0 %v2483, 56
        %v3370 = vpop.permute.xlu0 %3369
        %3371 = vrot.lane.b32.xlu0 %v2484, 56
        %v3372 = vpop.permute.xlu0 %3371
        %3373 = vrot.lane.b32.xlu0 %v2485, 56
        %v3374 = vpop.permute.xlu0 %3373
        %3375 = vrot.lane.b32.xlu0 %v2486, 56
        %v3376 = vpop.permute.xlu0 %3375
        %3377 = vrot.lane.b32.xlu0 %v2487, 56
        %v3378 = vpop.permute.xlu0 %3377
        %3379 = vrot.lane.b32.xlu0 %v2488, 56
        %v3380 = vpop.permute.xlu0 %3379
        %3381 = vrot.lane.b32.xlu0 %v2489, 56
        %v3382 = vpop.permute.xlu0 %3381
        %3383 = vrot.lane.b32.xlu0 %v2490, 56
        %v3384 = vpop.permute.xlu0 %3383
        %3385 = vrot.lane.b32.xlu0 %v2491, 56
        %v3386 = vpop.permute.xlu0 %3385
        %3387 = vrot.lane.b32.xlu0 %v2492, 56
        %v3388 = vpop.permute.xlu0 %3387
        %3453 = vrot.lane.b32.xlu0 %v2493, 64
        %v3454 = vpop.permute.xlu0 %3453
        %3455 = vrot.lane.b32.xlu0 %v2494, 64
        %v3456 = vpop.permute.xlu0 %3455
        %3457 = vrot.lane.b32.xlu0 %v2495, 64
        %v3458 = vpop.permute.xlu0 %3457
        %3459 = vrot.lane.b32.xlu0 %v2496, 64
        %v3460 = vpop.permute.xlu0 %3459
        %3461 = vrot.lane.b32.xlu0 %v2497, 64
        %v3462 = vpop.permute.xlu0 %3461
        %3463 = vrot.lane.b32.xlu0 %v2498, 64
        %v3464 = vpop.permute.xlu0 %3463
        %3465 = vrot.lane.b32.xlu0 %v2499, 64
        %v3466 = vpop.permute.xlu0 %3465
        %3467 = vrot.lane.b32.xlu0 %v2500, 64
        %v3468 = vpop.permute.xlu0 %3467
        %3469 = vrot.lane.b32.xlu0 %v2501, 64
        %v3470 = vpop.permute.xlu0 %3469
        %3471 = vrot.lane.b32.xlu0 %v2502, 64
        %v3472 = vpop.permute.xlu0 %3471
        %3473 = vrot.lane.b32.xlu0 %v2503, 64
        %v3474 = vpop.permute.xlu0 %3473
        %3475 = vrot.lane.b32.xlu0 %v2504, 64
        %v3476 = vpop.permute.xlu0 %3475
        %3477 = vrot.lane.b32.xlu0 %v2505, 64
        %v3478 = vpop.permute.xlu0 %3477
        %3479 = vrot.lane.b32.xlu0 %v2506, 64
        %v3480 = vpop.permute.xlu0 %3479
        %3481 = vrot.lane.b32.xlu0 %v2507, 64
        %v3482 = vpop.permute.xlu0 %3481
        %3483 = vrot.lane.b32.xlu0 %v2508, 64
        %v3484 = vpop.permute.xlu0 %3483
        %3485 = vrot.lane.b32.xlu0 %v2509, 64
        %v3486 = vpop.permute.xlu0 %3485
        %3487 = vrot.lane.b32.xlu0 %v2510, 64
        %v3488 = vpop.permute.xlu0 %3487
        %3489 = vrot.lane.b32.xlu0 %v2511, 64
        %v3490 = vpop.permute.xlu0 %3489
        %3491 = vrot.lane.b32.xlu0 %v2512, 64
        %v3492 = vpop.permute.xlu0 %3491
        %3493 = vrot.lane.b32.xlu0 %v2513, 64
        %v3494 = vpop.permute.xlu0 %3493
        %3495 = vrot.lane.b32.xlu0 %v2514, 64
        %v3496 = vpop.permute.xlu0 %3495
        %3497 = vrot.lane.b32.xlu0 %v2515, 64
        %v3498 = vpop.permute.xlu0 %3497
        %3499 = vrot.lane.b32.xlu0 %v2516, 64
        %v3500 = vpop.permute.xlu0 %3499
        %3501 = vrot.lane.b32.xlu0 %v2517, 64
        %v3502 = vpop.permute.xlu0 %3501
        %3503 = vrot.lane.b32.xlu0 %v2518, 64
        %v3504 = vpop.permute.xlu0 %3503
        %3505 = vrot.lane.b32.xlu0 %v2519, 64
        %v3506 = vpop.permute.xlu0 %3505
        %3507 = vrot.lane.b32.xlu0 %v2520, 64
        %v3508 = vpop.permute.xlu0 %3507
        %3509 = vrot.lane.b32.xlu0 %v2521, 64
        %v3510 = vpop.permute.xlu0 %3509
        %3511 = vrot.lane.b32.xlu0 %v2522, 64
        %v3512 = vpop.permute.xlu0 %3511
        %3513 = vrot.lane.b32.xlu0 %v2523, 64
        %v3514 = vpop.permute.xlu0 %3513
        %3515 = vrot.lane.b32.xlu0 %v2524, 64
        %v3516 = vpop.permute.xlu0 %3515
        %v3549 = vsel %vm1680, %v2236, %v2558
        %v3550 = vsel %vm1680, %v2237, %v2560
        %v3551 = vsel %vm1680, %v2238, %v2562
        %v3552 = vsel %vm1680, %v2239, %v2564
        %v3553 = vsel %vm1680, %v2240, %v2566
        %v3554 = vsel %vm1680, %v2241, %v2568
        %v3555 = vsel %vm1680, %v2242, %v2570
        %v3556 = vsel %vm1680, %v2243, %v2572
        %v3557 = vsel %vm1680, %v2244, %v2574
        %v3558 = vsel %vm1680, %v2245, %v2576
        %v3559 = vsel %vm1680, %v2246, %v2578
        %v3560 = vsel %vm1680, %v2247, %v2580
        %v3561 = vsel %vm1680, %v2248, %v2582
        %v3562 = vsel %vm1680, %v2249, %v2584
        %v3563 = vsel %vm1680, %v2250, %v2586
        %v3564 = vsel %vm1680, %v2251, %v2588
        %v3565 = vsel %vm1680, %v2252, %v2590
        %v3566 = vsel %vm1680, %v2253, %v2592
        %v3567 = vsel %vm1680, %v2254, %v2594
        %v3568 = vsel %vm1680, %v2255, %v2596
        %v3569 = vsel %vm1680, %v2256, %v2598
        %v3570 = vsel %vm1680, %v2257, %v2600
        %v3571 = vsel %vm1680, %v2258, %v2602
        %v3572 = vsel %vm1680, %v2259, %v2604
        %v3573 = vsel %vm1680, %v2260, %v2606
        %v3574 = vsel %vm1680, %v2261, %v2608
        %v3575 = vsel %vm1680, %v2262, %v2610
        %v3576 = vsel %vm1680, %v2263, %v2612
        %v3577 = vsel %vm1680, %v2264, %v2614
        %v3578 = vsel %vm1680, %v2265, %v2616
        %v3579 = vsel %vm1680, %v2266, %v2618
        %v3580 = vsel %vm1680, %v2267, %v2620
        %v3581 = vsel %vm1746, %v3549, %v2686
        %v3582 = vsel %vm1746, %v3550, %v2688
        %v3583 = vsel %vm1746, %v3551, %v2690
        %v3584 = vsel %vm1746, %v3552, %v2692
        %v3585 = vsel %vm1746, %v3553, %v2694
        %v3586 = vsel %vm1746, %v3554, %v2696
        %v3587 = vsel %vm1746, %v3555, %v2698
        %v3588 = vsel %vm1746, %v3556, %v2700
        %v3589 = vsel %vm1746, %v3557, %v2702
        %v3590 = vsel %vm1746, %v3558, %v2704
        %v3591 = vsel %vm1746, %v3559, %v2706
        %v3592 = vsel %vm1746, %v3560, %v2708
        %v3593 = vsel %vm1746, %v3561, %v2710
        %v3594 = vsel %vm1746, %v3562, %v2712
        %v3595 = vsel %vm1746, %v3563, %v2714
        %v3596 = vsel %vm1746, %v3564, %v2716
        %v3597 = vsel %vm1746, %v3565, %v2718
        %v3598 = vsel %vm1746, %v3566, %v2720
        %v3599 = vsel %vm1746, %v3567, %v2722
        %v3600 = vsel %vm1746, %v3568, %v2724
        %v3601 = vsel %vm1746, %v3569, %v2726
        %v3602 = vsel %vm1746, %v3570, %v2728
        %v3603 = vsel %vm1746, %v3571, %v2730
        %v3604 = vsel %vm1746, %v3572, %v2732
        %v3605 = vsel %vm1746, %v3573, %v2734
        %v3606 = vsel %vm1746, %v3574, %v2736
        %v3607 = vsel %vm1746, %v3575, %v2738
        %v3608 = vsel %vm1746, %v3576, %v2740
        %v3609 = vsel %vm1746, %v3577, %v2742
        %v3610 = vsel %vm1746, %v3578, %v2744
        %v3611 = vsel %vm1746, %v3579, %v2746
        %v3612 = vsel %vm1746, %v3580, %v2748
        %v3613 = vsel %vm1812, %v3581, %v2814
        %v3614 = vsel %vm1812, %v3582, %v2816
        %v3615 = vsel %vm1812, %v3583, %v2818
        %v3616 = vsel %vm1812, %v3584, %v2820
        %v3617 = vsel %vm1812, %v3585, %v2822
        %v3618 = vsel %vm1812, %v3586, %v2824
        %v3619 = vsel %vm1812, %v3587, %v2826
        %v3620 = vsel %vm1812, %v3588, %v2828
        %v3621 = vsel %vm1812, %v3589, %v2830
        %v3622 = vsel %vm1812, %v3590, %v2832
        %v3623 = vsel %vm1812, %v3591, %v2834
        %v3624 = vsel %vm1812, %v3592, %v2836
        %v3625 = vsel %vm1812, %v3593, %v2838
        %v3626 = vsel %vm1812, %v3594, %v2840
        %v3627 = vsel %vm1812, %v3595, %v2842
        %v3628 = vsel %vm1812, %v3596, %v2844
        %v3629 = vsel %vm1812, %v3597, %v2846
        %v3630 = vsel %vm1812, %v3598, %v2848
        %v3631 = vsel %vm1812, %v3599, %v2850
        %v3632 = vsel %vm1812, %v3600, %v2852
        %v3633 = vsel %vm1812, %v3601, %v2854
        %v3634 = vsel %vm1812, %v3602, %v2856
        %v3635 = vsel %vm1812, %v3603, %v2858
        %v3636 = vsel %vm1812, %v3604, %v2860
        %v3637 = vsel %vm1812, %v3605, %v2862
        %v3638 = vsel %vm1812, %v3606, %v2864
        %v3639 = vsel %vm1812, %v3607, %v2866
        %v3640 = vsel %vm1812, %v3608, %v2868
        %v3641 = vsel %vm1812, %v3609, %v2870
        %v3642 = vsel %vm1812, %v3610, %v2872
        %v3643 = vsel %vm1812, %v3611, %v2874
        %v3644 = vsel %vm1812, %v3612, %v2876
        %v3645 = vsel %vm1878, %v3613, %v2942
        %v3646 = vsel %vm1878, %v3614, %v2944
        %v3647 = vsel %vm1878, %v3615, %v2946
        %v3648 = vsel %vm1878, %v3616, %v2948
        %v3649 = vsel %vm1878, %v3617, %v2950
        %v3650 = vsel %vm1878, %v3618, %v2952
        %v3651 = vsel %vm1878, %v3619, %v2954
        %v3652 = vsel %vm1878, %v3620, %v2956
        %v3653 = vsel %vm1878, %v3621, %v2958
        %v3654 = vsel %vm1878, %v3622, %v2960
        %v3655 = vsel %vm1878, %v3623, %v2962
        %v3656 = vsel %vm1878, %v3624, %v2964
        %v3657 = vsel %vm1878, %v3625, %v2966
        %v3658 = vsel %vm1878, %v3626, %v2968
        %v3659 = vsel %vm1878, %v3627, %v2970
        %v3660 = vsel %vm1878, %v3628, %v2972
        %v3661 = vsel %vm1878, %v3629, %v2974
        %v3662 = vsel %vm1878, %v3630, %v2976
        %v3663 = vsel %vm1878, %v3631, %v2978
        %v3664 = vsel %vm1878, %v3632, %v2980
        %v3665 = vsel %vm1878, %v3633, %v2982
        %v3666 = vsel %vm1878, %v3634, %v2984
        %v3667 = vsel %vm1878, %v3635, %v2986
        %v3668 = vsel %vm1878, %v3636, %v2988
        %v3669 = vsel %vm1878, %v3637, %v2990
        %v3670 = vsel %vm1878, %v3638, %v2992
        %v3671 = vsel %vm1878, %v3639, %v2994
        %v3672 = vsel %vm1878, %v3640, %v2996
        %v3673 = vsel %vm1878, %v3641, %v2998
        %v3674 = vsel %vm1878, %v3642, %v3000
        %v3675 = vsel %vm1878, %v3643, %v3002
        %v3676 = vsel %vm1878, %v3644, %v3004
        %vm3677 = vcmask 326656
        %v3678 = vsel %vm3677, %v3645, %v3070
        %v3679 = vsel %vm3677, %v3646, %v3072
        %v3680 = vsel %vm3677, %v3647, %v3074
        %v3681 = vsel %vm3677, %v3648, %v3076
        %v3682 = vsel %vm3677, %v3649, %v3078
        %v3683 = vsel %vm3677, %v3650, %v3080
        %v3684 = vsel %vm3677, %v3651, %v3082
        %v3685 = vsel %vm3677, %v3652, %v3084
        %v3686 = vsel %vm3677, %v3653, %v3086
        %v3687 = vsel %vm3677, %v3654, %v3088
        %v3688 = vsel %vm3677, %v3655, %v3090
        %v3689 = vsel %vm3677, %v3656, %v3092
        %v3690 = vsel %vm3677, %v3657, %v3094
        %v3691 = vsel %vm3677, %v3658, %v3096
        %v3692 = vsel %vm3677, %v3659, %v3098
        %v3693 = vsel %vm3677, %v3660, %v3100
        %v3694 = vsel %vm3677, %v3661, %v3102
        %v3695 = vsel %vm3677, %v3662, %v3104
        %v3696 = vsel %vm3677, %v3663, %v3106
        %v3697 = vsel %vm3677, %v3664, %v3108
        %v3698 = vsel %vm3677, %v3665, %v3110
        %v3699 = vsel %vm3677, %v3666, %v3112
        %v3700 = vsel %vm3677, %v3667, %v3114
        %v3701 = vsel %vm3677, %v3668, %v3116
        %v3702 = vsel %vm3677, %v3669, %v3118
        %v3703 = vsel %vm3677, %v3670, %v3120
        %v3704 = vsel %vm3677, %v3671, %v3122
        %v3705 = vsel %vm3677, %v3672, %v3124
        %v3706 = vsel %vm3677, %v3673, %v3126
        %v3707 = vsel %vm3677, %v3674, %v3128
        %v3708 = vsel %vm3677, %v3675, %v3130
        %v3709 = vsel %vm3677, %v3676, %v3132
        %vm3710 = vcmask 392192
        %v3711 = vsel %vm3710, %v3678, %v3198
        %v3712 = vsel %vm3710, %v3679, %v3200
        %v3713 = vsel %vm3710, %v3680, %v3202
        %v3714 = vsel %vm3710, %v3681, %v3204
        %v3715 = vsel %vm3710, %v3682, %v3206
        %v3716 = vsel %vm3710, %v3683, %v3208
        %v3717 = vsel %vm3710, %v3684, %v3210
        %v3718 = vsel %vm3710, %v3685, %v3212
        %v3719 = vsel %vm3710, %v3686, %v3214
        %v3720 = vsel %vm3710, %v3687, %v3216
        %v3721 = vsel %vm3710, %v3688, %v3218
        %v3722 = vsel %vm3710, %v3689, %v3220
        %v3723 = vsel %vm3710, %v3690, %v3222
        %v3724 = vsel %vm3710, %v3691, %v3224
        %v3725 = vsel %vm3710, %v3692, %v3226
        %v3726 = vsel %vm3710, %v3693, %v3228
        %v3727 = vsel %vm3710, %v3694, %v3230
        %v3728 = vsel %vm3710, %v3695, %v3232
        %v3729 = vsel %vm3710, %v3696, %v3234
        %v3730 = vsel %vm3710, %v3697, %v3236
        %v3731 = vsel %vm3710, %v3698, %v3238
        %v3732 = vsel %vm3710, %v3699, %v3240
        %v3733 = vsel %vm3710, %v3700, %v3242
        %v3734 = vsel %vm3710, %v3701, %v3244
        %v3735 = vsel %vm3710, %v3702, %v3246
        %v3736 = vsel %vm3710, %v3703, %v3248
        %v3737 = vsel %vm3710, %v3704, %v3250
        %v3738 = vsel %vm3710, %v3705, %v3252
        %v3739 = vsel %vm3710, %v3706, %v3254
        %v3740 = vsel %vm3710, %v3707, %v3256
        %v3741 = vsel %vm3710, %v3708, %v3258
        %v3742 = vsel %vm3710, %v3709, %v3260
        %vm3743 = vcmask 457728
        %v3744 = vsel %vm3743, %v3711, %v3326
        %v3745 = vsel %vm3743, %v3712, %v3328
        %v3746 = vsel %vm3743, %v3713, %v3330
        %v3747 = vsel %vm3743, %v3714, %v3332
        %v3748 = vsel %vm3743, %v3715, %v3334
        %v3749 = vsel %vm3743, %v3716, %v3336
        %v3750 = vsel %vm3743, %v3717, %v3338
        %v3751 = vsel %vm3743, %v3718, %v3340
        %v3752 = vsel %vm3743, %v3719, %v3342
        %v3753 = vsel %vm3743, %v3720, %v3344
        %v3754 = vsel %vm3743, %v3721, %v3346
        %v3755 = vsel %vm3743, %v3722, %v3348
        %v3756 = vsel %vm3743, %v3723, %v3350
        %v3757 = vsel %vm3743, %v3724, %v3352
        %v3758 = vsel %vm3743, %v3725, %v3354
        %v3759 = vsel %vm3743, %v3726, %v3356
        %v3760 = vsel %vm3743, %v3727, %v3358
        %v3761 = vsel %vm3743, %v3728, %v3360
        %v3762 = vsel %vm3743, %v3729, %v3362
        %v3763 = vsel %vm3743, %v3730, %v3364
        %v3764 = vsel %vm3743, %v3731, %v3366
        %v3765 = vsel %vm3743, %v3732, %v3368
        %v3766 = vsel %vm3743, %v3733, %v3370
        %v3767 = vsel %vm3743, %v3734, %v3372
        %v3768 = vsel %vm3743, %v3735, %v3374
        %v3769 = vsel %vm3743, %v3736, %v3376
        %v3770 = vsel %vm3743, %v3737, %v3378
        %v3771 = vsel %vm3743, %v3738, %v3380
        %v3772 = vsel %vm3743, %v3739, %v3382
        %v3773 = vsel %vm3743, %v3740, %v3384
        %v3774 = vsel %vm3743, %v3741, %v3386
        %v3775 = vsel %vm3743, %v3742, %v3388
        %vm3776 = vcmask 523264
        %v3777 = vsel %vm3776, %v3744, %v3454
        %v3778 = vsel %vm3776, %v3745, %v3456
        %v3779 = vsel %vm3776, %v3746, %v3458
        %v3780 = vsel %vm3776, %v3747, %v3460
        %v3781 = vsel %vm3776, %v3748, %v3462
        %v3782 = vsel %vm3776, %v3749, %v3464
        %v3783 = vsel %vm3776, %v3750, %v3466
        %v3784 = vsel %vm3776, %v3751, %v3468
        %v3785 = vsel %vm3776, %v3752, %v3470
        %v3786 = vsel %vm3776, %v3753, %v3472
        %v3787 = vsel %vm3776, %v3754, %v3474
        %v3788 = vsel %vm3776, %v3755, %v3476
        %v3789 = vsel %vm3776, %v3756, %v3478
        %v3790 = vsel %vm3776, %v3757, %v3480
        %v3791 = vsel %vm3776, %v3758, %v3482
        %v3792 = vsel %vm3776, %v3759, %v3484
        %v3793 = vsel %vm3776, %v3760, %v3486
        %v3794 = vsel %vm3776, %v3761, %v3488
        %v3795 = vsel %vm3776, %v3762, %v3490
        %v3796 = vsel %vm3776, %v3763, %v3492
        %v3797 = vsel %vm3776, %v3764, %v3494
        %v3798 = vsel %vm3776, %v3765, %v3496
        %v3799 = vsel %vm3776, %v3766, %v3498
        %v3800 = vsel %vm3776, %v3767, %v3500
        %v3801 = vsel %vm3776, %v3768, %v3502
        %v3802 = vsel %vm3776, %v3769, %v3504
        %v3803 = vsel %vm3776, %v3770, %v3506
        %v3804 = vsel %vm3776, %v3771, %v3508
        %v3805 = vsel %vm3776, %v3772, %v3510
        %v3806 = vsel %vm3776, %v3773, %v3512
        %v3807 = vsel %vm3776, %v3774, %v3514
        %v3808 = vsel %vm3776, %v3775, %v3516
        %v3809 = vld [vmem:[%s2] sm:$0xff]
        %v3810 = vld [vmem:[%s2 + $0x8] sm:$0xff]
        %v3811 = vld [vmem:[%s2 + $0x10] sm:$0xff]
        %v3812 = vld [vmem:[%s2 + $0x18] sm:$0xff]
        %v3813 = vld [vmem:[%s2 + $0x20] sm:$0xff]
        %v3814 = vld [vmem:[%s2 + $0x28] sm:$0xff]
        %v3815 = vld [vmem:[%s2 + $0x30] sm:$0xff]
        %v3816 = vld [vmem:[%s2 + $0x38] sm:$0xff]
        %v3817 = vld [vmem:[%s2 + $0x40] sm:$0xff]
        %v3818 = vld [vmem:[%s3] sm:$0xf]
        %v3820 = vsel %vm260, %v196, 0
        %v3823 = vsel %vm260, %v197, 0
        %v3826 = vsel %vm260, %v198, 0
        %v3829 = vsel %vm260, %v199, 0
        %v3832 = vsel %vm260, %v200, 0
        %v3835 = vsel %vm260, %v201, 0
        %v3838 = vsel %vm260, %v202, 0
        %v3841 = vsel %vm260, %v203, 0
        %v3844 = vsel %vm260, %v204, 0
        %v3847 = vsel %vm260, %v205, 0
        %v3850 = vsel %vm260, %v206, 0
        %v3853 = vsel %vm260, %v207, 0
        %v3856 = vsel %vm260, %v208, 0
        %v3859 = vsel %vm260, %v209, 0
        %v3862 = vsel %vm260, %v210, 0
        %v3865 = vsel %vm260, %v211, 0
        %v3868 = vsel %vm260, %v212, 0
        %v3871 = vsel %vm260, %v213, 0
        %v3874 = vsel %vm260, %v214, 0
        %v3877 = vsel %vm260, %v215, 0
        %v3880 = vsel %vm260, %v216, 0
        %v3883 = vsel %vm260, %v217, 0
        %v3886 = vsel %vm260, %v218, 0
        %v3889 = vsel %vm260, %v219, 0
        %v3892 = vsel %vm260, %v220, 0
        %v3895 = vsel %vm260, %v221, 0
        %v3898 = vsel %vm260, %v222, 0
        %v3901 = vsel %vm260, %v223, 0
        %v3904 = vsel %vm260, %v224, 0
        %v3907 = vsel %vm260, %v225, 0
        %v3910 = vsel %vm260, %v226, 0
        %v3913 = vsel %vm260, %v227, 0
        %v3916 = vsel %vm2013, %v3818, 0
        %3918 = vmatpush.msra.mxu0 0.0
        %3919 = vmatpush.msra.mxu0 0.0
        %3920 = vmatpush.msra.mxu0 0.0
        %3921 = vmatpush.msra.mxu0 0.0
        %3922 = vmatpush.msra.mxu0 0.0
        %3923 = vmatpush.msra.mxu0 0.0
        %3924 = vmatpush.msra.mxu0 0.0
        %3925 = vmatpush.msra.mxu0 0.0
        %3926 = vmatpush.msra.mxu0 0.0
        %3927 = vmatpush.msra.mxu0 0.0
        %3928 = vmatpush.msra.mxu0 0.0
        %3929 = vmatpush.msra.mxu0 0.0
        %3930 = vmatpush.msra.mxu0 0.0
        %3931 = vmatpush.msra.mxu0 0.0
        %3932 = vmatpush.msra.mxu0 0.0
        %3933 = vmatpush.msra.mxu0 %v3916
        %3934 = vmatmul.f32.gmra.mxu0 %v3820
        %v3935 = vpop.f32.mrf.mxu0
        %v3936 = vadd.f32 0.0, %v3935
        %3937 = vmatmul.f32.gmra.mxu0 %v3823
        %v3938 = vpop.f32.mrf.mxu0
        %v3939 = vadd.f32 0.0, %v3938
        %3940 = vmatmul.f32.gmra.mxu0 %v3826
        %v3941 = vpop.f32.mrf.mxu0
        %v3942 = vadd.f32 0.0, %v3941
        %3943 = vmatmul.f32.gmra.mxu0 %v3829
        %v3944 = vpop.f32.mrf.mxu0
        %v3945 = vadd.f32 0.0, %v3944
        %3946 = vmatmul.f32.gmra.mxu0 %v3832
        %v3947 = vpop.f32.mrf.mxu0
        %v3948 = vadd.f32 0.0, %v3947
        %3949 = vmatmul.f32.gmra.mxu0 %v3835
        %v3950 = vpop.f32.mrf.mxu0
        %v3951 = vadd.f32 0.0, %v3950
        %3952 = vmatmul.f32.gmra.mxu0 %v3838
        %v3953 = vpop.f32.mrf.mxu0
        %v3954 = vadd.f32 0.0, %v3953
        %3955 = vmatmul.f32.gmra.mxu0 %v3841
        %v3956 = vpop.f32.mrf.mxu0
        %v3957 = vadd.f32 0.0, %v3956
        %3958 = vmatmul.f32.gmra.mxu0 %v3844
        %v3959 = vpop.f32.mrf.mxu0
        %v3960 = vadd.f32 0.0, %v3959
        %3961 = vmatmul.f32.gmra.mxu0 %v3847
        %v3962 = vpop.f32.mrf.mxu0
        %v3963 = vadd.f32 0.0, %v3962
        %3964 = vmatmul.f32.gmra.mxu0 %v3850
        %v3965 = vpop.f32.mrf.mxu0
        %v3966 = vadd.f32 0.0, %v3965
        %3967 = vmatmul.f32.gmra.mxu0 %v3853
        %v3968 = vpop.f32.mrf.mxu0
        %v3969 = vadd.f32 0.0, %v3968
        %3970 = vmatmul.f32.gmra.mxu0 %v3856
        %v3971 = vpop.f32.mrf.mxu0
        %v3972 = vadd.f32 0.0, %v3971
        %3973 = vmatmul.f32.gmra.mxu0 %v3859
        %v3974 = vpop.f32.mrf.mxu0
        %v3975 = vadd.f32 0.0, %v3974
        %3976 = vmatmul.f32.gmra.mxu0 %v3862
        %v3977 = vpop.f32.mrf.mxu0
        %v3978 = vadd.f32 0.0, %v3977
        %3979 = vmatmul.f32.gmra.mxu0 %v3865
        %v3980 = vpop.f32.mrf.mxu0
        %v3981 = vadd.f32 0.0, %v3980
        %3982 = vmatmul.f32.gmra.mxu0 %v3868
        %v3983 = vpop.f32.mrf.mxu0
        %v3984 = vadd.f32 0.0, %v3983
        %3985 = vmatmul.f32.gmra.mxu0 %v3871
        %v3986 = vpop.f32.mrf.mxu0
        %v3987 = vadd.f32 0.0, %v3986
        %3988 = vmatmul.f32.gmra.mxu0 %v3874
        %v3989 = vpop.f32.mrf.mxu0
        %v3990 = vadd.f32 0.0, %v3989
        %3991 = vmatmul.f32.gmra.mxu0 %v3877
        %v3992 = vpop.f32.mrf.mxu0
        %v3993 = vadd.f32 0.0, %v3992
        %3994 = vmatmul.f32.gmra.mxu0 %v3880
        %v3995 = vpop.f32.mrf.mxu0
        %v3996 = vadd.f32 0.0, %v3995
        %3997 = vmatmul.f32.gmra.mxu0 %v3883
        %v3998 = vpop.f32.mrf.mxu0
        %v3999 = vadd.f32 0.0, %v3998
        %4000 = vmatmul.f32.gmra.mxu0 %v3886
        %v4001 = vpop.f32.mrf.mxu0
        %v4002 = vadd.f32 0.0, %v4001
        %4003 = vmatmul.f32.gmra.mxu0 %v3889
        %v4004 = vpop.f32.mrf.mxu0
        %v4005 = vadd.f32 0.0, %v4004
        %4006 = vmatmul.f32.gmra.mxu0 %v3892
        %v4007 = vpop.f32.mrf.mxu0
        %v4008 = vadd.f32 0.0, %v4007
        %4009 = vmatmul.f32.gmra.mxu0 %v3895
        %v4010 = vpop.f32.mrf.mxu0
        %v4011 = vadd.f32 0.0, %v4010
        %4012 = vmatmul.f32.gmra.mxu0 %v3898
        %v4013 = vpop.f32.mrf.mxu0
        %v4014 = vadd.f32 0.0, %v4013
        %4015 = vmatmul.f32.gmra.mxu0 %v3901
        %v4016 = vpop.f32.mrf.mxu0
        %v4017 = vadd.f32 0.0, %v4016
        %4018 = vmatmul.f32.gmra.mxu0 %v3904
        %v4019 = vpop.f32.mrf.mxu0
        %v4020 = vadd.f32 0.0, %v4019
        %4021 = vmatmul.f32.gmra.mxu0 %v3907
        %v4022 = vpop.f32.mrf.mxu0
        %v4023 = vadd.f32 0.0, %v4022
        %4024 = vmatmul.f32.gmra.mxu0 %v3910
        %v4025 = vpop.f32.mrf.mxu0
        %v4026 = vadd.f32 0.0, %v4025
        %4027 = vmatmul.f32.gmra.mxu0 %v3913
        %v4028 = vpop.f32.mrf.mxu0
        %v4029 = vadd.f32 0.0, %v4028
        %4030 = vdwg.mxu0
        %vm4031 = vcmask 588800
        %v4033 = vsel %vm4031, %v3777, 0
        %v4036 = vsel %vm4031, %v3778, 0
        %v4039 = vsel %vm4031, %v3779, 0
        %v4042 = vsel %vm4031, %v3780, 0
        %v4045 = vsel %vm4031, %v3781, 0
        %v4048 = vsel %vm4031, %v3782, 0
        %v4051 = vsel %vm4031, %v3783, 0
        %v4054 = vsel %vm4031, %v3784, 0
        %v4057 = vsel %vm4031, %v3785, 0
        %v4060 = vsel %vm4031, %v3786, 0
        %v4063 = vsel %vm4031, %v3787, 0
        %v4066 = vsel %vm4031, %v3788, 0
        %v4069 = vsel %vm4031, %v3789, 0
        %v4072 = vsel %vm4031, %v3790, 0
        %v4075 = vsel %vm4031, %v3791, 0
        %v4078 = vsel %vm4031, %v3792, 0
        %v4081 = vsel %vm4031, %v3793, 0
        %v4084 = vsel %vm4031, %v3794, 0
        %v4087 = vsel %vm4031, %v3795, 0
        %v4090 = vsel %vm4031, %v3796, 0
        %v4093 = vsel %vm4031, %v3797, 0
        %v4096 = vsel %vm4031, %v3798, 0
        %v4099 = vsel %vm4031, %v3799, 0
        %v4102 = vsel %vm4031, %v3800, 0
        %v4105 = vsel %vm4031, %v3801, 0
        %v4108 = vsel %vm4031, %v3802, 0
        %v4111 = vsel %vm4031, %v3803, 0
        %v4114 = vsel %vm4031, %v3804, 0
        %v4117 = vsel %vm4031, %v3805, 0
        %v4120 = vsel %vm4031, %v3806, 0
        %v4123 = vsel %vm4031, %v3807, 0
        %v4126 = vsel %vm4031, %v3808, 0
        %4128 = vmatpush.msra.mxu0 0.0
        %4129 = vmatpush.msra.mxu0 0.0
        %4130 = vmatpush.msra.mxu0 0.0
        %4131 = vmatpush.msra.mxu0 0.0
        %4132 = vmatpush.msra.mxu0 0.0
        %4133 = vmatpush.msra.mxu0 0.0
        %4134 = vmatpush.msra.mxu0 0.0
        %4135 = vmatpush.msra.mxu0 %v3817
        %4136 = vmatpush.msra.mxu0 %v3816
        %4137 = vmatpush.msra.mxu0 %v3815
        %4138 = vmatpush.msra.mxu0 %v3814
        %4139 = vmatpush.msra.mxu0 %v3813
        %4140 = vmatpush.msra.mxu0 %v3812
        %4141 = vmatpush.msra.mxu0 %v3811
        %4142 = vmatpush.msra.mxu0 %v3810
        %4143 = vmatpush.msra.mxu0 %v3809
        %4144 = vmatmul.f32.gmra.mxu0 %v4033
        %v4145 = vpop.f32.mrf.mxu0
        %v4146 = vadd.f32 %v3936, %v4145
        %4147 = vmatmul.f32.gmra.mxu0 %v4036
        %v4148 = vpop.f32.mrf.mxu0
        %v4149 = vadd.f32 %v3939, %v4148
        %4150 = vmatmul.f32.gmra.mxu0 %v4039
        %v4151 = vpop.f32.mrf.mxu0
        %v4152 = vadd.f32 %v3942, %v4151
        %4153 = vmatmul.f32.gmra.mxu0 %v4042
        %v4154 = vpop.f32.mrf.mxu0
        %v4155 = vadd.f32 %v3945, %v4154
        %4156 = vmatmul.f32.gmra.mxu0 %v4045
        %v4157 = vpop.f32.mrf.mxu0
        %v4158 = vadd.f32 %v3948, %v4157
        %4159 = vmatmul.f32.gmra.mxu0 %v4048
        %v4160 = vpop.f32.mrf.mxu0
        %v4161 = vadd.f32 %v3951, %v4160
        %4162 = vmatmul.f32.gmra.mxu0 %v4051
        %v4163 = vpop.f32.mrf.mxu0
        %v4164 = vadd.f32 %v3954, %v4163
        %4165 = vmatmul.f32.gmra.mxu0 %v4054
        %v4166 = vpop.f32.mrf.mxu0
        %v4167 = vadd.f32 %v3957, %v4166
        %4168 = vmatmul.f32.gmra.mxu0 %v4057
        %v4169 = vpop.f32.mrf.mxu0
        %v4170 = vadd.f32 %v3960, %v4169
        %4171 = vmatmul.f32.gmra.mxu0 %v4060
        %v4172 = vpop.f32.mrf.mxu0
        %v4173 = vadd.f32 %v3963, %v4172
        %4174 = vmatmul.f32.gmra.mxu0 %v4063
        %v4175 = vpop.f32.mrf.mxu0
        %v4176 = vadd.f32 %v3966, %v4175
        %4177 = vmatmul.f32.gmra.mxu0 %v4066
        %v4178 = vpop.f32.mrf.mxu0
        %v4179 = vadd.f32 %v3969, %v4178
        %4180 = vmatmul.f32.gmra.mxu0 %v4069
        %v4181 = vpop.f32.mrf.mxu0
        %v4182 = vadd.f32 %v3972, %v4181
        %4183 = vmatmul.f32.gmra.mxu0 %v4072
        %v4184 = vpop.f32.mrf.mxu0
        %v4185 = vadd.f32 %v3975, %v4184
        %4186 = vmatmul.f32.gmra.mxu0 %v4075
        %v4187 = vpop.f32.mrf.mxu0
        %v4188 = vadd.f32 %v3978, %v4187
        %4189 = vmatmul.f32.gmra.mxu0 %v4078
        %v4190 = vpop.f32.mrf.mxu0
        %v4191 = vadd.f32 %v3981, %v4190
        %4192 = vmatmul.f32.gmra.mxu0 %v4081
        %v4193 = vpop.f32.mrf.mxu0
        %v4194 = vadd.f32 %v3984, %v4193
        %4195 = vmatmul.f32.gmra.mxu0 %v4084
        %v4196 = vpop.f32.mrf.mxu0
        %v4197 = vadd.f32 %v3987, %v4196
        %4198 = vmatmul.f32.gmra.mxu0 %v4087
        %v4199 = vpop.f32.mrf.mxu0
        %v4200 = vadd.f32 %v3990, %v4199
        %4201 = vmatmul.f32.gmra.mxu0 %v4090
        %v4202 = vpop.f32.mrf.mxu0
        %v4203 = vadd.f32 %v3993, %v4202
        %4204 = vmatmul.f32.gmra.mxu0 %v4093
        %v4205 = vpop.f32.mrf.mxu0
        %v4206 = vadd.f32 %v3996, %v4205
        %4207 = vmatmul.f32.gmra.mxu0 %v4096
        %v4208 = vpop.f32.mrf.mxu0
        %v4209 = vadd.f32 %v3999, %v4208
        %4210 = vmatmul.f32.gmra.mxu0 %v4099
        %v4211 = vpop.f32.mrf.mxu0
        %v4212 = vadd.f32 %v4002, %v4211
        %4213 = vmatmul.f32.gmra.mxu0 %v4102
        %v4214 = vpop.f32.mrf.mxu0
        %v4215 = vadd.f32 %v4005, %v4214
        %4216 = vmatmul.f32.gmra.mxu0 %v4105
        %v4217 = vpop.f32.mrf.mxu0
        %v4218 = vadd.f32 %v4008, %v4217
        %4219 = vmatmul.f32.gmra.mxu0 %v4108
        %v4220 = vpop.f32.mrf.mxu0
        %v4221 = vadd.f32 %v4011, %v4220
        %4222 = vmatmul.f32.gmra.mxu0 %v4111
        %v4223 = vpop.f32.mrf.mxu0
        %v4224 = vadd.f32 %v4014, %v4223
        %4225 = vmatmul.f32.gmra.mxu0 %v4114
        %v4226 = vpop.f32.mrf.mxu0
        %v4227 = vadd.f32 %v4017, %v4226
        %4228 = vmatmul.f32.gmra.mxu0 %v4117
        %v4229 = vpop.f32.mrf.mxu0
        %v4230 = vadd.f32 %v4020, %v4229
        %4231 = vmatmul.f32.gmra.mxu0 %v4120
        %v4232 = vpop.f32.mrf.mxu0
        %v4233 = vadd.f32 %v4023, %v4232
        %4234 = vmatmul.f32.gmra.mxu0 %v4123
        %v4235 = vpop.f32.mrf.mxu0
        %v4236 = vadd.f32 %v4026, %v4235
        %4237 = vmatmul.f32.gmra.mxu0 %v4126
        %v4238 = vpop.f32.mrf.mxu0
        %v4239 = vadd.f32 %v4029, %v4238
        %4240 = vdwg.mxu0
        %v4241 = vadd.f32 %v4146, %v4152
        %v4242 = vadd.f32 %v4149, %v4155
        %v4243 = vadd.f32 %v4158, %v4164
        %v4244 = vadd.f32 %v4161, %v4167
        %v4245 = vadd.f32 %v4170, %v4176
        %v4246 = vadd.f32 %v4173, %v4179
        %v4247 = vadd.f32 %v4182, %v4188
        %v4248 = vadd.f32 %v4185, %v4191
        %v4249 = vadd.f32 %v4194, %v4200
        %v4250 = vadd.f32 %v4197, %v4203
        %v4251 = vadd.f32 %v4206, %v4212
        %v4252 = vadd.f32 %v4209, %v4215
        %v4253 = vadd.f32 %v4218, %v4224
        %v4254 = vadd.f32 %v4221, %v4227
        %v4255 = vadd.f32 %v4230, %v4236
        %v4256 = vadd.f32 %v4233, %v4239
        %4257 = vst.msk [vmem:[#allocation4] sm:$0xff] %vm1680, %v4241
        %4258 = vst.msk [vmem:[#allocation4 + $0x8] sm:$0xff] %vm1680, %v4242
        %4259 = vst.msk [vmem:[#allocation4 + $0x10] sm:$0xff] %vm1680, %v4243
        %4260 = vst.msk [vmem:[#allocation4 + $0x18] sm:$0xff] %vm1680, %v4244
        %4261 = vst.msk [vmem:[#allocation4 + $0x20] sm:$0xff] %vm1680, %v4245
        %4262 = vst.msk [vmem:[#allocation4 + $0x28] sm:$0xff] %vm1680, %v4246
        %4263 = vst.msk [vmem:[#allocation4 + $0x30] sm:$0xff] %vm1680, %v4247
        %4264 = vst.msk [vmem:[#allocation4 + $0x38] sm:$0xff] %vm1680, %v4248
        %4265 = vst.msk [vmem:[#allocation4 + $0x40] sm:$0xff] %vm1680, %v4249
        %4266 = vst.msk [vmem:[#allocation4 + $0x48] sm:$0xff] %vm1680, %v4250
        %4267 = vst.msk [vmem:[#allocation4 + $0x50] sm:$0xff] %vm1680, %v4251
        %4268 = vst.msk [vmem:[#allocation4 + $0x58] sm:$0xff] %vm1680, %v4252
        %4269 = vst.msk [vmem:[#allocation4 + $0x60] sm:$0xff] %vm1680, %v4253
        %4270 = vst.msk [vmem:[#allocation4 + $0x68] sm:$0xff] %vm1680, %v4254
        %4271 = vst.msk [vmem:[#allocation4 + $0x70] sm:$0xff] %vm1680, %v4255
        %4272 = vst.msk [vmem:[#allocation4 + $0x78] sm:$0xff] %vm1680, %v4256
        %v4273 = vld [vmem:[#allocation4] ss:$2 sm:$0xff]
        %s4274 = scalar_lea.vmem [#allocation4], 16
        %v4275 = vld [vmem:[%s4274] ss:$2 sm:$0xff]
        %s4276 = scalar_lea.vmem [#allocation4], 32
        %v4277 = vld [vmem:[%s4276] ss:$2 sm:$0xff]
        %s4278 = scalar_lea.vmem [#allocation4], 48
        %v4279 = vld [vmem:[%s4278] ss:$2 sm:$0xff]
        %s4280 = scalar_lea.vmem [#allocation4], 64
        %v4281 = vld [vmem:[%s4280] ss:$2 sm:$0xff]
        %s4282 = scalar_lea.vmem [#allocation4], 80
        %v4283 = vld [vmem:[%s4282] ss:$2 sm:$0xff]
        %s4284 = scalar_lea.vmem [#allocation4], 96
        %v4285 = vld [vmem:[%s4284] ss:$2 sm:$0xff]
        %s4286 = scalar_lea.vmem [#allocation4], 112
        %v4287 = vld [vmem:[%s4286] ss:$2 sm:$0xff]
        %s4288 = scalar_lea.vmem [#allocation4], 1
        %v4289 = vld [vmem:[%s4288] ss:$2 sm:$0xff]
        %s4290 = scalar_lea.vmem [#allocation4], 17
        %v4291 = vld [vmem:[%s4290] ss:$2 sm:$0xff]
        %s4292 = scalar_lea.vmem [#allocation4], 33
        %v4293 = vld [vmem:[%s4292] ss:$2 sm:$0xff]
        %s4294 = scalar_lea.vmem [#allocation4], 49
        %v4295 = vld [vmem:[%s4294] ss:$2 sm:$0xff]
        %s4296 = scalar_lea.vmem [#allocation4], 65
        %v4297 = vld [vmem:[%s4296] ss:$2 sm:$0xff]
        %s4298 = scalar_lea.vmem [#allocation4], 81
        %v4299 = vld [vmem:[%s4298] ss:$2 sm:$0xff]
        %s4300 = scalar_lea.vmem [#allocation4], 97
        %v4301 = vld [vmem:[%s4300] ss:$2 sm:$0xff]
        %s4302 = scalar_lea.vmem [#allocation4], 113
        %v4303 = vld [vmem:[%s4302] ss:$2 sm:$0xff]
        %v4304 = vadd.f32 %v4273, %v4289
        %v4305 = vadd.f32 %v4275, %v4291
        %v4306 = vadd.f32 %v4277, %v4293
        %v4307 = vadd.f32 %v4279, %v4295
        %v4308 = vadd.f32 %v4281, %v4297
        %v4309 = vadd.f32 %v4283, %v4299
        %v4310 = vadd.f32 %v4285, %v4301
        %v4311 = vadd.f32 %v4287, %v4303
        %v4312 = vmul.f32 %v4304, 0.25
        %v4313 = vmul.f32 %v4305, 0.25
        %v4314 = vmul.f32 %v4306, 0.25
        %v4315 = vmul.f32 %v4307, 0.25
        %v4316 = vmul.f32 %v4308, 0.25
        %v4317 = vmul.f32 %v4309, 0.25
        %v4318 = vmul.f32 %v4310, 0.25
        %v4319 = vmul.f32 %v4311, 0.25
        %4320 = vst.msk [vmem:[%s190] sm:$0xff] %vm1680, %v4312
        %4321 = vst.msk [vmem:[%s190 + $0x8] sm:$0xff] %vm1680, %v4313
        %4322 = vst.msk [vmem:[%s190 + $0x10] sm:$0xff] %vm1680, %v4314
        %4323 = vst.msk [vmem:[%s190 + $0x18] sm:$0xff] %vm1680, %v4315
        %4324 = vst.msk [vmem:[%s190 + $0x20] sm:$0xff] %vm1680, %v4316
        %4325 = vst.msk [vmem:[%s190 + $0x28] sm:$0xff] %vm1680, %v4317
        %4326 = vst.msk [vmem:[%s190 + $0x30] sm:$0xff] %vm1680, %v4318
        %4327 = vst.msk [vmem:[%s190 + $0x38] sm:$0xff] %vm1680, %v4319
        %s4328 = sand.u32 %s115, 1
        %s4329 = scalar_lea.sflag [#allocation6], %s4328
        %s4330 = sand.u32 %s115, 1
        %s4331 = smul.addr %s4330, 64
        %s4332 = scalar_lea.vmem [#allocation5], %s4331
        // Predicated region
        $region37: #{tpu_custom_call.1} parent=35 // pred_check
          %p4333 = pneg %p125
        $region38: #{tpu_custom_call.1} parent=35 // pred_check_branch
          %4335 = sbr.rel (%p4333) target = $region40
        $region39: #{tpu_custom_call.1} parent=35 // pred_region
          %4337 = vsyncadd %s4329, 0
          %s4338 = smul.addr %s18, 8
          %s4339 = smul.addr %s4338, 8
          %s4340 = scalar_lea.hbm %s4, %s4339
          %s4341 = sshll.u32 %s4332, 4
          %s4342 = int_to_ptr.vmem [resolvable:$true] %s4341
          %s4343 = sshll.u32 %s4340, 4
          %s4344 = int_to_ptr.hbm [resolvable:$true] %s4343
          %4349 = dma.vmem_to_hbm [thread:$0]  %s4342, 1024, %s4344, %s4329, 128, 128, 8
        $region40: #{tpu_custom_call.1} parent=35 // pred_fallthru
          _
      $region36: #{tpu_custom_call.1} parent=5 // pred_fallthru
        _
      %p4350 = scmp.le.s32.totalorder 2, %s13
      // Predicated region
      $region41: #{tpu_custom_call.1} parent=5 // pred_check
        %p4351 = pneg %p4350
      $region42: #{tpu_custom_call.1} parent=5 // pred_check_branch
        %4353 = sbr.rel (%p4351) target = $region44
      $region43: #{tpu_custom_call.1} parent=5 // pred_region
        %s4354 = ssub.s32 %s13, 2
        // Predicated region
        $region45: #{tpu_custom_call.1} parent=43 // pred_check
          %p4355 = pneg %p131
        $region46: #{tpu_custom_call.1} parent=43 // pred_check_branch
          %4357 = sbr.rel (%p4355) target = $region48
        $region47: #{tpu_custom_call.1} parent=43 // pred_region
          %s4358 = sand.u32 %s116, 1
          %s4359 = scalar_lea.sflag [#allocation6], %s4358
          %s4360 = sand.u32 %s116, 1
          %s4361 = smul.addr %s4360, 64
          %s4362 = scalar_lea.vmem [#allocation5], %s4361
          %4364 = dma.done %s4359, 1024
        $region48: #{tpu_custom_call.1} parent=43 // pred_fallthru
          _
      $region44: #{tpu_custom_call.1} parent=5 // pred_fallthru
        _
    $region6: #{tpu_custom_call.1} parent=1 // loop_footer
      %s17 = sadd.s32 1, %s13
    $region7: #{tpu_custom_call.1} parent=1 // loop_footer_branch
      %12 = sbr.rel target = $region3
    $region8: #{tpu_custom_call.1} parent=1 // loop_exit
      _
    %4365 = vsyncpa [#allocation6], 1
    %s4366 = scalar_lea.sflag [#allocation6], 1
    %4367 = vsyncpa %s4366, 1

</llo_original>
